<compile_context>
chip_gen: v6e
topology: v6e:2x2x1
jax: 0.10.0
libtpu: 0.0.40
codegen_flags: <defaults>
</compile_context>

<pallas_src>
import functools

import jax
import jax.numpy as jnp
from jax.experimental import pallas as pl
from jax.experimental.pallas import tpu as pltpu

_BN_EPS = 1e-5
_CPAD = 8  # pad channel axis to one full sublane tile


def basic_block_kernel(x_ref, mask_ref, w1_ref, g1_ref, b1_ref,
                       w2_ref, g2_ref, b2_ref, out_ref, *, wpad, m_count):
    """Fused relu(bn2(conv2(relu(bn1(conv1(x))))) + x) on a [Cpad, Ppad] slab.

    x_ref    : [Cpad, Ppad]  zero-haloed, zero-channel-padded activation slab
    mask_ref : [1, Ppad]     1.0 at interior (valid N*H*W) positions, else 0.0
    w*_ref   : [9, Cpad, Cpad]  per-tap [Cout, Cin] matrices (taps row-major)
    g*/b*    : [Cpad, 1]     BatchNorm affine parameters
    """
    x = x_ref[...]
    mask = mask_ref[...]
    p_pad = x.shape[1]
    inv_m = 1.0 / m_count
    # Conv tap offsets in flat padded coordinates: (dy-1)*Wpad + (dx-1).
    taps = [(dy - 1) * wpad + (dx - 1) for dy in range(3) for dx in range(3)]

    def conv3x3(a, w_ref):
        # 9 shifted multiply-accumulates. Each tap = one small MXU matmul
        # [Cout, Cin] @ [Cin, Ppad]; the shift is an XLU lane rotation of the
        # resident slab. Interior outputs never read wrapped/halo garbage
        # because each image's padded block is zero-haloed; non-interior
        # columns hold garbage and are masked out downstream.
        acc = None
        for t, off in enumerate(taps):
            a_t = a if off == 0 else pltpu.roll(a, shift=(-off) % p_pad, axis=1)
            part = jnp.dot(w_ref[t], a_t, preferred_element_type=jnp.float32)
            acc = part if acc is None else acc + part
        return acc

    def bn(a, g, b):
        # Training-mode BN over interior positions only (two-pass, biased var).
        mean = jnp.sum(a * mask, axis=1, keepdims=True) * inv_m
        cen = (a - mean) * mask
        var = jnp.sum(cen * cen, axis=1, keepdims=True) * inv_m
        scale = g * jax.lax.rsqrt(var + _BN_EPS)
        # "b * mask" keeps halo / pad columns exactly zero so the next conv's
        # shifted reads stay correct without any scratch zero-fill.
        return cen * scale + b * mask

    o1 = jnp.maximum(bn(conv3x3(x, w1_ref), g1_ref[...], b1_ref[...]), 0.0)
    y = bn(conv3x3(o1, w2_ref), g2_ref[...], b2_ref[...])
    out_ref[...] = jnp.maximum(y + x, 0.0)  # identity shortcut + final ReLU


def basic_block_forward(x_nchw, params):
    """BasicBlock forward. x: [N, C, H, W] f32 -> [N, C, H, W] f32."""
    n, c, h, w = x_nchw.shape
    cout = params["w1"].shape[0]
    assert params["w1"].shape[1] == c and cout == c, (
        "identity-shortcut config (stride=1, in_planes=planes) only")
    # TODO(synk): option-A/B downsampling shortcut (stride!=1 / channel change)
    # is not needed for this config and is not implemented.

    hp, wp = h + 2, w + 2
    p_flat = n * hp * wp
    p_pad = pl.cdiv(p_flat, 128) * 128  # lane-dense slab width
    m_count = n * h * w

    # --- layout plumbing (wrapper-side XLA, ~10 KiB): NCHW -> zero-haloed slab.
    xc = jnp.transpose(x_nchw.astype(jnp.float32), (1, 0, 2, 3))      # [C,N,H,W]
    xp = jnp.pad(xc, ((0, _CPAD - c), (0, 0), (1, 1), (1, 1)))        # [Cp,N,Hp,Wp]
    x_slab = jnp.pad(xp.reshape(_CPAD, p_flat), ((0, 0), (0, p_pad - p_flat)))

    mask = jnp.pad(jnp.ones((n, h, w), jnp.float32), ((0, 0), (1, 1), (1, 1)))
    mask = jnp.pad(mask.reshape(1, p_flat), ((0, 0), (0, p_pad - p_flat)))

    def prep_w(wt):  # PyTorch OIHW [C,C,3,3] -> [9, Cpad(out), Cpad(in)]
        wt = jnp.transpose(wt.astype(jnp.float32), (2, 3, 0, 1)).reshape(9, c, c)
        return jnp.pad(wt, ((0, 0), (0, _CPAD - c), (0, _CPAD - c)))

    def prep_v(v):   # [C] -> [Cpad, 1]
        return jnp.pad(v.astype(jnp.float32).reshape(c, 1),
                       ((0, _CPAD - c), (0, 0)))

    w1, w2 = prep_w(params["w1"]), prep_w(params["w2"])
    g1, b1 = prep_v(params["g1"]), prep_v(params["b1"])
    g2, b2 = prep_v(params["g2"]), prep_v(params["b2"])

    kernel = functools.partial(basic_block_kernel, wpad=wp, m_count=m_count)
    vmem = pl.BlockSpec(memory_space=pltpu.MemorySpace.VMEM)
    out_slab = pl.pallas_call(
        kernel,
        out_shape=jax.ShapeDtypeStruct((_CPAD, p_pad), jnp.float32),
        in_specs=[vmem] * 8,
        out_specs=vmem,
        # No grid: the whole problem (~100 KiB) fits one invocation; see the
        # scaling TODO at the top for the gridded / bf16 / v7x-sized variant.
    )(x_slab, mask, w1, g1, b1, w2, g2, b2)

    # --- slab -> NCHW (wrapper-side layout plumbing).
    out = out_slab[:c, :p_flat].reshape(c, n, hp, wp)[:, :, 1:h + 1, 1:w + 1]
    return jnp.transpose(out, (1, 0, 2, 3))


def reference_forward(x_nchw, params):
    """Pure-JAX reference mirroring the PyTorch forward (training-mode BN)."""
    def conv(x, wt):
        return jax.lax.conv_general_dilated(
            x, wt, window_strides=(1, 1), padding=((1, 1), (1, 1)),
            dimension_numbers=("NCHW", "OIHW", "NCHW"))

    def bn(x, g, b):
        mean = x.mean(axis=(0, 2, 3), keepdims=True)
        var = ((x - mean) ** 2).mean(axis=(0, 2, 3), keepdims=True)
        return (x - mean) * jax.lax.rsqrt(var + _BN_EPS) * g.reshape(1, -1, 1, 1) \
            + b.reshape(1, -1, 1, 1)

    o = jax.nn.relu(bn(conv(x_nchw, params["w1"]), params["g1"], params["b1"]))
    o = bn(conv(o, params["w2"]), params["g2"], params["b2"])
    return jax.nn.relu(o + x_nchw)


def make_params(key, in_planes, planes):
    k1, k2, k3, k4, k5, k6 = jax.random.split(key, 6)
    return {
        "w1": 0.1 * jax.random.normal(k1, (planes, in_planes, 3, 3), jnp.float32),
        "g1": 1.0 + 0.1 * jax.random.normal(k2, (planes,), jnp.float32),
        "b1": 0.1 * jax.random.normal(k3, (planes,), jnp.float32),
        "w2": 0.1 * jax.random.normal(k4, (planes, planes, 3, 3), jnp.float32),
        "g2": 1.0 + 0.1 * jax.random.normal(k5, (planes,), jnp.float32),
        "b2": 0.1 * jax.random.normal(k6, (planes,), jnp.float32),
    }


if __name__ == "__main__":
    key = jax.random.PRNGKey(0)
    kx, kp = jax.random.split(key)

    N, C, H, W = 2, 4, 16, 16          # in_planes = planes = 4, stride = 1
    x = jax.random.normal(kx, (N, C, H, W), jnp.float32)
    params = make_params(kp, C, C)

    out = jax.block_until_ready(basic_block_forward(x, params))
    ref = jax.block_until_ready(reference_forward(x, params))

    assert out.shape == (N, C, H, W)
    assert jnp.allclose(out, ref, rtol=1e-3, atol=1e-3), \
        f"max abs err {jnp.max(jnp.abs(out - ref))}"
    print("KERNEL_OK")
</pallas_src>

<mosaic_0001>
module attributes {stable_mosaic.version = 11 : i64} {
  func.func @basic_block_kernel(%arg0: memref<8x768xf32, #tpu.memory_space<vmem>>, %arg1: memref<1x768xf32, #tpu.memory_space<vmem>>, %arg2: memref<9x8x8xf32, #tpu.memory_space<vmem>>, %arg3: memref<8x1xf32, #tpu.memory_space<vmem>>, %arg4: memref<8x1xf32, #tpu.memory_space<vmem>>, %arg5: memref<9x8x8xf32, #tpu.memory_space<vmem>>, %arg6: memref<8x1xf32, #tpu.memory_space<vmem>>, %arg7: memref<8x1xf32, #tpu.memory_space<vmem>>, %arg8: memref<8x768xf32, #tpu.memory_space<vmem>>) attributes {dimension_semantics = [], scalar_prefetch = 0 : i64, scratch_operands = 0 : i64, tpu.core_type = #tpu.core_type<tc>} {
    %c0 = arith.constant 0 : index
    %c0_0 = arith.constant 0 : index
    %0 = vector.load %arg0[%c0, %c0_0] : memref<8x768xf32, #tpu.memory_space<vmem>>, vector<8x768xf32>
    %c0_1 = arith.constant 0 : index
    %c0_2 = arith.constant 0 : index
    %1 = vector.load %arg1[%c0_1, %c0_2] : memref<1x768xf32, #tpu.memory_space<vmem>>, vector<1x768xf32>
    %c19_i32 = arith.constant 19 : i32
    %2 = tpu.dynamic_rotate %0 by %c19_i32 dim 1 : vector<8x768xf32>, i32 -> vector<8x768xf32>
    %c0_3 = arith.constant 0 : index
    %c0_4 = arith.constant 0 : index
    %c0_5 = arith.constant 0 : index
    %3 = vector.load %arg2[%c0_3, %c0_4, %c0_5] : memref<9x8x8xf32, #tpu.memory_space<vmem>>, vector<1x8x8xf32>
    %4 = vector.shape_cast %3 : vector<1x8x8xf32> to vector<8x8xf32>
    %cst = arith.constant dense<0.000000e+00> : vector<8x768xf32>
    %5 = tpu.matmul %4, %2, %cst {dimension_numbers = #tpu.dot_dimension_numbers<[1], [0], [0], [1], [0, 0, 1, 1], [], []>} : vector<8x8xf32>, vector<8x768xf32>, vector<8x768xf32> -> vector<8x768xf32>
    %c18_i32 = arith.constant 18 : i32
    %6 = tpu.dynamic_rotate %0 by %c18_i32 dim 1 : vector<8x768xf32>, i32 -> vector<8x768xf32>
    %c1 = arith.constant 1 : index
    %c0_6 = arith.constant 0 : index
    %c0_7 = arith.constant 0 : index
    %7 = vector.load %arg2[%c1, %c0_6, %c0_7] : memref<9x8x8xf32, #tpu.memory_space<vmem>>, vector<1x8x8xf32>
    %8 = vector.shape_cast %7 : vector<1x8x8xf32> to vector<8x8xf32>
    %cst_8 = arith.constant dense<0.000000e+00> : vector<8x768xf32>
    %9 = tpu.matmul %8, %6, %cst_8 {dimension_numbers = #tpu.dot_dimension_numbers<[1], [0], [0], [1], [0, 0, 1, 1], [], []>} : vector<8x8xf32>, vector<8x768xf32>, vector<8x768xf32> -> vector<8x768xf32>
    %10 = arith.addf %5, %9 : vector<8x768xf32>
    %c17_i32 = arith.constant 17 : i32
    %11 = tpu.dynamic_rotate %0 by %c17_i32 dim 1 : vector<8x768xf32>, i32 -> vector<8x768xf32>
    %c2 = arith.constant 2 : index
    %c0_9 = arith.constant 0 : index
    %c0_10 = arith.constant 0 : index
    %12 = vector.load %arg2[%c2, %c0_9, %c0_10] : memref<9x8x8xf32, #tpu.memory_space<vmem>>, vector<1x8x8xf32>
    %13 = vector.shape_cast %12 : vector<1x8x8xf32> to vector<8x8xf32>
    %cst_11 = arith.constant dense<0.000000e+00> : vector<8x768xf32>
    %14 = tpu.matmul %13, %11, %cst_11 {dimension_numbers = #tpu.dot_dimension_numbers<[1], [0], [0], [1], [0, 0, 1, 1], [], []>} : vector<8x8xf32>, vector<8x768xf32>, vector<8x768xf32> -> vector<8x768xf32>
    %15 = arith.addf %10, %14 : vector<8x768xf32>
    %c1_i32 = arith.constant 1 : i32
    %16 = tpu.dynamic_rotate %0 by %c1_i32 dim 1 : vector<8x768xf32>, i32 -> vector<8x768xf32>
    %c3 = arith.constant 3 : index
    %c0_12 = arith.constant 0 : index
    %c0_13 = arith.constant 0 : index
    %17 = vector.load %arg2[%c3, %c0_12, %c0_13] : memref<9x8x8xf32, #tpu.memory_space<vmem>>, vector<1x8x8xf32>
    %18 = vector.shape_cast %17 : vector<1x8x8xf32> to vector<8x8xf32>
    %cst_14 = arith.constant dense<0.000000e+00> : vector<8x768xf32>
    %19 = tpu.matmul %18, %16, %cst_14 {dimension_numbers = #tpu.dot_dimension_numbers<[1], [0], [0], [1], [0, 0, 1, 1], [], []>} : vector<8x8xf32>, vector<8x768xf32>, vector<8x768xf32> -> vector<8x768xf32>
    %20 = arith.addf %15, %19 : vector<8x768xf32>
    %c4 = arith.constant 4 : index
    %c0_15 = arith.constant 0 : index
    %c0_16 = arith.constant 0 : index
    %21 = vector.load %arg2[%c4, %c0_15, %c0_16] : memref<9x8x8xf32, #tpu.memory_space<vmem>>, vector<1x8x8xf32>
    %22 = vector.shape_cast %21 : vector<1x8x8xf32> to vector<8x8xf32>
    %cst_17 = arith.constant dense<0.000000e+00> : vector<8x768xf32>
    %23 = tpu.matmul %22, %0, %cst_17 {dimension_numbers = #tpu.dot_dimension_numbers<[1], [0], [0], [1], [0, 0, 1, 1], [], []>} : vector<8x8xf32>, vector<8x768xf32>, vector<8x768xf32> -> vector<8x768xf32>
    %24 = arith.addf %20, %23 : vector<8x768xf32>
    %c767_i32 = arith.constant 767 : i32
    %25 = tpu.dynamic_rotate %0 by %c767_i32 dim 1 : vector<8x768xf32>, i32 -> vector<8x768xf32>
    %c5 = arith.constant 5 : index
    %c0_18 = arith.constant 0 : index
    %c0_19 = arith.constant 0 : index
    %26 = vector.load %arg2[%c5, %c0_18, %c0_19] : memref<9x8x8xf32, #tpu.memory_space<vmem>>, vector<1x8x8xf32>
    %27 = vector.shape_cast %26 : vector<1x8x8xf32> to vector<8x8xf32>
    %cst_20 = arith.constant dense<0.000000e+00> : vector<8x768xf32>
    %28 = tpu.matmul %27, %25, %cst_20 {dimension_numbers = #tpu.dot_dimension_numbers<[1], [0], [0], [1], [0, 0, 1, 1], [], []>} : vector<8x8xf32>, vector<8x768xf32>, vector<8x768xf32> -> vector<8x768xf32>
    %29 = arith.addf %24, %28 : vector<8x768xf32>
    %c751_i32 = arith.constant 751 : i32
    %30 = tpu.dynamic_rotate %0 by %c751_i32 dim 1 : vector<8x768xf32>, i32 -> vector<8x768xf32>
    %c6 = arith.constant 6 : index
    %c0_21 = arith.constant 0 : index
    %c0_22 = arith.constant 0 : index
    %31 = vector.load %arg2[%c6, %c0_21, %c0_22] : memref<9x8x8xf32, #tpu.memory_space<vmem>>, vector<1x8x8xf32>
    %32 = vector.shape_cast %31 : vector<1x8x8xf32> to vector<8x8xf32>
    %cst_23 = arith.constant dense<0.000000e+00> : vector<8x768xf32>
    %33 = tpu.matmul %32, %30, %cst_23 {dimension_numbers = #tpu.dot_dimension_numbers<[1], [0], [0], [1], [0, 0, 1, 1], [], []>} : vector<8x8xf32>, vector<8x768xf32>, vector<8x768xf32> -> vector<8x768xf32>
    %34 = arith.addf %29, %33 : vector<8x768xf32>
    %c750_i32 = arith.constant 750 : i32
    %35 = tpu.dynamic_rotate %0 by %c750_i32 dim 1 : vector<8x768xf32>, i32 -> vector<8x768xf32>
    %c7 = arith.constant 7 : index
    %c0_24 = arith.constant 0 : index
    %c0_25 = arith.constant 0 : index
    %36 = vector.load %arg2[%c7, %c0_24, %c0_25] : memref<9x8x8xf32, #tpu.memory_space<vmem>>, vector<1x8x8xf32>
    %37 = vector.shape_cast %36 : vector<1x8x8xf32> to vector<8x8xf32>
    %cst_26 = arith.constant dense<0.000000e+00> : vector<8x768xf32>
    %38 = tpu.matmul %37, %35, %cst_26 {dimension_numbers = #tpu.dot_dimension_numbers<[1], [0], [0], [1], [0, 0, 1, 1], [], []>} : vector<8x8xf32>, vector<8x768xf32>, vector<8x768xf32> -> vector<8x768xf32>
    %39 = arith.addf %34, %38 : vector<8x768xf32>
    %c749_i32 = arith.constant 749 : i32
    %40 = tpu.dynamic_rotate %0 by %c749_i32 dim 1 : vector<8x768xf32>, i32 -> vector<8x768xf32>
    %c8 = arith.constant 8 : index
    %c0_27 = arith.constant 0 : index
    %c0_28 = arith.constant 0 : index
    %41 = vector.load %arg2[%c8, %c0_27, %c0_28] : memref<9x8x8xf32, #tpu.memory_space<vmem>>, vector<1x8x8xf32>
    %42 = vector.shape_cast %41 : vector<1x8x8xf32> to vector<8x8xf32>
    %cst_29 = arith.constant dense<0.000000e+00> : vector<8x768xf32>
    %43 = tpu.matmul %42, %40, %cst_29 {dimension_numbers = #tpu.dot_dimension_numbers<[1], [0], [0], [1], [0, 0, 1, 1], [], []>} : vector<8x8xf32>, vector<8x768xf32>, vector<8x768xf32> -> vector<8x768xf32>
    %44 = arith.addf %39, %43 : vector<8x768xf32>
    %c0_30 = arith.constant 0 : index
    %c0_31 = arith.constant 0 : index
    %45 = vector.load %arg3[%c0_30, %c0_31] : memref<8x1xf32, #tpu.memory_space<vmem>>, vector<8x1xf32>
    %c0_32 = arith.constant 0 : index
    %c0_33 = arith.constant 0 : index
    %46 = vector.load %arg4[%c0_32, %c0_33] : memref<8x1xf32, #tpu.memory_space<vmem>>, vector<8x1xf32>
    %47 = vector.broadcast %1 : vector<1x768xf32> to vector<8x768xf32>
    %48 = arith.mulf %44, %47 : vector<8x768xf32>
    %cst_34 = arith.constant dense<0.000000e+00> : vector<8xf32>
    %49 = vector.multi_reduction <add>, %48, %cst_34 [1] : vector<8x768xf32> to vector<8xf32>
    %50 = vector.shape_cast %49 : vector<8xf32> to vector<8x1xf32>
    %cst_35 = arith.constant 0.001953125 : f32
    %51 = vector.broadcast %cst_35 : f32 to vector<8x1xf32>
    %52 = arith.mulf %50, %51 : vector<8x1xf32>
    %53 = vector.broadcast %52 : vector<8x1xf32> to vector<8x768xf32>
    %54 = arith.subf %44, %53 : vector<8x768xf32>
    %55 = vector.broadcast %1 : vector<1x768xf32> to vector<8x768xf32>
    %56 = arith.mulf %54, %55 : vector<8x768xf32>
    %57 = arith.mulf %56, %56 : vector<8x768xf32>
    %cst_36 = arith.constant dense<0.000000e+00> : vector<8xf32>
    %58 = vector.multi_reduction <add>, %57, %cst_36 [1] : vector<8x768xf32> to vector<8xf32>
    %59 = vector.shape_cast %58 : vector<8xf32> to vector<8x1xf32>
    %cst_37 = arith.constant 0.001953125 : f32
    %60 = vector.broadcast %cst_37 : f32 to vector<8x1xf32>
    %61 = arith.mulf %59, %60 : vector<8x1xf32>
    %cst_38 = arith.constant 9.99999974E-6 : f32
    %62 = vector.broadcast %cst_38 : f32 to vector<8x1xf32>
    %63 = arith.addf %61, %62 : vector<8x1xf32>
    %64 = math.rsqrt %63 : vector<8x1xf32>
    %65 = arith.mulf %45, %64 : vector<8x1xf32>
    %66 = vector.broadcast %65 : vector<8x1xf32> to vector<8x768xf32>
    %67 = arith.mulf %56, %66 : vector<8x768xf32>
    %68 = vector.broadcast %46 : vector<8x1xf32> to vector<8x768xf32>
    %69 = vector.broadcast %1 : vector<1x768xf32> to vector<8x768xf32>
    %70 = arith.mulf %68, %69 : vector<8x768xf32>
    %71 = arith.addf %67, %70 : vector<8x768xf32>
    %cst_39 = arith.constant 0.000000e+00 : f32
    %72 = vector.broadcast %cst_39 : f32 to vector<8x768xf32>
    %73 = arith.maximumf %71, %72 : vector<8x768xf32>
    %c19_i32_40 = arith.constant 19 : i32
    %74 = tpu.dynamic_rotate %73 by %c19_i32_40 dim 1 : vector<8x768xf32>, i32 -> vector<8x768xf32>
    %c0_41 = arith.constant 0 : index
    %c0_42 = arith.constant 0 : index
    %c0_43 = arith.constant 0 : index
    %75 = vector.load %arg5[%c0_41, %c0_42, %c0_43] : memref<9x8x8xf32, #tpu.memory_space<vmem>>, vector<1x8x8xf32>
    %76 = vector.shape_cast %75 : vector<1x8x8xf32> to vector<8x8xf32>
    %cst_44 = arith.constant dense<0.000000e+00> : vector<8x768xf32>
    %77 = tpu.matmul %76, %74, %cst_44 {dimension_numbers = #tpu.dot_dimension_numbers<[1], [0], [0], [1], [0, 0, 1, 1], [], []>} : vector<8x8xf32>, vector<8x768xf32>, vector<8x768xf32> -> vector<8x768xf32>
    %c18_i32_45 = arith.constant 18 : i32
    %78 = tpu.dynamic_rotate %73 by %c18_i32_45 dim 1 : vector<8x768xf32>, i32 -> vector<8x768xf32>
    %c1_46 = arith.constant 1 : index
    %c0_47 = arith.constant 0 : index
    %c0_48 = arith.constant 0 : index
    %79 = vector.load %arg5[%c1_46, %c0_47, %c0_48] : memref<9x8x8xf32, #tpu.memory_space<vmem>>, vector<1x8x8xf32>
    %80 = vector.shape_cast %79 : vector<1x8x8xf32> to vector<8x8xf32>
    %cst_49 = arith.constant dense<0.000000e+00> : vector<8x768xf32>
    %81 = tpu.matmul %80, %78, %cst_49 {dimension_numbers = #tpu.dot_dimension_numbers<[1], [0], [0], [1], [0, 0, 1, 1], [], []>} : vector<8x8xf32>, vector<8x768xf32>, vector<8x768xf32> -> vector<8x768xf32>
    %82 = arith.addf %77, %81 : vector<8x768xf32>
    %c17_i32_50 = arith.constant 17 : i32
    %83 = tpu.dynamic_rotate %73 by %c17_i32_50 dim 1 : vector<8x768xf32>, i32 -> vector<8x768xf32>
    %c2_51 = arith.constant 2 : index
    %c0_52 = arith.constant 0 : index
    %c0_53 = arith.constant 0 : index
    %84 = vector.load %arg5[%c2_51, %c0_52, %c0_53] : memref<9x8x8xf32, #tpu.memory_space<vmem>>, vector<1x8x8xf32>
    %85 = vector.shape_cast %84 : vector<1x8x8xf32> to vector<8x8xf32>
    %cst_54 = arith.constant dense<0.000000e+00> : vector<8x768xf32>
    %86 = tpu.matmul %85, %83, %cst_54 {dimension_numbers = #tpu.dot_dimension_numbers<[1], [0], [0], [1], [0, 0, 1, 1], [], []>} : vector<8x8xf32>, vector<8x768xf32>, vector<8x768xf32> -> vector<8x768xf32>
    %87 = arith.addf %82, %86 : vector<8x768xf32>
    %c1_i32_55 = arith.constant 1 : i32
    %88 = tpu.dynamic_rotate %73 by %c1_i32_55 dim 1 : vector<8x768xf32>, i32 -> vector<8x768xf32>
    %c3_56 = arith.constant 3 : index
    %c0_57 = arith.constant 0 : index
    %c0_58 = arith.constant 0 : index
    %89 = vector.load %arg5[%c3_56, %c0_57, %c0_58] : memref<9x8x8xf32, #tpu.memory_space<vmem>>, vector<1x8x8xf32>
    %90 = vector.shape_cast %89 : vector<1x8x8xf32> to vector<8x8xf32>
    %cst_59 = arith.constant dense<0.000000e+00> : vector<8x768xf32>
    %91 = tpu.matmul %90, %88, %cst_59 {dimension_numbers = #tpu.dot_dimension_numbers<[1], [0], [0], [1], [0, 0, 1, 1], [], []>} : vector<8x8xf32>, vector<8x768xf32>, vector<8x768xf32> -> vector<8x768xf32>
    %92 = arith.addf %87, %91 : vector<8x768xf32>
    %c4_60 = arith.constant 4 : index
    %c0_61 = arith.constant 0 : index
    %c0_62 = arith.constant 0 : index
    %93 = vector.load %arg5[%c4_60, %c0_61, %c0_62] : memref<9x8x8xf32, #tpu.memory_space<vmem>>, vector<1x8x8xf32>
    %94 = vector.shape_cast %93 : vector<1x8x8xf32> to vector<8x8xf32>
    %cst_63 = arith.constant dense<0.000000e+00> : vector<8x768xf32>
    %95 = tpu.matmul %94, %73, %cst_63 {dimension_numbers = #tpu.dot_dimension_numbers<[1], [0], [0], [1], [0, 0, 1, 1], [], []>} : vector<8x8xf32>, vector<8x768xf32>, vector<8x768xf32> -> vector<8x768xf32>
    %96 = arith.addf %92, %95 : vector<8x768xf32>
    %c767_i32_64 = arith.constant 767 : i32
    %97 = tpu.dynamic_rotate %73 by %c767_i32_64 dim 1 : vector<8x768xf32>, i32 -> vector<8x768xf32>
    %c5_65 = arith.constant 5 : index
    %c0_66 = arith.constant 0 : index
    %c0_67 = arith.constant 0 : index
    %98 = vector.load %arg5[%c5_65, %c0_66, %c0_67] : memref<9x8x8xf32, #tpu.memory_space<vmem>>, vector<1x8x8xf32>
    %99 = vector.shape_cast %98 : vector<1x8x8xf32> to vector<8x8xf32>
    %cst_68 = arith.constant dense<0.000000e+00> : vector<8x768xf32>
    %100 = tpu.matmul %99, %97, %cst_68 {dimension_numbers = #tpu.dot_dimension_numbers<[1], [0], [0], [1], [0, 0, 1, 1], [], []>} : vector<8x8xf32>, vector<8x768xf32>, vector<8x768xf32> -> vector<8x768xf32>
    %101 = arith.addf %96, %100 : vector<8x768xf32>
    %c751_i32_69 = arith.constant 751 : i32
    %102 = tpu.dynamic_rotate %73 by %c751_i32_69 dim 1 : vector<8x768xf32>, i32 -> vector<8x768xf32>
    %c6_70 = arith.constant 6 : index
    %c0_71 = arith.constant 0 : index
    %c0_72 = arith.constant 0 : index
    %103 = vector.load %arg5[%c6_70, %c0_71, %c0_72] : memref<9x8x8xf32, #tpu.memory_space<vmem>>, vector<1x8x8xf32>
    %104 = vector.shape_cast %103 : vector<1x8x8xf32> to vector<8x8xf32>
    %cst_73 = arith.constant dense<0.000000e+00> : vector<8x768xf32>
    %105 = tpu.matmul %104, %102, %cst_73 {dimension_numbers = #tpu.dot_dimension_numbers<[1], [0], [0], [1], [0, 0, 1, 1], [], []>} : vector<8x8xf32>, vector<8x768xf32>, vector<8x768xf32> -> vector<8x768xf32>
    %106 = arith.addf %101, %105 : vector<8x768xf32>
    %c750_i32_74 = arith.constant 750 : i32
    %107 = tpu.dynamic_rotate %73 by %c750_i32_74 dim 1 : vector<8x768xf32>, i32 -> vector<8x768xf32>
    %c7_75 = arith.constant 7 : index
    %c0_76 = arith.constant 0 : index
    %c0_77 = arith.constant 0 : index
    %108 = vector.load %arg5[%c7_75, %c0_76, %c0_77] : memref<9x8x8xf32, #tpu.memory_space<vmem>>, vector<1x8x8xf32>
    %109 = vector.shape_cast %108 : vector<1x8x8xf32> to vector<8x8xf32>
    %cst_78 = arith.constant dense<0.000000e+00> : vector<8x768xf32>
    %110 = tpu.matmul %109, %107, %cst_78 {dimension_numbers = #tpu.dot_dimension_numbers<[1], [0], [0], [1], [0, 0, 1, 1], [], []>} : vector<8x8xf32>, vector<8x768xf32>, vector<8x768xf32> -> vector<8x768xf32>
    %111 = arith.addf %106, %110 : vector<8x768xf32>
    %c749_i32_79 = arith.constant 749 : i32
    %112 = tpu.dynamic_rotate %73 by %c749_i32_79 dim 1 : vector<8x768xf32>, i32 -> vector<8x768xf32>
    %c8_80 = arith.constant 8 : index
    %c0_81 = arith.constant 0 : index
    %c0_82 = arith.constant 0 : index
    %113 = vector.load %arg5[%c8_80, %c0_81, %c0_82] : memref<9x8x8xf32, #tpu.memory_space<vmem>>, vector<1x8x8xf32>
    %114 = vector.shape_cast %113 : vector<1x8x8xf32> to vector<8x8xf32>
    %cst_83 = arith.constant dense<0.000000e+00> : vector<8x768xf32>
    %115 = tpu.matmul %114, %112, %cst_83 {dimension_numbers = #tpu.dot_dimension_numbers<[1], [0], [0], [1], [0, 0, 1, 1], [], []>} : vector<8x8xf32>, vector<8x768xf32>, vector<8x768xf32> -> vector<8x768xf32>
    %116 = arith.addf %111, %115 : vector<8x768xf32>
    %c0_84 = arith.constant 0 : index
    %c0_85 = arith.constant 0 : index
    %117 = vector.load %arg6[%c0_84, %c0_85] : memref<8x1xf32, #tpu.memory_space<vmem>>, vector<8x1xf32>
    %c0_86 = arith.constant 0 : index
    %c0_87 = arith.constant 0 : index
    %118 = vector.load %arg7[%c0_86, %c0_87] : memref<8x1xf32, #tpu.memory_space<vmem>>, vector<8x1xf32>
    %119 = vector.broadcast %1 : vector<1x768xf32> to vector<8x768xf32>
    %120 = arith.mulf %116, %119 : vector<8x768xf32>
    %cst_88 = arith.constant dense<0.000000e+00> : vector<8xf32>
    %121 = vector.multi_reduction <add>, %120, %cst_88 [1] : vector<8x768xf32> to vector<8xf32>
    %122 = vector.shape_cast %121 : vector<8xf32> to vector<8x1xf32>
    %cst_89 = arith.constant 0.001953125 : f32
    %123 = vector.broadcast %cst_89 : f32 to vector<8x1xf32>
    %124 = arith.mulf %122, %123 : vector<8x1xf32>
    %125 = vector.broadcast %124 : vector<8x1xf32> to vector<8x768xf32>
    %126 = arith.subf %116, %125 : vector<8x768xf32>
    %127 = vector.broadcast %1 : vector<1x768xf32> to vector<8x768xf32>
    %128 = arith.mulf %126, %127 : vector<8x768xf32>
    %129 = arith.mulf %128, %128 : vector<8x768xf32>
    %cst_90 = arith.constant dense<0.000000e+00> : vector<8xf32>
    %130 = vector.multi_reduction <add>, %129, %cst_90 [1] : vector<8x768xf32> to vector<8xf32>
    %131 = vector.shape_cast %130 : vector<8xf32> to vector<8x1xf32>
    %cst_91 = arith.constant 0.001953125 : f32
    %132 = vector.broadcast %cst_91 : f32 to vector<8x1xf32>
    %133 = arith.mulf %131, %132 : vector<8x1xf32>
    %cst_92 = arith.constant 9.99999974E-6 : f32
    %134 = vector.broadcast %cst_92 : f32 to vector<8x1xf32>
    %135 = arith.addf %133, %134 : vector<8x1xf32>
    %136 = math.rsqrt %135 : vector<8x1xf32>
    %137 = arith.mulf %117, %136 : vector<8x1xf32>
    %138 = vector.broadcast %137 : vector<8x1xf32> to vector<8x768xf32>
    %139 = arith.mulf %128, %138 : vector<8x768xf32>
    %140 = vector.broadcast %118 : vector<8x1xf32> to vector<8x768xf32>
    %141 = vector.broadcast %1 : vector<1x768xf32> to vector<8x768xf32>
    %142 = arith.mulf %140, %141 : vector<8x768xf32>
    %143 = arith.addf %139, %142 : vector<8x768xf32>
    %144 = arith.addf %143, %0 : vector<8x768xf32>
    %cst_93 = arith.constant 0.000000e+00 : f32
    %145 = vector.broadcast %cst_93 : f32 to vector<8x768xf32>
    %146 = arith.maximumf %144, %145 : vector<8x768xf32>
    %c0_94 = arith.constant 0 : index
    %c0_95 = arith.constant 0 : index
    %147 = vector.load %arg8[%c0_94, %c0_95] : memref<8x768xf32, #tpu.memory_space<vmem>>, vector<8x768xf32>
    tpu.vector_store %arg8[%c0_94, %c0_95], %146 {strides = array<i32>} : memref<8x768xf32, #tpu.memory_space<vmem>>, vector<8x768xf32>,
    return
  }
}

</mosaic_0001>

<llo_original>
// kernel: tpu_custom_call.1
$region0: #{tpu_custom_call.1}
  #allocation0 [shape = 'u32[]', space=smem, size = 0x4, offset = 0x4, fixed_abs, tag = 'smem constant byte address 0x4 - core index']
  #allocation1 [shape = 'u32[144,128]{1,0:T(1,128)}', space=vmem, size = 0x12000, scoped, tag = 'internal scratch']
  %s0 = inlined_call_operand.vmem [shape: f32[8,768], index: 0, kind: input, shape index: {}]
  %s1 = inlined_call_operand.vmem [shape: f32[1,768], index: 1, kind: input, shape index: {}]
  %s2 = inlined_call_operand.vmem [shape: f32[9,8,8], index: 2, kind: input, shape index: {}]
  %s3 = inlined_call_operand.vmem [shape: f32[8,1], index: 3, kind: input, shape index: {}]
  %s4 = inlined_call_operand.vmem [shape: f32[8,1], index: 4, kind: input, shape index: {}]
  %s5 = inlined_call_operand.vmem [shape: f32[9,8,8], index: 5, kind: input, shape index: {}]
  %s6 = inlined_call_operand.vmem [shape: f32[8,1], index: 6, kind: input, shape index: {}]
  %s7 = inlined_call_operand.vmem [shape: f32[8,1], index: 7, kind: input, shape index: {}]
  %s8 = inlined_call_operand.hbm [shape: f32[8,768], index: 8, kind: output, shape index: {}]
  %s9 = sld [smem:[#allocation0]]
  $region42: #{tpu_custom_call.1} parent=0
    _
  %s11 = ssub.s32 1, %s9
  %s12 = scalar_select 0, %s11, %s9
  $region1: #{tpu_custom_call.1} parent=0
    #allocation2 [shape = 'u8[24576]{0}', space=vmem, size = 0x6000, scoped, tag = 'output window, operand 0, single buffered']
    #allocation3 [shape = 's32[1]{0}', space=sflag, size = 0x4, scoped, tag = 'scoped memory for tpu_custom_call.1']
    %13 = vsyncpa [#allocation3], 0
    // Predicated region
    $region2: #{tpu_custom_call.1} parent=1 // pred_check
      _
    $region3: #{tpu_custom_call.1} parent=1 // pred_check_branch
      %15 = sbr.rel (0) target = $region5
    $region4: #{tpu_custom_call.1} parent=1 // pred_region
      _
    $region5: #{tpu_custom_call.1} parent=1 // pred_fallthru
      _
    // Predicated region
    $region6: #{tpu_custom_call.1} parent=1 // pred_check
      _
    $region7: #{tpu_custom_call.1} parent=1 // pred_check_branch
      %17 = sbr.rel (0) target = $region9
    $region8: #{tpu_custom_call.1} parent=1 // pred_region
      _
    $region9: #{tpu_custom_call.1} parent=1 // pred_fallthru
      _
    // Predicated region
    $region10: #{tpu_custom_call.1} parent=1 // pred_check
      _
    $region11: #{tpu_custom_call.1} parent=1 // pred_check_branch
      %19 = sbr.rel (0) target = $region13
    $region12: #{tpu_custom_call.1} parent=1 // pred_region
      _
    $region13: #{tpu_custom_call.1} parent=1 // pred_fallthru
      _
    // Predicated region
    $region14: #{tpu_custom_call.1} parent=1 // pred_check
      _
    $region15: #{tpu_custom_call.1} parent=1 // pred_check_branch
      %21 = sbr.rel (0) target = $region17
    $region16: #{tpu_custom_call.1} parent=1 // pred_region
      _
    $region17: #{tpu_custom_call.1} parent=1 // pred_fallthru
      _
    // Predicated region
    $region18: #{tpu_custom_call.1} parent=1 // pred_check
      _
    $region19: #{tpu_custom_call.1} parent=1 // pred_check_branch
      %23 = sbr.rel (0) target = $region21
    $region20: #{tpu_custom_call.1} parent=1 // pred_region
      _
    $region21: #{tpu_custom_call.1} parent=1 // pred_fallthru
      _
    // Predicated region
    $region22: #{tpu_custom_call.1} parent=1 // pred_check
      _
    $region23: #{tpu_custom_call.1} parent=1 // pred_check_branch
      %25 = sbr.rel (0) target = $region25
    $region24: #{tpu_custom_call.1} parent=1 // pred_region
      _
    $region25: #{tpu_custom_call.1} parent=1 // pred_fallthru
      _
    // Predicated region
    $region26: #{tpu_custom_call.1} parent=1 // pred_check
      _
    $region27: #{tpu_custom_call.1} parent=1 // pred_check_branch
      %27 = sbr.rel (0) target = $region29
    $region28: #{tpu_custom_call.1} parent=1 // pred_region
      _
    $region29: #{tpu_custom_call.1} parent=1 // pred_fallthru
      _
    // Predicated region
    $region30: #{tpu_custom_call.1} parent=1 // pred_check
      _
    $region31: #{tpu_custom_call.1} parent=1 // pred_check_branch
      %29 = sbr.rel (0) target = $region33
    $region32: #{tpu_custom_call.1} parent=1 // pred_region
      _
    $region33: #{tpu_custom_call.1} parent=1 // pred_fallthru
      _
    %v30 = vld [vmem:[%s0] sm:$0xff]
    %v31 = vld [vmem:[%s0 + $0x8] sm:$0xff]
    %v32 = vld [vmem:[%s0 + $0x10] sm:$0xff]
    %v33 = vld [vmem:[%s0 + $0x18] sm:$0xff]
    %v34 = vld [vmem:[%s0 + $0x20] sm:$0xff]
    %v35 = vld [vmem:[%s0 + $0x28] sm:$0xff]
    %v36 = vld [vmem:[%s1] sm:$0x3f]
    %37 = vrot.lane.b32.xlu0 %v30, 19
    %v38 = vpop.permute.xlu0 %37
    %39 = vrot.lane.b32.xlu0 %v31, 19
    %v40 = vpop.permute.xlu0 %39
    %41 = vrot.lane.b32.xlu0 %v32, 19
    %v42 = vpop.permute.xlu0 %41
    %43 = vrot.lane.b32.xlu0 %v33, 19
    %v44 = vpop.permute.xlu0 %43
    %45 = vrot.lane.b32.xlu0 %v34, 19
    %v46 = vpop.permute.xlu0 %45
    %47 = vrot.lane.b32.xlu0 %v35, 19
    %v48 = vpop.permute.xlu0 %47
    %v49 = vlaneseq
    %v50 = vand.u32 %v49, 127
    %vm51 = vcmp.lt.s32.totalorder %v50, 19
    %v52 = vsel %vm51, %v46, %v48
    %v53 = vsel %vm51, %v44, %v46
    %v54 = vsel %vm51, %v42, %v44
    %v55 = vsel %vm51, %v40, %v42
    %v56 = vsel %vm51, %v38, %v40
    %v57 = vsel %vm51, %v48, %v38
    %v58 = vld [vmem:[%s2] sm:$0xff]
    %59 = vrot.lane.b32.xlu0 %v30, 18
    %v60 = vpop.permute.xlu0 %59
    %61 = vrot.lane.b32.xlu0 %v31, 18
    %v62 = vpop.permute.xlu0 %61
    %63 = vrot.lane.b32.xlu0 %v32, 18
    %v64 = vpop.permute.xlu0 %63
    %65 = vrot.lane.b32.xlu0 %v33, 18
    %v66 = vpop.permute.xlu0 %65
    %67 = vrot.lane.b32.xlu0 %v34, 18
    %v68 = vpop.permute.xlu0 %67
    %69 = vrot.lane.b32.xlu0 %v35, 18
    %v70 = vpop.permute.xlu0 %69
    %vm71 = vcmp.lt.s32.totalorder %v50, 18
    %v72 = vsel %vm71, %v68, %v70
    %v73 = vsel %vm71, %v66, %v68
    %v74 = vsel %vm71, %v64, %v66
    %v75 = vsel %vm71, %v62, %v64
    %v76 = vsel %vm71, %v60, %v62
    %v77 = vsel %vm71, %v70, %v60
    %s78 = scalar_lea.vmem %s2, 8
    %v79 = vld [vmem:[%s78] sm:$0xff]
    %vm80 = vcmask 64512
    %v82 = vsel %vm80, %v79, 0
    %84 = vmatprep.subr.mxu0 0.0
    %85 = vmatpush1.msra.mxu0 0.0
    %86 = vmatprep.subr.mxu0 0.0
    %87 = vmatpush1.msra.mxu0 0.0
    %88 = vmatprep.subr.mxu0 0.0
    %89 = vmatpush1.msra.mxu0 0.0
    %90 = vmatprep.subr.mxu0 0.0
    %91 = vmatpush1.msra.mxu0 0.0
    %92 = vmatprep.subr.mxu0 0.0
    %93 = vmatpush1.msra.mxu0 0.0
    %94 = vmatprep.subr.mxu0 0.0
    %95 = vmatpush1.msra.mxu0 0.0
    %96 = vmatprep.subr.mxu0 0.0
    %97 = vmatpush1.msra.mxu0 0.0
    %98 = vmatprep.subr.mxu0 0.0
    %99 = vmatpush1.msra.mxu0 0.0
    %100 = vmatprep.subr.mxu0 0.0
    %101 = vmatpush1.msra.mxu0 0.0
    %102 = vmatprep.subr.mxu0 0.0
    %103 = vmatpush1.msra.mxu0 0.0
    %104 = vmatprep.subr.mxu0 0.0
    %105 = vmatpush1.msra.mxu0 0.0
    %106 = vmatprep.subr.mxu0 0.0
    %107 = vmatpush1.msra.mxu0 0.0
    %108 = vmatprep.subr.mxu0 0.0
    %109 = vmatpush1.msra.mxu0 0.0
    %110 = vmatprep.subr.mxu0 0.0
    %111 = vmatpush1.msra.mxu0 0.0
    %112 = vmatprep.subr.mxu0 0.0
    %113 = vmatpush1.msra.mxu0 0.0
    %114 = vmatprep.subr.mxu0 %v76
    %115 = vmatpush1.msra.mxu0 %v77
    %116 = vmatprep.subr.mxu0 0.0
    %117 = vmatpush2.msra.mxu0 0.0
    %118 = vmatprep.subr.mxu0 0.0
    %119 = vmatpush2.msra.mxu0 0.0
    %120 = vmatprep.subr.mxu0 0.0
    %121 = vmatpush2.msra.mxu0 0.0
    %122 = vmatprep.subr.mxu0 0.0
    %123 = vmatpush2.msra.mxu0 0.0
    %124 = vmatprep.subr.mxu0 0.0
    %125 = vmatpush2.msra.mxu0 0.0
    %126 = vmatprep.subr.mxu0 0.0
    %127 = vmatpush2.msra.mxu0 0.0
    %128 = vmatprep.subr.mxu0 0.0
    %129 = vmatpush2.msra.mxu0 0.0
    %130 = vmatprep.subr.mxu0 0.0
    %131 = vmatpush2.msra.mxu0 0.0
    %132 = vmatprep.subr.mxu0 0.0
    %133 = vmatpush2.msra.mxu0 0.0
    %134 = vmatprep.subr.mxu0 0.0
    %135 = vmatpush2.msra.mxu0 0.0
    %136 = vmatprep.subr.mxu0 0.0
    %137 = vmatpush2.msra.mxu0 0.0
    %138 = vmatprep.subr.mxu0 0.0
    %139 = vmatpush2.msra.mxu0 0.0
    %140 = vmatprep.subr.mxu0 0.0
    %141 = vmatpush2.msra.mxu0 0.0
    %142 = vmatprep.subr.mxu0 0.0
    %143 = vmatpush2.msra.mxu0 0.0
    %144 = vmatprep.subr.mxu0 0.0
    %145 = vmatpush2.msra.mxu0 0.0
    %146 = vmatprep.subr.mxu0 0.0
    %147 = vmatpush2.msra.mxu0 0.0
    %148 = vmatprep.mubr.f32.mxu0 0.0
    %149 = vmatmul.mubr.f32.gmra.mxu0 %v82
    %v150 = vpop.f32.mrf.mxu0
    %v151 = vadd.f32 0.0, %v150
    %v152 = vpop.f32.mrf.mxu0
    %v153 = vadd.f32 0.0, %v152
    %154 = vdwg.mxu0
    %155 = vmatprep.subr.mxu0 0.0
    %156 = vmatpush1.msra.mxu0 0.0
    %157 = vmatprep.subr.mxu0 0.0
    %158 = vmatpush1.msra.mxu0 0.0
    %159 = vmatprep.subr.mxu0 0.0
    %160 = vmatpush1.msra.mxu0 0.0
    %161 = vmatprep.subr.mxu0 0.0
    %162 = vmatpush1.msra.mxu0 0.0
    %163 = vmatprep.subr.mxu0 0.0
    %164 = vmatpush1.msra.mxu0 0.0
    %165 = vmatprep.subr.mxu0 0.0
    %166 = vmatpush1.msra.mxu0 0.0
    %167 = vmatprep.subr.mxu0 0.0
    %168 = vmatpush1.msra.mxu0 0.0
    %169 = vmatprep.subr.mxu0 0.0
    %170 = vmatpush1.msra.mxu0 0.0
    %171 = vmatprep.subr.mxu0 0.0
    %172 = vmatpush1.msra.mxu0 0.0
    %173 = vmatprep.subr.mxu0 0.0
    %174 = vmatpush1.msra.mxu0 0.0
    %175 = vmatprep.subr.mxu0 0.0
    %176 = vmatpush1.msra.mxu0 0.0
    %177 = vmatprep.subr.mxu0 0.0
    %178 = vmatpush1.msra.mxu0 0.0
    %179 = vmatprep.subr.mxu0 0.0
    %180 = vmatpush1.msra.mxu0 0.0
    %181 = vmatprep.subr.mxu0 0.0
    %182 = vmatpush1.msra.mxu0 0.0
    %183 = vmatprep.subr.mxu0 0.0
    %184 = vmatpush1.msra.mxu0 0.0
    %185 = vmatprep.subr.mxu0 %v74
    %186 = vmatpush1.msra.mxu0 %v75
    %187 = vmatprep.subr.mxu0 0.0
    %188 = vmatpush2.msra.mxu0 0.0
    %189 = vmatprep.subr.mxu0 0.0
    %190 = vmatpush2.msra.mxu0 0.0
    %191 = vmatprep.subr.mxu0 0.0
    %192 = vmatpush2.msra.mxu0 0.0
    %193 = vmatprep.subr.mxu0 0.0
    %194 = vmatpush2.msra.mxu0 0.0
    %195 = vmatprep.subr.mxu0 0.0
    %196 = vmatpush2.msra.mxu0 0.0
    %197 = vmatprep.subr.mxu0 0.0
    %198 = vmatpush2.msra.mxu0 0.0
    %199 = vmatprep.subr.mxu0 0.0
    %200 = vmatpush2.msra.mxu0 0.0
    %201 = vmatprep.subr.mxu0 0.0
    %202 = vmatpush2.msra.mxu0 0.0
    %203 = vmatprep.subr.mxu0 0.0
    %204 = vmatpush2.msra.mxu0 0.0
    %205 = vmatprep.subr.mxu0 0.0
    %206 = vmatpush2.msra.mxu0 0.0
    %207 = vmatprep.subr.mxu0 0.0
    %208 = vmatpush2.msra.mxu0 0.0
    %209 = vmatprep.subr.mxu0 0.0
    %210 = vmatpush2.msra.mxu0 0.0
    %211 = vmatprep.subr.mxu0 0.0
    %212 = vmatpush2.msra.mxu0 0.0
    %213 = vmatprep.subr.mxu0 0.0
    %214 = vmatpush2.msra.mxu0 0.0
    %215 = vmatprep.subr.mxu0 0.0
    %216 = vmatpush2.msra.mxu0 0.0
    %217 = vmatprep.subr.mxu0 0.0
    %218 = vmatpush2.msra.mxu0 0.0
    %219 = vmatprep.mubr.f32.mxu0 0.0
    %220 = vmatmul.mubr.f32.gmra.mxu0 %v82
    %v221 = vpop.f32.mrf.mxu0
    %v222 = vadd.f32 0.0, %v221
    %v223 = vpop.f32.mrf.mxu0
    %v224 = vadd.f32 0.0, %v223
    %225 = vdwg.mxu0
    %226 = vmatprep.subr.mxu0 0.0
    %227 = vmatpush1.msra.mxu0 0.0
    %228 = vmatprep.subr.mxu0 0.0
    %229 = vmatpush1.msra.mxu0 0.0
    %230 = vmatprep.subr.mxu0 0.0
    %231 = vmatpush1.msra.mxu0 0.0
    %232 = vmatprep.subr.mxu0 0.0
    %233 = vmatpush1.msra.mxu0 0.0
    %234 = vmatprep.subr.mxu0 0.0
    %235 = vmatpush1.msra.mxu0 0.0
    %236 = vmatprep.subr.mxu0 0.0
    %237 = vmatpush1.msra.mxu0 0.0
    %238 = vmatprep.subr.mxu0 0.0
    %239 = vmatpush1.msra.mxu0 0.0
    %240 = vmatprep.subr.mxu0 0.0
    %241 = vmatpush1.msra.mxu0 0.0
    %242 = vmatprep.subr.mxu0 0.0
    %243 = vmatpush1.msra.mxu0 0.0
    %244 = vmatprep.subr.mxu0 0.0
    %245 = vmatpush1.msra.mxu0 0.0
    %246 = vmatprep.subr.mxu0 0.0
    %247 = vmatpush1.msra.mxu0 0.0
    %248 = vmatprep.subr.mxu0 0.0
    %249 = vmatpush1.msra.mxu0 0.0
    %250 = vmatprep.subr.mxu0 0.0
    %251 = vmatpush1.msra.mxu0 0.0
    %252 = vmatprep.subr.mxu0 0.0
    %253 = vmatpush1.msra.mxu0 0.0
    %254 = vmatprep.subr.mxu0 0.0
    %255 = vmatpush1.msra.mxu0 0.0
    %256 = vmatprep.subr.mxu0 %v72
    %257 = vmatpush1.msra.mxu0 %v73
    %258 = vmatprep.subr.mxu0 0.0
    %259 = vmatpush2.msra.mxu0 0.0
    %260 = vmatprep.subr.mxu0 0.0
    %261 = vmatpush2.msra.mxu0 0.0
    %262 = vmatprep.subr.mxu0 0.0
    %263 = vmatpush2.msra.mxu0 0.0
    %264 = vmatprep.subr.mxu0 0.0
    %265 = vmatpush2.msra.mxu0 0.0
    %266 = vmatprep.subr.mxu0 0.0
    %267 = vmatpush2.msra.mxu0 0.0
    %268 = vmatprep.subr.mxu0 0.0
    %269 = vmatpush2.msra.mxu0 0.0
    %270 = vmatprep.subr.mxu0 0.0
    %271 = vmatpush2.msra.mxu0 0.0
    %272 = vmatprep.subr.mxu0 0.0
    %273 = vmatpush2.msra.mxu0 0.0
    %274 = vmatprep.subr.mxu0 0.0
    %275 = vmatpush2.msra.mxu0 0.0
    %276 = vmatprep.subr.mxu0 0.0
    %277 = vmatpush2.msra.mxu0 0.0
    %278 = vmatprep.subr.mxu0 0.0
    %279 = vmatpush2.msra.mxu0 0.0
    %280 = vmatprep.subr.mxu0 0.0
    %281 = vmatpush2.msra.mxu0 0.0
    %282 = vmatprep.subr.mxu0 0.0
    %283 = vmatpush2.msra.mxu0 0.0
    %284 = vmatprep.subr.mxu0 0.0
    %285 = vmatpush2.msra.mxu0 0.0
    %286 = vmatprep.subr.mxu0 0.0
    %287 = vmatpush2.msra.mxu0 0.0
    %288 = vmatprep.subr.mxu0 0.0
    %289 = vmatpush2.msra.mxu0 0.0
    %290 = vmatprep.mubr.f32.mxu0 0.0
    %291 = vmatmul.mubr.f32.gmra.mxu0 %v82
    %v292 = vpop.f32.mrf.mxu0
    %v293 = vadd.f32 0.0, %v292
    %v294 = vpop.f32.mrf.mxu0
    %v295 = vadd.f32 0.0, %v294
    %296 = vdwg.mxu0
    %v298 = vsel %vm80, %v58, 0
    %300 = vmatprep.subr.mxu0 0.0
    %301 = vmatpush1.msra.mxu0 0.0
    %302 = vmatprep.subr.mxu0 0.0
    %303 = vmatpush1.msra.mxu0 0.0
    %304 = vmatprep.subr.mxu0 0.0
    %305 = vmatpush1.msra.mxu0 0.0
    %306 = vmatprep.subr.mxu0 0.0
    %307 = vmatpush1.msra.mxu0 0.0
    %308 = vmatprep.subr.mxu0 0.0
    %309 = vmatpush1.msra.mxu0 0.0
    %310 = vmatprep.subr.mxu0 0.0
    %311 = vmatpush1.msra.mxu0 0.0
    %312 = vmatprep.subr.mxu0 0.0
    %313 = vmatpush1.msra.mxu0 0.0
    %314 = vmatprep.subr.mxu0 0.0
    %315 = vmatpush1.msra.mxu0 0.0
    %316 = vmatprep.subr.mxu0 0.0
    %317 = vmatpush1.msra.mxu0 0.0
    %318 = vmatprep.subr.mxu0 0.0
    %319 = vmatpush1.msra.mxu0 0.0
    %320 = vmatprep.subr.mxu0 0.0
    %321 = vmatpush1.msra.mxu0 0.0
    %322 = vmatprep.subr.mxu0 0.0
    %323 = vmatpush1.msra.mxu0 0.0
    %324 = vmatprep.subr.mxu0 0.0
    %325 = vmatpush1.msra.mxu0 0.0
    %326 = vmatprep.subr.mxu0 0.0
    %327 = vmatpush1.msra.mxu0 0.0
    %328 = vmatprep.subr.mxu0 0.0
    %329 = vmatpush1.msra.mxu0 0.0
    %330 = vmatprep.subr.mxu0 %v56
    %331 = vmatpush1.msra.mxu0 %v57
    %332 = vmatprep.subr.mxu0 0.0
    %333 = vmatpush2.msra.mxu0 0.0
    %334 = vmatprep.subr.mxu0 0.0
    %335 = vmatpush2.msra.mxu0 0.0
    %336 = vmatprep.subr.mxu0 0.0
    %337 = vmatpush2.msra.mxu0 0.0
    %338 = vmatprep.subr.mxu0 0.0
    %339 = vmatpush2.msra.mxu0 0.0
    %340 = vmatprep.subr.mxu0 0.0
    %341 = vmatpush2.msra.mxu0 0.0
    %342 = vmatprep.subr.mxu0 0.0
    %343 = vmatpush2.msra.mxu0 0.0
    %344 = vmatprep.subr.mxu0 0.0
    %345 = vmatpush2.msra.mxu0 0.0
    %346 = vmatprep.subr.mxu0 0.0
    %347 = vmatpush2.msra.mxu0 0.0
    %348 = vmatprep.subr.mxu0 0.0
    %349 = vmatpush2.msra.mxu0 0.0
    %350 = vmatprep.subr.mxu0 0.0
    %351 = vmatpush2.msra.mxu0 0.0
    %352 = vmatprep.subr.mxu0 0.0
    %353 = vmatpush2.msra.mxu0 0.0
    %354 = vmatprep.subr.mxu0 0.0
    %355 = vmatpush2.msra.mxu0 0.0
    %356 = vmatprep.subr.mxu0 0.0
    %357 = vmatpush2.msra.mxu0 0.0
    %358 = vmatprep.subr.mxu0 0.0
    %359 = vmatpush2.msra.mxu0 0.0
    %360 = vmatprep.subr.mxu0 0.0
    %361 = vmatpush2.msra.mxu0 0.0
    %362 = vmatprep.subr.mxu0 0.0
    %363 = vmatpush2.msra.mxu0 0.0
    %364 = vmatprep.mubr.f32.mxu0 0.0
    %365 = vmatmul.mubr.f32.gmra.mxu0 %v298
    %v366 = vpop.f32.mrf.mxu0
    %v367 = vadd.f32 %v151, %v366
    %v368 = vpop.f32.mrf.mxu0
    %v369 = vadd.f32 %v153, %v368
    %370 = vdwg.mxu0
    %371 = vmatprep.subr.mxu0 0.0
    %372 = vmatpush1.msra.mxu0 0.0
    %373 = vmatprep.subr.mxu0 0.0
    %374 = vmatpush1.msra.mxu0 0.0
    %375 = vmatprep.subr.mxu0 0.0
    %376 = vmatpush1.msra.mxu0 0.0
    %377 = vmatprep.subr.mxu0 0.0
    %378 = vmatpush1.msra.mxu0 0.0
    %379 = vmatprep.subr.mxu0 0.0
    %380 = vmatpush1.msra.mxu0 0.0
    %381 = vmatprep.subr.mxu0 0.0
    %382 = vmatpush1.msra.mxu0 0.0
    %383 = vmatprep.subr.mxu0 0.0
    %384 = vmatpush1.msra.mxu0 0.0
    %385 = vmatprep.subr.mxu0 0.0
    %386 = vmatpush1.msra.mxu0 0.0
    %387 = vmatprep.subr.mxu0 0.0
    %388 = vmatpush1.msra.mxu0 0.0
    %389 = vmatprep.subr.mxu0 0.0
    %390 = vmatpush1.msra.mxu0 0.0
    %391 = vmatprep.subr.mxu0 0.0
    %392 = vmatpush1.msra.mxu0 0.0
    %393 = vmatprep.subr.mxu0 0.0
    %394 = vmatpush1.msra.mxu0 0.0
    %395 = vmatprep.subr.mxu0 0.0
    %396 = vmatpush1.msra.mxu0 0.0
    %397 = vmatprep.subr.mxu0 0.0
    %398 = vmatpush1.msra.mxu0 0.0
    %399 = vmatprep.subr.mxu0 0.0
    %400 = vmatpush1.msra.mxu0 0.0
    %401 = vmatprep.subr.mxu0 %v54
    %402 = vmatpush1.msra.mxu0 %v55
    %403 = vmatprep.subr.mxu0 0.0
    %404 = vmatpush2.msra.mxu0 0.0
    %405 = vmatprep.subr.mxu0 0.0
    %406 = vmatpush2.msra.mxu0 0.0
    %407 = vmatprep.subr.mxu0 0.0
    %408 = vmatpush2.msra.mxu0 0.0
    %409 = vmatprep.subr.mxu0 0.0
    %410 = vmatpush2.msra.mxu0 0.0
    %411 = vmatprep.subr.mxu0 0.0
    %412 = vmatpush2.msra.mxu0 0.0
    %413 = vmatprep.subr.mxu0 0.0
    %414 = vmatpush2.msra.mxu0 0.0
    %415 = vmatprep.subr.mxu0 0.0
    %416 = vmatpush2.msra.mxu0 0.0
    %417 = vmatprep.subr.mxu0 0.0
    %418 = vmatpush2.msra.mxu0 0.0
    %419 = vmatprep.subr.mxu0 0.0
    %420 = vmatpush2.msra.mxu0 0.0
    %421 = vmatprep.subr.mxu0 0.0
    %422 = vmatpush2.msra.mxu0 0.0
    %423 = vmatprep.subr.mxu0 0.0
    %424 = vmatpush2.msra.mxu0 0.0
    %425 = vmatprep.subr.mxu0 0.0
    %426 = vmatpush2.msra.mxu0 0.0
    %427 = vmatprep.subr.mxu0 0.0
    %428 = vmatpush2.msra.mxu0 0.0
    %429 = vmatprep.subr.mxu0 0.0
    %430 = vmatpush2.msra.mxu0 0.0
    %431 = vmatprep.subr.mxu0 0.0
    %432 = vmatpush2.msra.mxu0 0.0
    %433 = vmatprep.subr.mxu0 0.0
    %434 = vmatpush2.msra.mxu0 0.0
    %435 = vmatprep.mubr.f32.mxu0 0.0
    %436 = vmatmul.mubr.f32.gmra.mxu0 %v298
    %v437 = vpop.f32.mrf.mxu0
    %v438 = vadd.f32 %v222, %v437
    %v439 = vpop.f32.mrf.mxu0
    %v440 = vadd.f32 %v224, %v439
    %441 = vdwg.mxu0
    %442 = vmatprep.subr.mxu0 0.0
    %443 = vmatpush1.msra.mxu0 0.0
    %444 = vmatprep.subr.mxu0 0.0
    %445 = vmatpush1.msra.mxu0 0.0
    %446 = vmatprep.subr.mxu0 0.0
    %447 = vmatpush1.msra.mxu0 0.0
    %448 = vmatprep.subr.mxu0 0.0
    %449 = vmatpush1.msra.mxu0 0.0
    %450 = vmatprep.subr.mxu0 0.0
    %451 = vmatpush1.msra.mxu0 0.0
    %452 = vmatprep.subr.mxu0 0.0
    %453 = vmatpush1.msra.mxu0 0.0
    %454 = vmatprep.subr.mxu0 0.0
    %455 = vmatpush1.msra.mxu0 0.0
    %456 = vmatprep.subr.mxu0 0.0
    %457 = vmatpush1.msra.mxu0 0.0
    %458 = vmatprep.subr.mxu0 0.0
    %459 = vmatpush1.msra.mxu0 0.0
    %460 = vmatprep.subr.mxu0 0.0
    %461 = vmatpush1.msra.mxu0 0.0
    %462 = vmatprep.subr.mxu0 0.0
    %463 = vmatpush1.msra.mxu0 0.0
    %464 = vmatprep.subr.mxu0 0.0
    %465 = vmatpush1.msra.mxu0 0.0
    %466 = vmatprep.subr.mxu0 0.0
    %467 = vmatpush1.msra.mxu0 0.0
    %468 = vmatprep.subr.mxu0 0.0
    %469 = vmatpush1.msra.mxu0 0.0
    %470 = vmatprep.subr.mxu0 0.0
    %471 = vmatpush1.msra.mxu0 0.0
    %472 = vmatprep.subr.mxu0 %v52
    %473 = vmatpush1.msra.mxu0 %v53
    %474 = vmatprep.subr.mxu0 0.0
    %475 = vmatpush2.msra.mxu0 0.0
    %476 = vmatprep.subr.mxu0 0.0
    %477 = vmatpush2.msra.mxu0 0.0
    %478 = vmatprep.subr.mxu0 0.0
    %479 = vmatpush2.msra.mxu0 0.0
    %480 = vmatprep.subr.mxu0 0.0
    %481 = vmatpush2.msra.mxu0 0.0
    %482 = vmatprep.subr.mxu0 0.0
    %483 = vmatpush2.msra.mxu0 0.0
    %484 = vmatprep.subr.mxu0 0.0
    %485 = vmatpush2.msra.mxu0 0.0
    %486 = vmatprep.subr.mxu0 0.0
    %487 = vmatpush2.msra.mxu0 0.0
    %488 = vmatprep.subr.mxu0 0.0
    %489 = vmatpush2.msra.mxu0 0.0
    %490 = vmatprep.subr.mxu0 0.0
    %491 = vmatpush2.msra.mxu0 0.0
    %492 = vmatprep.subr.mxu0 0.0
    %493 = vmatpush2.msra.mxu0 0.0
    %494 = vmatprep.subr.mxu0 0.0
    %495 = vmatpush2.msra.mxu0 0.0
    %496 = vmatprep.subr.mxu0 0.0
    %497 = vmatpush2.msra.mxu0 0.0
    %498 = vmatprep.subr.mxu0 0.0
    %499 = vmatpush2.msra.mxu0 0.0
    %500 = vmatprep.subr.mxu0 0.0
    %501 = vmatpush2.msra.mxu0 0.0
    %502 = vmatprep.subr.mxu0 0.0
    %503 = vmatpush2.msra.mxu0 0.0
    %504 = vmatprep.subr.mxu0 0.0
    %505 = vmatpush2.msra.mxu0 0.0
    %506 = vmatprep.mubr.f32.mxu0 0.0
    %507 = vmatmul.mubr.f32.gmra.mxu0 %v298
    %v508 = vpop.f32.mrf.mxu0
    %v509 = vadd.f32 %v293, %v508
    %v510 = vpop.f32.mrf.mxu0
    %v511 = vadd.f32 %v295, %v510
    %512 = vdwg.mxu0
    %513 = vrot.lane.b32.xlu0 %v30, 17
    %v514 = vpop.permute.xlu0 %513
    %515 = vrot.lane.b32.xlu0 %v31, 17
    %v516 = vpop.permute.xlu0 %515
    %517 = vrot.lane.b32.xlu0 %v32, 17
    %v518 = vpop.permute.xlu0 %517
    %519 = vrot.lane.b32.xlu0 %v33, 17
    %v520 = vpop.permute.xlu0 %519
    %521 = vrot.lane.b32.xlu0 %v34, 17
    %v522 = vpop.permute.xlu0 %521
    %523 = vrot.lane.b32.xlu0 %v35, 17
    %v524 = vpop.permute.xlu0 %523
    %vm525 = vcmp.lt.s32.totalorder %v50, 17
    %v526 = vsel %vm525, %v522, %v524
    %v527 = vsel %vm525, %v520, %v522
    %v528 = vsel %vm525, %v518, %v520
    %v529 = vsel %vm525, %v516, %v518
    %v530 = vsel %vm525, %v514, %v516
    %v531 = vsel %vm525, %v524, %v514
    %s532 = scalar_lea.vmem %s2, 16
    %v533 = vld [vmem:[%s532] sm:$0xff]
    %v535 = vsel %vm80, %v533, 0
    %537 = vmatprep.subr.mxu0 0.0
    %538 = vmatpush1.msra.mxu0 0.0
    %539 = vmatprep.subr.mxu0 0.0
    %540 = vmatpush1.msra.mxu0 0.0
    %541 = vmatprep.subr.mxu0 0.0
    %542 = vmatpush1.msra.mxu0 0.0
    %543 = vmatprep.subr.mxu0 0.0
    %544 = vmatpush1.msra.mxu0 0.0
    %545 = vmatprep.subr.mxu0 0.0
    %546 = vmatpush1.msra.mxu0 0.0
    %547 = vmatprep.subr.mxu0 0.0
    %548 = vmatpush1.msra.mxu0 0.0
    %549 = vmatprep.subr.mxu0 0.0
    %550 = vmatpush1.msra.mxu0 0.0
    %551 = vmatprep.subr.mxu0 0.0
    %552 = vmatpush1.msra.mxu0 0.0
    %553 = vmatprep.subr.mxu0 0.0
    %554 = vmatpush1.msra.mxu0 0.0
    %555 = vmatprep.subr.mxu0 0.0
    %556 = vmatpush1.msra.mxu0 0.0
    %557 = vmatprep.subr.mxu0 0.0
    %558 = vmatpush1.msra.mxu0 0.0
    %559 = vmatprep.subr.mxu0 0.0
    %560 = vmatpush1.msra.mxu0 0.0
    %561 = vmatprep.subr.mxu0 0.0
    %562 = vmatpush1.msra.mxu0 0.0
    %563 = vmatprep.subr.mxu0 0.0
    %564 = vmatpush1.msra.mxu0 0.0
    %565 = vmatprep.subr.mxu0 0.0
    %566 = vmatpush1.msra.mxu0 0.0
    %567 = vmatprep.subr.mxu0 %v530
    %568 = vmatpush1.msra.mxu0 %v531
    %569 = vmatprep.subr.mxu0 0.0
    %570 = vmatpush2.msra.mxu0 0.0
    %571 = vmatprep.subr.mxu0 0.0
    %572 = vmatpush2.msra.mxu0 0.0
    %573 = vmatprep.subr.mxu0 0.0
    %574 = vmatpush2.msra.mxu0 0.0
    %575 = vmatprep.subr.mxu0 0.0
    %576 = vmatpush2.msra.mxu0 0.0
    %577 = vmatprep.subr.mxu0 0.0
    %578 = vmatpush2.msra.mxu0 0.0
    %579 = vmatprep.subr.mxu0 0.0
    %580 = vmatpush2.msra.mxu0 0.0
    %581 = vmatprep.subr.mxu0 0.0
    %582 = vmatpush2.msra.mxu0 0.0
    %583 = vmatprep.subr.mxu0 0.0
    %584 = vmatpush2.msra.mxu0 0.0
    %585 = vmatprep.subr.mxu0 0.0
    %586 = vmatpush2.msra.mxu0 0.0
    %587 = vmatprep.subr.mxu0 0.0
    %588 = vmatpush2.msra.mxu0 0.0
    %589 = vmatprep.subr.mxu0 0.0
    %590 = vmatpush2.msra.mxu0 0.0
    %591 = vmatprep.subr.mxu0 0.0
    %592 = vmatpush2.msra.mxu0 0.0
    %593 = vmatprep.subr.mxu0 0.0
    %594 = vmatpush2.msra.mxu0 0.0
    %595 = vmatprep.subr.mxu0 0.0
    %596 = vmatpush2.msra.mxu0 0.0
    %597 = vmatprep.subr.mxu0 0.0
    %598 = vmatpush2.msra.mxu0 0.0
    %599 = vmatprep.subr.mxu0 0.0
    %600 = vmatpush2.msra.mxu0 0.0
    %601 = vmatprep.mubr.f32.mxu0 0.0
    %602 = vmatmul.mubr.f32.gmra.mxu0 %v535
    %v603 = vpop.f32.mrf.mxu0
    %v604 = vadd.f32 0.0, %v603
    %v605 = vpop.f32.mrf.mxu0
    %v606 = vadd.f32 0.0, %v605
    %607 = vdwg.mxu0
    %608 = vmatprep.subr.mxu0 0.0
    %609 = vmatpush1.msra.mxu0 0.0
    %610 = vmatprep.subr.mxu0 0.0
    %611 = vmatpush1.msra.mxu0 0.0
    %612 = vmatprep.subr.mxu0 0.0
    %613 = vmatpush1.msra.mxu0 0.0
    %614 = vmatprep.subr.mxu0 0.0
    %615 = vmatpush1.msra.mxu0 0.0
    %616 = vmatprep.subr.mxu0 0.0
    %617 = vmatpush1.msra.mxu0 0.0
    %618 = vmatprep.subr.mxu0 0.0
    %619 = vmatpush1.msra.mxu0 0.0
    %620 = vmatprep.subr.mxu0 0.0
    %621 = vmatpush1.msra.mxu0 0.0
    %622 = vmatprep.subr.mxu0 0.0
    %623 = vmatpush1.msra.mxu0 0.0
    %624 = vmatprep.subr.mxu0 0.0
    %625 = vmatpush1.msra.mxu0 0.0
    %626 = vmatprep.subr.mxu0 0.0
    %627 = vmatpush1.msra.mxu0 0.0
    %628 = vmatprep.subr.mxu0 0.0
    %629 = vmatpush1.msra.mxu0 0.0
    %630 = vmatprep.subr.mxu0 0.0
    %631 = vmatpush1.msra.mxu0 0.0
    %632 = vmatprep.subr.mxu0 0.0
    %633 = vmatpush1.msra.mxu0 0.0
    %634 = vmatprep.subr.mxu0 0.0
    %635 = vmatpush1.msra.mxu0 0.0
    %636 = vmatprep.subr.mxu0 0.0
    %637 = vmatpush1.msra.mxu0 0.0
    %638 = vmatprep.subr.mxu0 %v528
    %639 = vmatpush1.msra.mxu0 %v529
    %640 = vmatprep.subr.mxu0 0.0
    %641 = vmatpush2.msra.mxu0 0.0
    %642 = vmatprep.subr.mxu0 0.0
    %643 = vmatpush2.msra.mxu0 0.0
    %644 = vmatprep.subr.mxu0 0.0
    %645 = vmatpush2.msra.mxu0 0.0
    %646 = vmatprep.subr.mxu0 0.0
    %647 = vmatpush2.msra.mxu0 0.0
    %648 = vmatprep.subr.mxu0 0.0
    %649 = vmatpush2.msra.mxu0 0.0
    %650 = vmatprep.subr.mxu0 0.0
    %651 = vmatpush2.msra.mxu0 0.0
    %652 = vmatprep.subr.mxu0 0.0
    %653 = vmatpush2.msra.mxu0 0.0
    %654 = vmatprep.subr.mxu0 0.0
    %655 = vmatpush2.msra.mxu0 0.0
    %656 = vmatprep.subr.mxu0 0.0
    %657 = vmatpush2.msra.mxu0 0.0
    %658 = vmatprep.subr.mxu0 0.0
    %659 = vmatpush2.msra.mxu0 0.0
    %660 = vmatprep.subr.mxu0 0.0
    %661 = vmatpush2.msra.mxu0 0.0
    %662 = vmatprep.subr.mxu0 0.0
    %663 = vmatpush2.msra.mxu0 0.0
    %664 = vmatprep.subr.mxu0 0.0
    %665 = vmatpush2.msra.mxu0 0.0
    %666 = vmatprep.subr.mxu0 0.0
    %667 = vmatpush2.msra.mxu0 0.0
    %668 = vmatprep.subr.mxu0 0.0
    %669 = vmatpush2.msra.mxu0 0.0
    %670 = vmatprep.subr.mxu0 0.0
    %671 = vmatpush2.msra.mxu0 0.0
    %672 = vmatprep.mubr.f32.mxu0 0.0
    %673 = vmatmul.mubr.f32.gmra.mxu0 %v535
    %v674 = vpop.f32.mrf.mxu0
    %v675 = vadd.f32 0.0, %v674
    %v676 = vpop.f32.mrf.mxu0
    %v677 = vadd.f32 0.0, %v676
    %678 = vdwg.mxu0
    %679 = vmatprep.subr.mxu0 0.0
    %680 = vmatpush1.msra.mxu0 0.0
    %681 = vmatprep.subr.mxu0 0.0
    %682 = vmatpush1.msra.mxu0 0.0
    %683 = vmatprep.subr.mxu0 0.0
    %684 = vmatpush1.msra.mxu0 0.0
    %685 = vmatprep.subr.mxu0 0.0
    %686 = vmatpush1.msra.mxu0 0.0
    %687 = vmatprep.subr.mxu0 0.0
    %688 = vmatpush1.msra.mxu0 0.0
    %689 = vmatprep.subr.mxu0 0.0
    %690 = vmatpush1.msra.mxu0 0.0
    %691 = vmatprep.subr.mxu0 0.0
    %692 = vmatpush1.msra.mxu0 0.0
    %693 = vmatprep.subr.mxu0 0.0
    %694 = vmatpush1.msra.mxu0 0.0
    %695 = vmatprep.subr.mxu0 0.0
    %696 = vmatpush1.msra.mxu0 0.0
    %697 = vmatprep.subr.mxu0 0.0
    %698 = vmatpush1.msra.mxu0 0.0
    %699 = vmatprep.subr.mxu0 0.0
    %700 = vmatpush1.msra.mxu0 0.0
    %701 = vmatprep.subr.mxu0 0.0
    %702 = vmatpush1.msra.mxu0 0.0
    %703 = vmatprep.subr.mxu0 0.0
    %704 = vmatpush1.msra.mxu0 0.0
    %705 = vmatprep.subr.mxu0 0.0
    %706 = vmatpush1.msra.mxu0 0.0
    %707 = vmatprep.subr.mxu0 0.0
    %708 = vmatpush1.msra.mxu0 0.0
    %709 = vmatprep.subr.mxu0 %v526
    %710 = vmatpush1.msra.mxu0 %v527
    %711 = vmatprep.subr.mxu0 0.0
    %712 = vmatpush2.msra.mxu0 0.0
    %713 = vmatprep.subr.mxu0 0.0
    %714 = vmatpush2.msra.mxu0 0.0
    %715 = vmatprep.subr.mxu0 0.0
    %716 = vmatpush2.msra.mxu0 0.0
    %717 = vmatprep.subr.mxu0 0.0
    %718 = vmatpush2.msra.mxu0 0.0
    %719 = vmatprep.subr.mxu0 0.0
    %720 = vmatpush2.msra.mxu0 0.0
    %721 = vmatprep.subr.mxu0 0.0
    %722 = vmatpush2.msra.mxu0 0.0
    %723 = vmatprep.subr.mxu0 0.0
    %724 = vmatpush2.msra.mxu0 0.0
    %725 = vmatprep.subr.mxu0 0.0
    %726 = vmatpush2.msra.mxu0 0.0
    %727 = vmatprep.subr.mxu0 0.0
    %728 = vmatpush2.msra.mxu0 0.0
    %729 = vmatprep.subr.mxu0 0.0
    %730 = vmatpush2.msra.mxu0 0.0
    %731 = vmatprep.subr.mxu0 0.0
    %732 = vmatpush2.msra.mxu0 0.0
    %733 = vmatprep.subr.mxu0 0.0
    %734 = vmatpush2.msra.mxu0 0.0
    %735 = vmatprep.subr.mxu0 0.0
    %736 = vmatpush2.msra.mxu0 0.0
    %737 = vmatprep.subr.mxu0 0.0
    %738 = vmatpush2.msra.mxu0 0.0
    %739 = vmatprep.subr.mxu0 0.0
    %740 = vmatpush2.msra.mxu0 0.0
    %741 = vmatprep.subr.mxu0 0.0
    %742 = vmatpush2.msra.mxu0 0.0
    %743 = vmatprep.mubr.f32.mxu0 0.0
    %744 = vmatmul.mubr.f32.gmra.mxu0 %v535
    %v745 = vpop.f32.mrf.mxu0
    %v746 = vadd.f32 0.0, %v745
    %v747 = vpop.f32.mrf.mxu0
    %v748 = vadd.f32 0.0, %v747
    %749 = vdwg.mxu0
    %v750 = vadd.f32 %v367, %v604
    %v751 = vadd.f32 %v369, %v606
    %v752 = vadd.f32 %v438, %v675
    %v753 = vadd.f32 %v440, %v677
    %v754 = vadd.f32 %v509, %v746
    %v755 = vadd.f32 %v511, %v748
    %756 = vrot.lane.b32.xlu0 %v30, 1
    %v757 = vpop.permute.xlu0 %756
    %758 = vrot.lane.b32.xlu0 %v31, 1
    %v759 = vpop.permute.xlu0 %758
    %760 = vrot.lane.b32.xlu0 %v32, 1
    %v761 = vpop.permute.xlu0 %760
    %762 = vrot.lane.b32.xlu0 %v33, 1
    %v763 = vpop.permute.xlu0 %762
    %764 = vrot.lane.b32.xlu0 %v34, 1
    %v765 = vpop.permute.xlu0 %764
    %766 = vrot.lane.b32.xlu0 %v35, 1
    %v767 = vpop.permute.xlu0 %766
    %vm768 = vcmp.lt.s32.totalorder %v50, 1
    %v769 = vsel %vm768, %v765, %v767
    %v770 = vsel %vm768, %v763, %v765
    %v771 = vsel %vm768, %v761, %v763
    %v772 = vsel %vm768, %v759, %v761
    %v773 = vsel %vm768, %v757, %v759
    %v774 = vsel %vm768, %v767, %v757
    %s775 = scalar_lea.vmem %s2, 24
    %v776 = vld [vmem:[%s775] sm:$0xff]
    %v778 = vsel %vm80, %v776, 0
    %780 = vmatprep.subr.mxu0 0.0
    %781 = vmatpush1.msra.mxu0 0.0
    %782 = vmatprep.subr.mxu0 0.0
    %783 = vmatpush1.msra.mxu0 0.0
    %784 = vmatprep.subr.mxu0 0.0
    %785 = vmatpush1.msra.mxu0 0.0
    %786 = vmatprep.subr.mxu0 0.0
    %787 = vmatpush1.msra.mxu0 0.0
    %788 = vmatprep.subr.mxu0 0.0
    %789 = vmatpush1.msra.mxu0 0.0
    %790 = vmatprep.subr.mxu0 0.0
    %791 = vmatpush1.msra.mxu0 0.0
    %792 = vmatprep.subr.mxu0 0.0
    %793 = vmatpush1.msra.mxu0 0.0
    %794 = vmatprep.subr.mxu0 0.0
    %795 = vmatpush1.msra.mxu0 0.0
    %796 = vmatprep.subr.mxu0 0.0
    %797 = vmatpush1.msra.mxu0 0.0
    %798 = vmatprep.subr.mxu0 0.0
    %799 = vmatpush1.msra.mxu0 0.0
    %800 = vmatprep.subr.mxu0 0.0
    %801 = vmatpush1.msra.mxu0 0.0
    %802 = vmatprep.subr.mxu0 0.0
    %803 = vmatpush1.msra.mxu0 0.0
    %804 = vmatprep.subr.mxu0 0.0
    %805 = vmatpush1.msra.mxu0 0.0
    %806 = vmatprep.subr.mxu0 0.0
    %807 = vmatpush1.msra.mxu0 0.0
    %808 = vmatprep.subr.mxu0 0.0
    %809 = vmatpush1.msra.mxu0 0.0
    %810 = vmatprep.subr.mxu0 %v773
    %811 = vmatpush1.msra.mxu0 %v774
    %812 = vmatprep.subr.mxu0 0.0
    %813 = vmatpush2.msra.mxu0 0.0
    %814 = vmatprep.subr.mxu0 0.0
    %815 = vmatpush2.msra.mxu0 0.0
    %816 = vmatprep.subr.mxu0 0.0
    %817 = vmatpush2.msra.mxu0 0.0
    %818 = vmatprep.subr.mxu0 0.0
    %819 = vmatpush2.msra.mxu0 0.0
    %820 = vmatprep.subr.mxu0 0.0
    %821 = vmatpush2.msra.mxu0 0.0
    %822 = vmatprep.subr.mxu0 0.0
    %823 = vmatpush2.msra.mxu0 0.0
    %824 = vmatprep.subr.mxu0 0.0
    %825 = vmatpush2.msra.mxu0 0.0
    %826 = vmatprep.subr.mxu0 0.0
    %827 = vmatpush2.msra.mxu0 0.0
    %828 = vmatprep.subr.mxu0 0.0
    %829 = vmatpush2.msra.mxu0 0.0
    %830 = vmatprep.subr.mxu0 0.0
    %831 = vmatpush2.msra.mxu0 0.0
    %832 = vmatprep.subr.mxu0 0.0
    %833 = vmatpush2.msra.mxu0 0.0
    %834 = vmatprep.subr.mxu0 0.0
    %835 = vmatpush2.msra.mxu0 0.0
    %836 = vmatprep.subr.mxu0 0.0
    %837 = vmatpush2.msra.mxu0 0.0
    %838 = vmatprep.subr.mxu0 0.0
    %839 = vmatpush2.msra.mxu0 0.0
    %840 = vmatprep.subr.mxu0 0.0
    %841 = vmatpush2.msra.mxu0 0.0
    %842 = vmatprep.subr.mxu0 0.0
    %843 = vmatpush2.msra.mxu0 0.0
    %844 = vmatprep.mubr.f32.mxu0 0.0
    %845 = vmatmul.mubr.f32.gmra.mxu0 %v778
    %v846 = vpop.f32.mrf.mxu0
    %v847 = vadd.f32 0.0, %v846
    %v848 = vpop.f32.mrf.mxu0
    %v849 = vadd.f32 0.0, %v848
    %850 = vdwg.mxu0
    %851 = vmatprep.subr.mxu0 0.0
    %852 = vmatpush1.msra.mxu0 0.0
    %853 = vmatprep.subr.mxu0 0.0
    %854 = vmatpush1.msra.mxu0 0.0
    %855 = vmatprep.subr.mxu0 0.0
    %856 = vmatpush1.msra.mxu0 0.0
    %857 = vmatprep.subr.mxu0 0.0
    %858 = vmatpush1.msra.mxu0 0.0
    %859 = vmatprep.subr.mxu0 0.0
    %860 = vmatpush1.msra.mxu0 0.0
    %861 = vmatprep.subr.mxu0 0.0
    %862 = vmatpush1.msra.mxu0 0.0
    %863 = vmatprep.subr.mxu0 0.0
    %864 = vmatpush1.msra.mxu0 0.0
    %865 = vmatprep.subr.mxu0 0.0
    %866 = vmatpush1.msra.mxu0 0.0
    %867 = vmatprep.subr.mxu0 0.0
    %868 = vmatpush1.msra.mxu0 0.0
    %869 = vmatprep.subr.mxu0 0.0
    %870 = vmatpush1.msra.mxu0 0.0
    %871 = vmatprep.subr.mxu0 0.0
    %872 = vmatpush1.msra.mxu0 0.0
    %873 = vmatprep.subr.mxu0 0.0
    %874 = vmatpush1.msra.mxu0 0.0
    %875 = vmatprep.subr.mxu0 0.0
    %876 = vmatpush1.msra.mxu0 0.0
    %877 = vmatprep.subr.mxu0 0.0
    %878 = vmatpush1.msra.mxu0 0.0
    %879 = vmatprep.subr.mxu0 0.0
    %880 = vmatpush1.msra.mxu0 0.0
    %881 = vmatprep.subr.mxu0 %v771
    %882 = vmatpush1.msra.mxu0 %v772
    %883 = vmatprep.subr.mxu0 0.0
    %884 = vmatpush2.msra.mxu0 0.0
    %885 = vmatprep.subr.mxu0 0.0
    %886 = vmatpush2.msra.mxu0 0.0
    %887 = vmatprep.subr.mxu0 0.0
    %888 = vmatpush2.msra.mxu0 0.0
    %889 = vmatprep.subr.mxu0 0.0
    %890 = vmatpush2.msra.mxu0 0.0
    %891 = vmatprep.subr.mxu0 0.0
    %892 = vmatpush2.msra.mxu0 0.0
    %893 = vmatprep.subr.mxu0 0.0
    %894 = vmatpush2.msra.mxu0 0.0
    %895 = vmatprep.subr.mxu0 0.0
    %896 = vmatpush2.msra.mxu0 0.0
    %897 = vmatprep.subr.mxu0 0.0
    %898 = vmatpush2.msra.mxu0 0.0
    %899 = vmatprep.subr.mxu0 0.0
    %900 = vmatpush2.msra.mxu0 0.0
    %901 = vmatprep.subr.mxu0 0.0
    %902 = vmatpush2.msra.mxu0 0.0
    %903 = vmatprep.subr.mxu0 0.0
    %904 = vmatpush2.msra.mxu0 0.0
    %905 = vmatprep.subr.mxu0 0.0
    %906 = vmatpush2.msra.mxu0 0.0
    %907 = vmatprep.subr.mxu0 0.0
    %908 = vmatpush2.msra.mxu0 0.0
    %909 = vmatprep.subr.mxu0 0.0
    %910 = vmatpush2.msra.mxu0 0.0
    %911 = vmatprep.subr.mxu0 0.0
    %912 = vmatpush2.msra.mxu0 0.0
    %913 = vmatprep.subr.mxu0 0.0
    %914 = vmatpush2.msra.mxu0 0.0
    %915 = vmatprep.mubr.f32.mxu0 0.0
    %916 = vmatmul.mubr.f32.gmra.mxu0 %v778
    %v917 = vpop.f32.mrf.mxu0
    %v918 = vadd.f32 0.0, %v917
    %v919 = vpop.f32.mrf.mxu0
    %v920 = vadd.f32 0.0, %v919
    %921 = vdwg.mxu0
    %922 = vmatprep.subr.mxu0 0.0
    %923 = vmatpush1.msra.mxu0 0.0
    %924 = vmatprep.subr.mxu0 0.0
    %925 = vmatpush1.msra.mxu0 0.0
    %926 = vmatprep.subr.mxu0 0.0
    %927 = vmatpush1.msra.mxu0 0.0
    %928 = vmatprep.subr.mxu0 0.0
    %929 = vmatpush1.msra.mxu0 0.0
    %930 = vmatprep.subr.mxu0 0.0
    %931 = vmatpush1.msra.mxu0 0.0
    %932 = vmatprep.subr.mxu0 0.0
    %933 = vmatpush1.msra.mxu0 0.0
    %934 = vmatprep.subr.mxu0 0.0
    %935 = vmatpush1.msra.mxu0 0.0
    %936 = vmatprep.subr.mxu0 0.0
    %937 = vmatpush1.msra.mxu0 0.0
    %938 = vmatprep.subr.mxu0 0.0
    %939 = vmatpush1.msra.mxu0 0.0
    %940 = vmatprep.subr.mxu0 0.0
    %941 = vmatpush1.msra.mxu0 0.0
    %942 = vmatprep.subr.mxu0 0.0
    %943 = vmatpush1.msra.mxu0 0.0
    %944 = vmatprep.subr.mxu0 0.0
    %945 = vmatpush1.msra.mxu0 0.0
    %946 = vmatprep.subr.mxu0 0.0
    %947 = vmatpush1.msra.mxu0 0.0
    %948 = vmatprep.subr.mxu0 0.0
    %949 = vmatpush1.msra.mxu0 0.0
    %950 = vmatprep.subr.mxu0 0.0
    %951 = vmatpush1.msra.mxu0 0.0
    %952 = vmatprep.subr.mxu0 %v769
    %953 = vmatpush1.msra.mxu0 %v770
    %954 = vmatprep.subr.mxu0 0.0
    %955 = vmatpush2.msra.mxu0 0.0
    %956 = vmatprep.subr.mxu0 0.0
    %957 = vmatpush2.msra.mxu0 0.0
    %958 = vmatprep.subr.mxu0 0.0
    %959 = vmatpush2.msra.mxu0 0.0
    %960 = vmatprep.subr.mxu0 0.0
    %961 = vmatpush2.msra.mxu0 0.0
    %962 = vmatprep.subr.mxu0 0.0
    %963 = vmatpush2.msra.mxu0 0.0
    %964 = vmatprep.subr.mxu0 0.0
    %965 = vmatpush2.msra.mxu0 0.0
    %966 = vmatprep.subr.mxu0 0.0
    %967 = vmatpush2.msra.mxu0 0.0
    %968 = vmatprep.subr.mxu0 0.0
    %969 = vmatpush2.msra.mxu0 0.0
    %970 = vmatprep.subr.mxu0 0.0
    %971 = vmatpush2.msra.mxu0 0.0
    %972 = vmatprep.subr.mxu0 0.0
    %973 = vmatpush2.msra.mxu0 0.0
    %974 = vmatprep.subr.mxu0 0.0
    %975 = vmatpush2.msra.mxu0 0.0
    %976 = vmatprep.subr.mxu0 0.0
    %977 = vmatpush2.msra.mxu0 0.0
    %978 = vmatprep.subr.mxu0 0.0
    %979 = vmatpush2.msra.mxu0 0.0
    %980 = vmatprep.subr.mxu0 0.0
    %981 = vmatpush2.msra.mxu0 0.0
    %982 = vmatprep.subr.mxu0 0.0
    %983 = vmatpush2.msra.mxu0 0.0
    %984 = vmatprep.subr.mxu0 0.0
    %985 = vmatpush2.msra.mxu0 0.0
    %986 = vmatprep.mubr.f32.mxu0 0.0
    %987 = vmatmul.mubr.f32.gmra.mxu0 %v778
    %v988 = vpop.f32.mrf.mxu0
    %v989 = vadd.f32 0.0, %v988
    %v990 = vpop.f32.mrf.mxu0
    %v991 = vadd.f32 0.0, %v990
    %992 = vdwg.mxu0
    %v993 = vadd.f32 %v750, %v847
    %v994 = vadd.f32 %v751, %v849
    %v995 = vadd.f32 %v752, %v918
    %v996 = vadd.f32 %v753, %v920
    %v997 = vadd.f32 %v754, %v989
    %v998 = vadd.f32 %v755, %v991
    %s999 = scalar_lea.vmem %s2, 32
    %v1000 = vld [vmem:[%s999] sm:$0xff]
    %v1002 = vsel %vm80, %v1000, 0
    %1004 = vmatprep.subr.mxu0 0.0
    %1005 = vmatpush1.msra.mxu0 0.0
    %1006 = vmatprep.subr.mxu0 0.0
    %1007 = vmatpush1.msra.mxu0 0.0
    %1008 = vmatprep.subr.mxu0 0.0
    %1009 = vmatpush1.msra.mxu0 0.0
    %1010 = vmatprep.subr.mxu0 0.0
    %1011 = vmatpush1.msra.mxu0 0.0
    %1012 = vmatprep.subr.mxu0 0.0
    %1013 = vmatpush1.msra.mxu0 0.0
    %1014 = vmatprep.subr.mxu0 0.0
    %1015 = vmatpush1.msra.mxu0 0.0
    %1016 = vmatprep.subr.mxu0 0.0
    %1017 = vmatpush1.msra.mxu0 0.0
    %1018 = vmatprep.subr.mxu0 0.0
    %1019 = vmatpush1.msra.mxu0 0.0
    %1020 = vmatprep.subr.mxu0 0.0
    %1021 = vmatpush1.msra.mxu0 0.0
    %1022 = vmatprep.subr.mxu0 0.0
    %1023 = vmatpush1.msra.mxu0 0.0
    %1024 = vmatprep.subr.mxu0 0.0
    %1025 = vmatpush1.msra.mxu0 0.0
    %1026 = vmatprep.subr.mxu0 0.0
    %1027 = vmatpush1.msra.mxu0 0.0
    %1028 = vmatprep.subr.mxu0 0.0
    %1029 = vmatpush1.msra.mxu0 0.0
    %1030 = vmatprep.subr.mxu0 0.0
    %1031 = vmatpush1.msra.mxu0 0.0
    %1032 = vmatprep.subr.mxu0 0.0
    %1033 = vmatpush1.msra.mxu0 0.0
    %1034 = vmatprep.subr.mxu0 %v31
    %1035 = vmatpush1.msra.mxu0 %v30
    %1036 = vmatprep.subr.mxu0 0.0
    %1037 = vmatpush2.msra.mxu0 0.0
    %1038 = vmatprep.subr.mxu0 0.0
    %1039 = vmatpush2.msra.mxu0 0.0
    %1040 = vmatprep.subr.mxu0 0.0
    %1041 = vmatpush2.msra.mxu0 0.0
    %1042 = vmatprep.subr.mxu0 0.0
    %1043 = vmatpush2.msra.mxu0 0.0
    %1044 = vmatprep.subr.mxu0 0.0
    %1045 = vmatpush2.msra.mxu0 0.0
    %1046 = vmatprep.subr.mxu0 0.0
    %1047 = vmatpush2.msra.mxu0 0.0
    %1048 = vmatprep.subr.mxu0 0.0
    %1049 = vmatpush2.msra.mxu0 0.0
    %1050 = vmatprep.subr.mxu0 0.0
    %1051 = vmatpush2.msra.mxu0 0.0
    %1052 = vmatprep.subr.mxu0 0.0
    %1053 = vmatpush2.msra.mxu0 0.0
    %1054 = vmatprep.subr.mxu0 0.0
    %1055 = vmatpush2.msra.mxu0 0.0
    %1056 = vmatprep.subr.mxu0 0.0
    %1057 = vmatpush2.msra.mxu0 0.0
    %1058 = vmatprep.subr.mxu0 0.0
    %1059 = vmatpush2.msra.mxu0 0.0
    %1060 = vmatprep.subr.mxu0 0.0
    %1061 = vmatpush2.msra.mxu0 0.0
    %1062 = vmatprep.subr.mxu0 0.0
    %1063 = vmatpush2.msra.mxu0 0.0
    %1064 = vmatprep.subr.mxu0 0.0
    %1065 = vmatpush2.msra.mxu0 0.0
    %1066 = vmatprep.subr.mxu0 0.0
    %1067 = vmatpush2.msra.mxu0 0.0
    %1068 = vmatprep.mubr.f32.mxu0 0.0
    %1069 = vmatmul.mubr.f32.gmra.mxu0 %v1002
    %v1070 = vpop.f32.mrf.mxu0
    %v1071 = vadd.f32 0.0, %v1070
    %v1072 = vpop.f32.mrf.mxu0
    %v1073 = vadd.f32 0.0, %v1072
    %1074 = vdwg.mxu0
    %1075 = vmatprep.subr.mxu0 0.0
    %1076 = vmatpush1.msra.mxu0 0.0
    %1077 = vmatprep.subr.mxu0 0.0
    %1078 = vmatpush1.msra.mxu0 0.0
    %1079 = vmatprep.subr.mxu0 0.0
    %1080 = vmatpush1.msra.mxu0 0.0
    %1081 = vmatprep.subr.mxu0 0.0
    %1082 = vmatpush1.msra.mxu0 0.0
    %1083 = vmatprep.subr.mxu0 0.0
    %1084 = vmatpush1.msra.mxu0 0.0
    %1085 = vmatprep.subr.mxu0 0.0
    %1086 = vmatpush1.msra.mxu0 0.0
    %1087 = vmatprep.subr.mxu0 0.0
    %1088 = vmatpush1.msra.mxu0 0.0
    %1089 = vmatprep.subr.mxu0 0.0
    %1090 = vmatpush1.msra.mxu0 0.0
    %1091 = vmatprep.subr.mxu0 0.0
    %1092 = vmatpush1.msra.mxu0 0.0
    %1093 = vmatprep.subr.mxu0 0.0
    %1094 = vmatpush1.msra.mxu0 0.0
    %1095 = vmatprep.subr.mxu0 0.0
    %1096 = vmatpush1.msra.mxu0 0.0
    %1097 = vmatprep.subr.mxu0 0.0
    %1098 = vmatpush1.msra.mxu0 0.0
    %1099 = vmatprep.subr.mxu0 0.0
    %1100 = vmatpush1.msra.mxu0 0.0
    %1101 = vmatprep.subr.mxu0 0.0
    %1102 = vmatpush1.msra.mxu0 0.0
    %1103 = vmatprep.subr.mxu0 0.0
    %1104 = vmatpush1.msra.mxu0 0.0
    %1105 = vmatprep.subr.mxu0 %v33
    %1106 = vmatpush1.msra.mxu0 %v32
    %1107 = vmatprep.subr.mxu0 0.0
    %1108 = vmatpush2.msra.mxu0 0.0
    %1109 = vmatprep.subr.mxu0 0.0
    %1110 = vmatpush2.msra.mxu0 0.0
    %1111 = vmatprep.subr.mxu0 0.0
    %1112 = vmatpush2.msra.mxu0 0.0
    %1113 = vmatprep.subr.mxu0 0.0
    %1114 = vmatpush2.msra.mxu0 0.0
    %1115 = vmatprep.subr.mxu0 0.0
    %1116 = vmatpush2.msra.mxu0 0.0
    %1117 = vmatprep.subr.mxu0 0.0
    %1118 = vmatpush2.msra.mxu0 0.0
    %1119 = vmatprep.subr.mxu0 0.0
    %1120 = vmatpush2.msra.mxu0 0.0
    %1121 = vmatprep.subr.mxu0 0.0
    %1122 = vmatpush2.msra.mxu0 0.0
    %1123 = vmatprep.subr.mxu0 0.0
    %1124 = vmatpush2.msra.mxu0 0.0
    %1125 = vmatprep.subr.mxu0 0.0
    %1126 = vmatpush2.msra.mxu0 0.0
    %1127 = vmatprep.subr.mxu0 0.0
    %1128 = vmatpush2.msra.mxu0 0.0
    %1129 = vmatprep.subr.mxu0 0.0
    %1130 = vmatpush2.msra.mxu0 0.0
    %1131 = vmatprep.subr.mxu0 0.0
    %1132 = vmatpush2.msra.mxu0 0.0
    %1133 = vmatprep.subr.mxu0 0.0
    %1134 = vmatpush2.msra.mxu0 0.0
    %1135 = vmatprep.subr.mxu0 0.0
    %1136 = vmatpush2.msra.mxu0 0.0
    %1137 = vmatprep.subr.mxu0 0.0
    %1138 = vmatpush2.msra.mxu0 0.0
    %1139 = vmatprep.mubr.f32.mxu0 0.0
    %1140 = vmatmul.mubr.f32.gmra.mxu0 %v1002
    %v1141 = vpop.f32.mrf.mxu0
    %v1142 = vadd.f32 0.0, %v1141
    %v1143 = vpop.f32.mrf.mxu0
    %v1144 = vadd.f32 0.0, %v1143
    %1145 = vdwg.mxu0
    %1146 = vmatprep.subr.mxu0 0.0
    %1147 = vmatpush1.msra.mxu0 0.0
    %1148 = vmatprep.subr.mxu0 0.0
    %1149 = vmatpush1.msra.mxu0 0.0
    %1150 = vmatprep.subr.mxu0 0.0
    %1151 = vmatpush1.msra.mxu0 0.0
    %1152 = vmatprep.subr.mxu0 0.0
    %1153 = vmatpush1.msra.mxu0 0.0
    %1154 = vmatprep.subr.mxu0 0.0
    %1155 = vmatpush1.msra.mxu0 0.0
    %1156 = vmatprep.subr.mxu0 0.0
    %1157 = vmatpush1.msra.mxu0 0.0
    %1158 = vmatprep.subr.mxu0 0.0
    %1159 = vmatpush1.msra.mxu0 0.0
    %1160 = vmatprep.subr.mxu0 0.0
    %1161 = vmatpush1.msra.mxu0 0.0
    %1162 = vmatprep.subr.mxu0 0.0
    %1163 = vmatpush1.msra.mxu0 0.0
    %1164 = vmatprep.subr.mxu0 0.0
    %1165 = vmatpush1.msra.mxu0 0.0
    %1166 = vmatprep.subr.mxu0 0.0
    %1167 = vmatpush1.msra.mxu0 0.0
    %1168 = vmatprep.subr.mxu0 0.0
    %1169 = vmatpush1.msra.mxu0 0.0
    %1170 = vmatprep.subr.mxu0 0.0
    %1171 = vmatpush1.msra.mxu0 0.0
    %1172 = vmatprep.subr.mxu0 0.0
    %1173 = vmatpush1.msra.mxu0 0.0
    %1174 = vmatprep.subr.mxu0 0.0
    %1175 = vmatpush1.msra.mxu0 0.0
    %1176 = vmatprep.subr.mxu0 %v35
    %1177 = vmatpush1.msra.mxu0 %v34
    %1178 = vmatprep.subr.mxu0 0.0
    %1179 = vmatpush2.msra.mxu0 0.0
    %1180 = vmatprep.subr.mxu0 0.0
    %1181 = vmatpush2.msra.mxu0 0.0
    %1182 = vmatprep.subr.mxu0 0.0
    %1183 = vmatpush2.msra.mxu0 0.0
    %1184 = vmatprep.subr.mxu0 0.0
    %1185 = vmatpush2.msra.mxu0 0.0
    %1186 = vmatprep.subr.mxu0 0.0
    %1187 = vmatpush2.msra.mxu0 0.0
    %1188 = vmatprep.subr.mxu0 0.0
    %1189 = vmatpush2.msra.mxu0 0.0
    %1190 = vmatprep.subr.mxu0 0.0
    %1191 = vmatpush2.msra.mxu0 0.0
    %1192 = vmatprep.subr.mxu0 0.0
    %1193 = vmatpush2.msra.mxu0 0.0
    %1194 = vmatprep.subr.mxu0 0.0
    %1195 = vmatpush2.msra.mxu0 0.0
    %1196 = vmatprep.subr.mxu0 0.0
    %1197 = vmatpush2.msra.mxu0 0.0
    %1198 = vmatprep.subr.mxu0 0.0
    %1199 = vmatpush2.msra.mxu0 0.0
    %1200 = vmatprep.subr.mxu0 0.0
    %1201 = vmatpush2.msra.mxu0 0.0
    %1202 = vmatprep.subr.mxu0 0.0
    %1203 = vmatpush2.msra.mxu0 0.0
    %1204 = vmatprep.subr.mxu0 0.0
    %1205 = vmatpush2.msra.mxu0 0.0
    %1206 = vmatprep.subr.mxu0 0.0
    %1207 = vmatpush2.msra.mxu0 0.0
    %1208 = vmatprep.subr.mxu0 0.0
    %1209 = vmatpush2.msra.mxu0 0.0
    %1210 = vmatprep.mubr.f32.mxu0 0.0
    %1211 = vmatmul.mubr.f32.gmra.mxu0 %v1002
    %v1212 = vpop.f32.mrf.mxu0
    %v1213 = vadd.f32 0.0, %v1212
    %v1214 = vpop.f32.mrf.mxu0
    %v1215 = vadd.f32 0.0, %v1214
    %1216 = vdwg.mxu0
    %v1217 = vadd.f32 %v993, %v1071
    %v1218 = vadd.f32 %v994, %v1073
    %v1219 = vadd.f32 %v995, %v1142
    %v1220 = vadd.f32 %v996, %v1144
    %v1221 = vadd.f32 %v997, %v1213
    %v1222 = vadd.f32 %v998, %v1215
    %1223 = vrot.lane.b32.xlu0 %v30, 127
    %v1224 = vpop.permute.xlu0 %1223
    %1225 = vrot.lane.b32.xlu0 %v31, 127
    %v1226 = vpop.permute.xlu0 %1225
    %1227 = vrot.lane.b32.xlu0 %v32, 127
    %v1228 = vpop.permute.xlu0 %1227
    %1229 = vrot.lane.b32.xlu0 %v33, 127
    %v1230 = vpop.permute.xlu0 %1229
    %1231 = vrot.lane.b32.xlu0 %v34, 127
    %v1232 = vpop.permute.xlu0 %1231
    %1233 = vrot.lane.b32.xlu0 %v35, 127
    %v1234 = vpop.permute.xlu0 %1233
    %vm1235 = vcmp.lt.s32.totalorder %v50, 127
    %v1236 = vsel %vm1235, %v1232, %v1234
    %v1237 = vsel %vm1235, %v1230, %v1232
    %v1238 = vsel %vm1235, %v1228, %v1230
    %v1239 = vsel %vm1235, %v1226, %v1228
    %v1240 = vsel %vm1235, %v1224, %v1226
    %v1241 = vsel %vm1235, %v1234, %v1224
    %s1242 = scalar_lea.vmem %s2, 40
    %v1243 = vld [vmem:[%s1242] sm:$0xff]
    %v1245 = vsel %vm80, %v1243, 0
    %1247 = vmatprep.subr.mxu0 0.0
    %1248 = vmatpush1.msra.mxu0 0.0
    %1249 = vmatprep.subr.mxu0 0.0
    %1250 = vmatpush1.msra.mxu0 0.0
    %1251 = vmatprep.subr.mxu0 0.0
    %1252 = vmatpush1.msra.mxu0 0.0
    %1253 = vmatprep.subr.mxu0 0.0
    %1254 = vmatpush1.msra.mxu0 0.0
    %1255 = vmatprep.subr.mxu0 0.0
    %1256 = vmatpush1.msra.mxu0 0.0
    %1257 = vmatprep.subr.mxu0 0.0
    %1258 = vmatpush1.msra.mxu0 0.0
    %1259 = vmatprep.subr.mxu0 0.0
    %1260 = vmatpush1.msra.mxu0 0.0
    %1261 = vmatprep.subr.mxu0 0.0
    %1262 = vmatpush1.msra.mxu0 0.0
    %1263 = vmatprep.subr.mxu0 0.0
    %1264 = vmatpush1.msra.mxu0 0.0
    %1265 = vmatprep.subr.mxu0 0.0
    %1266 = vmatpush1.msra.mxu0 0.0
    %1267 = vmatprep.subr.mxu0 0.0
    %1268 = vmatpush1.msra.mxu0 0.0
    %1269 = vmatprep.subr.mxu0 0.0
    %1270 = vmatpush1.msra.mxu0 0.0
    %1271 = vmatprep.subr.mxu0 0.0
    %1272 = vmatpush1.msra.mxu0 0.0
    %1273 = vmatprep.subr.mxu0 0.0
    %1274 = vmatpush1.msra.mxu0 0.0
    %1275 = vmatprep.subr.mxu0 0.0
    %1276 = vmatpush1.msra.mxu0 0.0
    %1277 = vmatprep.subr.mxu0 %v1239
    %1278 = vmatpush1.msra.mxu0 %v1240
    %1279 = vmatprep.subr.mxu0 0.0
    %1280 = vmatpush2.msra.mxu0 0.0
    %1281 = vmatprep.subr.mxu0 0.0
    %1282 = vmatpush2.msra.mxu0 0.0
    %1283 = vmatprep.subr.mxu0 0.0
    %1284 = vmatpush2.msra.mxu0 0.0
    %1285 = vmatprep.subr.mxu0 0.0
    %1286 = vmatpush2.msra.mxu0 0.0
    %1287 = vmatprep.subr.mxu0 0.0
    %1288 = vmatpush2.msra.mxu0 0.0
    %1289 = vmatprep.subr.mxu0 0.0
    %1290 = vmatpush2.msra.mxu0 0.0
    %1291 = vmatprep.subr.mxu0 0.0
    %1292 = vmatpush2.msra.mxu0 0.0
    %1293 = vmatprep.subr.mxu0 0.0
    %1294 = vmatpush2.msra.mxu0 0.0
    %1295 = vmatprep.subr.mxu0 0.0
    %1296 = vmatpush2.msra.mxu0 0.0
    %1297 = vmatprep.subr.mxu0 0.0
    %1298 = vmatpush2.msra.mxu0 0.0
    %1299 = vmatprep.subr.mxu0 0.0
    %1300 = vmatpush2.msra.mxu0 0.0
    %1301 = vmatprep.subr.mxu0 0.0
    %1302 = vmatpush2.msra.mxu0 0.0
    %1303 = vmatprep.subr.mxu0 0.0
    %1304 = vmatpush2.msra.mxu0 0.0
    %1305 = vmatprep.subr.mxu0 0.0
    %1306 = vmatpush2.msra.mxu0 0.0
    %1307 = vmatprep.subr.mxu0 0.0
    %1308 = vmatpush2.msra.mxu0 0.0
    %1309 = vmatprep.subr.mxu0 0.0
    %1310 = vmatpush2.msra.mxu0 0.0
    %1311 = vmatprep.mubr.f32.mxu0 0.0
    %1312 = vmatmul.mubr.f32.gmra.mxu0 %v1245
    %v1313 = vpop.f32.mrf.mxu0
    %v1314 = vadd.f32 0.0, %v1313
    %v1315 = vpop.f32.mrf.mxu0
    %v1316 = vadd.f32 0.0, %v1315
    %1317 = vdwg.mxu0
    %1318 = vmatprep.subr.mxu0 0.0
    %1319 = vmatpush1.msra.mxu0 0.0
    %1320 = vmatprep.subr.mxu0 0.0
    %1321 = vmatpush1.msra.mxu0 0.0
    %1322 = vmatprep.subr.mxu0 0.0
    %1323 = vmatpush1.msra.mxu0 0.0
    %1324 = vmatprep.subr.mxu0 0.0
    %1325 = vmatpush1.msra.mxu0 0.0
    %1326 = vmatprep.subr.mxu0 0.0
    %1327 = vmatpush1.msra.mxu0 0.0
    %1328 = vmatprep.subr.mxu0 0.0
    %1329 = vmatpush1.msra.mxu0 0.0
    %1330 = vmatprep.subr.mxu0 0.0
    %1331 = vmatpush1.msra.mxu0 0.0
    %1332 = vmatprep.subr.mxu0 0.0
    %1333 = vmatpush1.msra.mxu0 0.0
    %1334 = vmatprep.subr.mxu0 0.0
    %1335 = vmatpush1.msra.mxu0 0.0
    %1336 = vmatprep.subr.mxu0 0.0
    %1337 = vmatpush1.msra.mxu0 0.0
    %1338 = vmatprep.subr.mxu0 0.0
    %1339 = vmatpush1.msra.mxu0 0.0
    %1340 = vmatprep.subr.mxu0 0.0
    %1341 = vmatpush1.msra.mxu0 0.0
    %1342 = vmatprep.subr.mxu0 0.0
    %1343 = vmatpush1.msra.mxu0 0.0
    %1344 = vmatprep.subr.mxu0 0.0
    %1345 = vmatpush1.msra.mxu0 0.0
    %1346 = vmatprep.subr.mxu0 0.0
    %1347 = vmatpush1.msra.mxu0 0.0
    %1348 = vmatprep.subr.mxu0 %v1237
    %1349 = vmatpush1.msra.mxu0 %v1238
    %1350 = vmatprep.subr.mxu0 0.0
    %1351 = vmatpush2.msra.mxu0 0.0
    %1352 = vmatprep.subr.mxu0 0.0
    %1353 = vmatpush2.msra.mxu0 0.0
    %1354 = vmatprep.subr.mxu0 0.0
    %1355 = vmatpush2.msra.mxu0 0.0
    %1356 = vmatprep.subr.mxu0 0.0
    %1357 = vmatpush2.msra.mxu0 0.0
    %1358 = vmatprep.subr.mxu0 0.0
    %1359 = vmatpush2.msra.mxu0 0.0
    %1360 = vmatprep.subr.mxu0 0.0
    %1361 = vmatpush2.msra.mxu0 0.0
    %1362 = vmatprep.subr.mxu0 0.0
    %1363 = vmatpush2.msra.mxu0 0.0
    %1364 = vmatprep.subr.mxu0 0.0
    %1365 = vmatpush2.msra.mxu0 0.0
    %1366 = vmatprep.subr.mxu0 0.0
    %1367 = vmatpush2.msra.mxu0 0.0
    %1368 = vmatprep.subr.mxu0 0.0
    %1369 = vmatpush2.msra.mxu0 0.0
    %1370 = vmatprep.subr.mxu0 0.0
    %1371 = vmatpush2.msra.mxu0 0.0
    %1372 = vmatprep.subr.mxu0 0.0
    %1373 = vmatpush2.msra.mxu0 0.0
    %1374 = vmatprep.subr.mxu0 0.0
    %1375 = vmatpush2.msra.mxu0 0.0
    %1376 = vmatprep.subr.mxu0 0.0
    %1377 = vmatpush2.msra.mxu0 0.0
    %1378 = vmatprep.subr.mxu0 0.0
    %1379 = vmatpush2.msra.mxu0 0.0
    %1380 = vmatprep.subr.mxu0 0.0
    %1381 = vmatpush2.msra.mxu0 0.0
    %1382 = vmatprep.mubr.f32.mxu0 0.0
    %1383 = vmatmul.mubr.f32.gmra.mxu0 %v1245
    %v1384 = vpop.f32.mrf.mxu0
    %v1385 = vadd.f32 0.0, %v1384
    %v1386 = vpop.f32.mrf.mxu0
    %v1387 = vadd.f32 0.0, %v1386
    %1388 = vdwg.mxu0
    %1389 = vmatprep.subr.mxu0 0.0
    %1390 = vmatpush1.msra.mxu0 0.0
    %1391 = vmatprep.subr.mxu0 0.0
    %1392 = vmatpush1.msra.mxu0 0.0
    %1393 = vmatprep.subr.mxu0 0.0
    %1394 = vmatpush1.msra.mxu0 0.0
    %1395 = vmatprep.subr.mxu0 0.0
    %1396 = vmatpush1.msra.mxu0 0.0
    %1397 = vmatprep.subr.mxu0 0.0
    %1398 = vmatpush1.msra.mxu0 0.0
    %1399 = vmatprep.subr.mxu0 0.0
    %1400 = vmatpush1.msra.mxu0 0.0
    %1401 = vmatprep.subr.mxu0 0.0
    %1402 = vmatpush1.msra.mxu0 0.0
    %1403 = vmatprep.subr.mxu0 0.0
    %1404 = vmatpush1.msra.mxu0 0.0
    %1405 = vmatprep.subr.mxu0 0.0
    %1406 = vmatpush1.msra.mxu0 0.0
    %1407 = vmatprep.subr.mxu0 0.0
    %1408 = vmatpush1.msra.mxu0 0.0
    %1409 = vmatprep.subr.mxu0 0.0
    %1410 = vmatpush1.msra.mxu0 0.0
    %1411 = vmatprep.subr.mxu0 0.0
    %1412 = vmatpush1.msra.mxu0 0.0
    %1413 = vmatprep.subr.mxu0 0.0
    %1414 = vmatpush1.msra.mxu0 0.0
    %1415 = vmatprep.subr.mxu0 0.0
    %1416 = vmatpush1.msra.mxu0 0.0
    %1417 = vmatprep.subr.mxu0 0.0
    %1418 = vmatpush1.msra.mxu0 0.0
    %1419 = vmatprep.subr.mxu0 %v1241
    %1420 = vmatpush1.msra.mxu0 %v1236
    %1421 = vmatprep.subr.mxu0 0.0
    %1422 = vmatpush2.msra.mxu0 0.0
    %1423 = vmatprep.subr.mxu0 0.0
    %1424 = vmatpush2.msra.mxu0 0.0
    %1425 = vmatprep.subr.mxu0 0.0
    %1426 = vmatpush2.msra.mxu0 0.0
    %1427 = vmatprep.subr.mxu0 0.0
    %1428 = vmatpush2.msra.mxu0 0.0
    %1429 = vmatprep.subr.mxu0 0.0
    %1430 = vmatpush2.msra.mxu0 0.0
    %1431 = vmatprep.subr.mxu0 0.0
    %1432 = vmatpush2.msra.mxu0 0.0
    %1433 = vmatprep.subr.mxu0 0.0
    %1434 = vmatpush2.msra.mxu0 0.0
    %1435 = vmatprep.subr.mxu0 0.0
    %1436 = vmatpush2.msra.mxu0 0.0
    %1437 = vmatprep.subr.mxu0 0.0
    %1438 = vmatpush2.msra.mxu0 0.0
    %1439 = vmatprep.subr.mxu0 0.0
    %1440 = vmatpush2.msra.mxu0 0.0
    %1441 = vmatprep.subr.mxu0 0.0
    %1442 = vmatpush2.msra.mxu0 0.0
    %1443 = vmatprep.subr.mxu0 0.0
    %1444 = vmatpush2.msra.mxu0 0.0
    %1445 = vmatprep.subr.mxu0 0.0
    %1446 = vmatpush2.msra.mxu0 0.0
    %1447 = vmatprep.subr.mxu0 0.0
    %1448 = vmatpush2.msra.mxu0 0.0
    %1449 = vmatprep.subr.mxu0 0.0
    %1450 = vmatpush2.msra.mxu0 0.0
    %1451 = vmatprep.subr.mxu0 0.0
    %1452 = vmatpush2.msra.mxu0 0.0
    %1453 = vmatprep.mubr.f32.mxu0 0.0
    %1454 = vmatmul.mubr.f32.gmra.mxu0 %v1245
    %v1455 = vpop.f32.mrf.mxu0
    %v1456 = vadd.f32 0.0, %v1455
    %v1457 = vpop.f32.mrf.mxu0
    %v1458 = vadd.f32 0.0, %v1457
    %1459 = vdwg.mxu0
    %v1460 = vadd.f32 %v1217, %v1314
    %v1461 = vadd.f32 %v1218, %v1316
    %v1462 = vadd.f32 %v1219, %v1385
    %v1463 = vadd.f32 %v1220, %v1387
    %v1464 = vadd.f32 %v1221, %v1456
    %v1465 = vadd.f32 %v1222, %v1458
    %1466 = vrot.lane.b32.xlu0 %v30, 111
    %v1467 = vpop.permute.xlu0 %1466
    %1468 = vrot.lane.b32.xlu0 %v31, 111
    %v1469 = vpop.permute.xlu0 %1468
    %1470 = vrot.lane.b32.xlu0 %v32, 111
    %v1471 = vpop.permute.xlu0 %1470
    %1472 = vrot.lane.b32.xlu0 %v33, 111
    %v1473 = vpop.permute.xlu0 %1472
    %1474 = vrot.lane.b32.xlu0 %v34, 111
    %v1475 = vpop.permute.xlu0 %1474
    %1476 = vrot.lane.b32.xlu0 %v35, 111
    %v1477 = vpop.permute.xlu0 %1476
    %vm1478 = vcmp.lt.s32.totalorder %v50, 111
    %v1479 = vsel %vm1478, %v1475, %v1477
    %v1480 = vsel %vm1478, %v1473, %v1475
    %v1481 = vsel %vm1478, %v1471, %v1473
    %v1482 = vsel %vm1478, %v1469, %v1471
    %v1483 = vsel %vm1478, %v1467, %v1469
    %v1484 = vsel %vm1478, %v1477, %v1467
    %s1485 = scalar_lea.vmem %s2, 48
    %v1486 = vld [vmem:[%s1485] sm:$0xff]
    %v1488 = vsel %vm80, %v1486, 0
    %1490 = vmatprep.subr.mxu0 0.0
    %1491 = vmatpush1.msra.mxu0 0.0
    %1492 = vmatprep.subr.mxu0 0.0
    %1493 = vmatpush1.msra.mxu0 0.0
    %1494 = vmatprep.subr.mxu0 0.0
    %1495 = vmatpush1.msra.mxu0 0.0
    %1496 = vmatprep.subr.mxu0 0.0
    %1497 = vmatpush1.msra.mxu0 0.0
    %1498 = vmatprep.subr.mxu0 0.0
    %1499 = vmatpush1.msra.mxu0 0.0
    %1500 = vmatprep.subr.mxu0 0.0
    %1501 = vmatpush1.msra.mxu0 0.0
    %1502 = vmatprep.subr.mxu0 0.0
    %1503 = vmatpush1.msra.mxu0 0.0
    %1504 = vmatprep.subr.mxu0 0.0
    %1505 = vmatpush1.msra.mxu0 0.0
    %1506 = vmatprep.subr.mxu0 0.0
    %1507 = vmatpush1.msra.mxu0 0.0
    %1508 = vmatprep.subr.mxu0 0.0
    %1509 = vmatpush1.msra.mxu0 0.0
    %1510 = vmatprep.subr.mxu0 0.0
    %1511 = vmatpush1.msra.mxu0 0.0
    %1512 = vmatprep.subr.mxu0 0.0
    %1513 = vmatpush1.msra.mxu0 0.0
    %1514 = vmatprep.subr.mxu0 0.0
    %1515 = vmatpush1.msra.mxu0 0.0
    %1516 = vmatprep.subr.mxu0 0.0
    %1517 = vmatpush1.msra.mxu0 0.0
    %1518 = vmatprep.subr.mxu0 0.0
    %1519 = vmatpush1.msra.mxu0 0.0
    %1520 = vmatprep.subr.mxu0 %v1482
    %1521 = vmatpush1.msra.mxu0 %v1483
    %1522 = vmatprep.subr.mxu0 0.0
    %1523 = vmatpush2.msra.mxu0 0.0
    %1524 = vmatprep.subr.mxu0 0.0
    %1525 = vmatpush2.msra.mxu0 0.0
    %1526 = vmatprep.subr.mxu0 0.0
    %1527 = vmatpush2.msra.mxu0 0.0
    %1528 = vmatprep.subr.mxu0 0.0
    %1529 = vmatpush2.msra.mxu0 0.0
    %1530 = vmatprep.subr.mxu0 0.0
    %1531 = vmatpush2.msra.mxu0 0.0
    %1532 = vmatprep.subr.mxu0 0.0
    %1533 = vmatpush2.msra.mxu0 0.0
    %1534 = vmatprep.subr.mxu0 0.0
    %1535 = vmatpush2.msra.mxu0 0.0
    %1536 = vmatprep.subr.mxu0 0.0
    %1537 = vmatpush2.msra.mxu0 0.0
    %1538 = vmatprep.subr.mxu0 0.0
    %1539 = vmatpush2.msra.mxu0 0.0
    %1540 = vmatprep.subr.mxu0 0.0
    %1541 = vmatpush2.msra.mxu0 0.0
    %1542 = vmatprep.subr.mxu0 0.0
    %1543 = vmatpush2.msra.mxu0 0.0
    %1544 = vmatprep.subr.mxu0 0.0
    %1545 = vmatpush2.msra.mxu0 0.0
    %1546 = vmatprep.subr.mxu0 0.0
    %1547 = vmatpush2.msra.mxu0 0.0
    %1548 = vmatprep.subr.mxu0 0.0
    %1549 = vmatpush2.msra.mxu0 0.0
    %1550 = vmatprep.subr.mxu0 0.0
    %1551 = vmatpush2.msra.mxu0 0.0
    %1552 = vmatprep.subr.mxu0 0.0
    %1553 = vmatpush2.msra.mxu0 0.0
    %1554 = vmatprep.mubr.f32.mxu0 0.0
    %1555 = vmatmul.mubr.f32.gmra.mxu0 %v1488
    %v1556 = vpop.f32.mrf.mxu0
    %v1557 = vadd.f32 0.0, %v1556
    %v1558 = vpop.f32.mrf.mxu0
    %v1559 = vadd.f32 0.0, %v1558
    %1560 = vdwg.mxu0
    %1561 = vmatprep.subr.mxu0 0.0
    %1562 = vmatpush1.msra.mxu0 0.0
    %1563 = vmatprep.subr.mxu0 0.0
    %1564 = vmatpush1.msra.mxu0 0.0
    %1565 = vmatprep.subr.mxu0 0.0
    %1566 = vmatpush1.msra.mxu0 0.0
    %1567 = vmatprep.subr.mxu0 0.0
    %1568 = vmatpush1.msra.mxu0 0.0
    %1569 = vmatprep.subr.mxu0 0.0
    %1570 = vmatpush1.msra.mxu0 0.0
    %1571 = vmatprep.subr.mxu0 0.0
    %1572 = vmatpush1.msra.mxu0 0.0
    %1573 = vmatprep.subr.mxu0 0.0
    %1574 = vmatpush1.msra.mxu0 0.0
    %1575 = vmatprep.subr.mxu0 0.0
    %1576 = vmatpush1.msra.mxu0 0.0
    %1577 = vmatprep.subr.mxu0 0.0
    %1578 = vmatpush1.msra.mxu0 0.0
    %1579 = vmatprep.subr.mxu0 0.0
    %1580 = vmatpush1.msra.mxu0 0.0
    %1581 = vmatprep.subr.mxu0 0.0
    %1582 = vmatpush1.msra.mxu0 0.0
    %1583 = vmatprep.subr.mxu0 0.0
    %1584 = vmatpush1.msra.mxu0 0.0
    %1585 = vmatprep.subr.mxu0 0.0
    %1586 = vmatpush1.msra.mxu0 0.0
    %1587 = vmatprep.subr.mxu0 0.0
    %1588 = vmatpush1.msra.mxu0 0.0
    %1589 = vmatprep.subr.mxu0 0.0
    %1590 = vmatpush1.msra.mxu0 0.0
    %1591 = vmatprep.subr.mxu0 %v1480
    %1592 = vmatpush1.msra.mxu0 %v1481
    %1593 = vmatprep.subr.mxu0 0.0
    %1594 = vmatpush2.msra.mxu0 0.0
    %1595 = vmatprep.subr.mxu0 0.0
    %1596 = vmatpush2.msra.mxu0 0.0
    %1597 = vmatprep.subr.mxu0 0.0
    %1598 = vmatpush2.msra.mxu0 0.0
    %1599 = vmatprep.subr.mxu0 0.0
    %1600 = vmatpush2.msra.mxu0 0.0
    %1601 = vmatprep.subr.mxu0 0.0
    %1602 = vmatpush2.msra.mxu0 0.0
    %1603 = vmatprep.subr.mxu0 0.0
    %1604 = vmatpush2.msra.mxu0 0.0
    %1605 = vmatprep.subr.mxu0 0.0
    %1606 = vmatpush2.msra.mxu0 0.0
    %1607 = vmatprep.subr.mxu0 0.0
    %1608 = vmatpush2.msra.mxu0 0.0
    %1609 = vmatprep.subr.mxu0 0.0
    %1610 = vmatpush2.msra.mxu0 0.0
    %1611 = vmatprep.subr.mxu0 0.0
    %1612 = vmatpush2.msra.mxu0 0.0
    %1613 = vmatprep.subr.mxu0 0.0
    %1614 = vmatpush2.msra.mxu0 0.0
    %1615 = vmatprep.subr.mxu0 0.0
    %1616 = vmatpush2.msra.mxu0 0.0
    %1617 = vmatprep.subr.mxu0 0.0
    %1618 = vmatpush2.msra.mxu0 0.0
    %1619 = vmatprep.subr.mxu0 0.0
    %1620 = vmatpush2.msra.mxu0 0.0
    %1621 = vmatprep.subr.mxu0 0.0
    %1622 = vmatpush2.msra.mxu0 0.0
    %1623 = vmatprep.subr.mxu0 0.0
    %1624 = vmatpush2.msra.mxu0 0.0
    %1625 = vmatprep.mubr.f32.mxu0 0.0
    %1626 = vmatmul.mubr.f32.gmra.mxu0 %v1488
    %v1627 = vpop.f32.mrf.mxu0
    %v1628 = vadd.f32 0.0, %v1627
    %v1629 = vpop.f32.mrf.mxu0
    %v1630 = vadd.f32 0.0, %v1629
    %1631 = vdwg.mxu0
    %1632 = vmatprep.subr.mxu0 0.0
    %1633 = vmatpush1.msra.mxu0 0.0
    %1634 = vmatprep.subr.mxu0 0.0
    %1635 = vmatpush1.msra.mxu0 0.0
    %1636 = vmatprep.subr.mxu0 0.0
    %1637 = vmatpush1.msra.mxu0 0.0
    %1638 = vmatprep.subr.mxu0 0.0
    %1639 = vmatpush1.msra.mxu0 0.0
    %1640 = vmatprep.subr.mxu0 0.0
    %1641 = vmatpush1.msra.mxu0 0.0
    %1642 = vmatprep.subr.mxu0 0.0
    %1643 = vmatpush1.msra.mxu0 0.0
    %1644 = vmatprep.subr.mxu0 0.0
    %1645 = vmatpush1.msra.mxu0 0.0
    %1646 = vmatprep.subr.mxu0 0.0
    %1647 = vmatpush1.msra.mxu0 0.0
    %1648 = vmatprep.subr.mxu0 0.0
    %1649 = vmatpush1.msra.mxu0 0.0
    %1650 = vmatprep.subr.mxu0 0.0
    %1651 = vmatpush1.msra.mxu0 0.0
    %1652 = vmatprep.subr.mxu0 0.0
    %1653 = vmatpush1.msra.mxu0 0.0
    %1654 = vmatprep.subr.mxu0 0.0
    %1655 = vmatpush1.msra.mxu0 0.0
    %1656 = vmatprep.subr.mxu0 0.0
    %1657 = vmatpush1.msra.mxu0 0.0
    %1658 = vmatprep.subr.mxu0 0.0
    %1659 = vmatpush1.msra.mxu0 0.0
    %1660 = vmatprep.subr.mxu0 0.0
    %1661 = vmatpush1.msra.mxu0 0.0
    %1662 = vmatprep.subr.mxu0 %v1484
    %1663 = vmatpush1.msra.mxu0 %v1479
    %1664 = vmatprep.subr.mxu0 0.0
    %1665 = vmatpush2.msra.mxu0 0.0
    %1666 = vmatprep.subr.mxu0 0.0
    %1667 = vmatpush2.msra.mxu0 0.0
    %1668 = vmatprep.subr.mxu0 0.0
    %1669 = vmatpush2.msra.mxu0 0.0
    %1670 = vmatprep.subr.mxu0 0.0
    %1671 = vmatpush2.msra.mxu0 0.0
    %1672 = vmatprep.subr.mxu0 0.0
    %1673 = vmatpush2.msra.mxu0 0.0
    %1674 = vmatprep.subr.mxu0 0.0
    %1675 = vmatpush2.msra.mxu0 0.0
    %1676 = vmatprep.subr.mxu0 0.0
    %1677 = vmatpush2.msra.mxu0 0.0
    %1678 = vmatprep.subr.mxu0 0.0
    %1679 = vmatpush2.msra.mxu0 0.0
    %1680 = vmatprep.subr.mxu0 0.0
    %1681 = vmatpush2.msra.mxu0 0.0
    %1682 = vmatprep.subr.mxu0 0.0
    %1683 = vmatpush2.msra.mxu0 0.0
    %1684 = vmatprep.subr.mxu0 0.0
    %1685 = vmatpush2.msra.mxu0 0.0
    %1686 = vmatprep.subr.mxu0 0.0
    %1687 = vmatpush2.msra.mxu0 0.0
    %1688 = vmatprep.subr.mxu0 0.0
    %1689 = vmatpush2.msra.mxu0 0.0
    %1690 = vmatprep.subr.mxu0 0.0
    %1691 = vmatpush2.msra.mxu0 0.0
    %1692 = vmatprep.subr.mxu0 0.0
    %1693 = vmatpush2.msra.mxu0 0.0
    %1694 = vmatprep.subr.mxu0 0.0
    %1695 = vmatpush2.msra.mxu0 0.0
    %1696 = vmatprep.mubr.f32.mxu0 0.0
    %1697 = vmatmul.mubr.f32.gmra.mxu0 %v1488
    %v1698 = vpop.f32.mrf.mxu0
    %v1699 = vadd.f32 0.0, %v1698
    %v1700 = vpop.f32.mrf.mxu0
    %v1701 = vadd.f32 0.0, %v1700
    %1702 = vdwg.mxu0
    %v1703 = vadd.f32 %v1460, %v1557
    %v1704 = vadd.f32 %v1461, %v1559
    %v1705 = vadd.f32 %v1462, %v1628
    %v1706 = vadd.f32 %v1463, %v1630
    %v1707 = vadd.f32 %v1464, %v1699
    %v1708 = vadd.f32 %v1465, %v1701
    %1709 = vrot.lane.b32.xlu0 %v30, 110
    %v1710 = vpop.permute.xlu0 %1709
    %1711 = vrot.lane.b32.xlu0 %v31, 110
    %v1712 = vpop.permute.xlu0 %1711
    %1713 = vrot.lane.b32.xlu0 %v32, 110
    %v1714 = vpop.permute.xlu0 %1713
    %1715 = vrot.lane.b32.xlu0 %v33, 110
    %v1716 = vpop.permute.xlu0 %1715
    %1717 = vrot.lane.b32.xlu0 %v34, 110
    %v1718 = vpop.permute.xlu0 %1717
    %1719 = vrot.lane.b32.xlu0 %v35, 110
    %v1720 = vpop.permute.xlu0 %1719
    %vm1721 = vcmp.lt.s32.totalorder %v50, 110
    %v1722 = vsel %vm1721, %v1718, %v1720
    %v1723 = vsel %vm1721, %v1716, %v1718
    %v1724 = vsel %vm1721, %v1714, %v1716
    %v1725 = vsel %vm1721, %v1712, %v1714
    %v1726 = vsel %vm1721, %v1710, %v1712
    %v1727 = vsel %vm1721, %v1720, %v1710
    %s1728 = scalar_lea.vmem %s2, 56
    %v1729 = vld [vmem:[%s1728] sm:$0xff]
    %v1731 = vsel %vm80, %v1729, 0
    %1733 = vmatprep.subr.mxu0 0.0
    %1734 = vmatpush1.msra.mxu0 0.0
    %1735 = vmatprep.subr.mxu0 0.0
    %1736 = vmatpush1.msra.mxu0 0.0
    %1737 = vmatprep.subr.mxu0 0.0
    %1738 = vmatpush1.msra.mxu0 0.0
    %1739 = vmatprep.subr.mxu0 0.0
    %1740 = vmatpush1.msra.mxu0 0.0
    %1741 = vmatprep.subr.mxu0 0.0
    %1742 = vmatpush1.msra.mxu0 0.0
    %1743 = vmatprep.subr.mxu0 0.0
    %1744 = vmatpush1.msra.mxu0 0.0
    %1745 = vmatprep.subr.mxu0 0.0
    %1746 = vmatpush1.msra.mxu0 0.0
    %1747 = vmatprep.subr.mxu0 0.0
    %1748 = vmatpush1.msra.mxu0 0.0
    %1749 = vmatprep.subr.mxu0 0.0
    %1750 = vmatpush1.msra.mxu0 0.0
    %1751 = vmatprep.subr.mxu0 0.0
    %1752 = vmatpush1.msra.mxu0 0.0
    %1753 = vmatprep.subr.mxu0 0.0
    %1754 = vmatpush1.msra.mxu0 0.0
    %1755 = vmatprep.subr.mxu0 0.0
    %1756 = vmatpush1.msra.mxu0 0.0
    %1757 = vmatprep.subr.mxu0 0.0
    %1758 = vmatpush1.msra.mxu0 0.0
    %1759 = vmatprep.subr.mxu0 0.0
    %1760 = vmatpush1.msra.mxu0 0.0
    %1761 = vmatprep.subr.mxu0 0.0
    %1762 = vmatpush1.msra.mxu0 0.0
    %1763 = vmatprep.subr.mxu0 %v1725
    %1764 = vmatpush1.msra.mxu0 %v1726
    %1765 = vmatprep.subr.mxu0 0.0
    %1766 = vmatpush2.msra.mxu0 0.0
    %1767 = vmatprep.subr.mxu0 0.0
    %1768 = vmatpush2.msra.mxu0 0.0
    %1769 = vmatprep.subr.mxu0 0.0
    %1770 = vmatpush2.msra.mxu0 0.0
    %1771 = vmatprep.subr.mxu0 0.0
    %1772 = vmatpush2.msra.mxu0 0.0
    %1773 = vmatprep.subr.mxu0 0.0
    %1774 = vmatpush2.msra.mxu0 0.0
    %1775 = vmatprep.subr.mxu0 0.0
    %1776 = vmatpush2.msra.mxu0 0.0
    %1777 = vmatprep.subr.mxu0 0.0
    %1778 = vmatpush2.msra.mxu0 0.0
    %1779 = vmatprep.subr.mxu0 0.0
    %1780 = vmatpush2.msra.mxu0 0.0
    %1781 = vmatprep.subr.mxu0 0.0
    %1782 = vmatpush2.msra.mxu0 0.0
    %1783 = vmatprep.subr.mxu0 0.0
    %1784 = vmatpush2.msra.mxu0 0.0
    %1785 = vmatprep.subr.mxu0 0.0
    %1786 = vmatpush2.msra.mxu0 0.0
    %1787 = vmatprep.subr.mxu0 0.0
    %1788 = vmatpush2.msra.mxu0 0.0
    %1789 = vmatprep.subr.mxu0 0.0
    %1790 = vmatpush2.msra.mxu0 0.0
    %1791 = vmatprep.subr.mxu0 0.0
    %1792 = vmatpush2.msra.mxu0 0.0
    %1793 = vmatprep.subr.mxu0 0.0
    %1794 = vmatpush2.msra.mxu0 0.0
    %1795 = vmatprep.subr.mxu0 0.0
    %1796 = vmatpush2.msra.mxu0 0.0
    %1797 = vmatprep.mubr.f32.mxu0 0.0
    %1798 = vmatmul.mubr.f32.gmra.mxu0 %v1731
    %v1799 = vpop.f32.mrf.mxu0
    %v1800 = vadd.f32 0.0, %v1799
    %v1801 = vpop.f32.mrf.mxu0
    %v1802 = vadd.f32 0.0, %v1801
    %1803 = vdwg.mxu0
    %1804 = vmatprep.subr.mxu0 0.0
    %1805 = vmatpush1.msra.mxu0 0.0
    %1806 = vmatprep.subr.mxu0 0.0
    %1807 = vmatpush1.msra.mxu0 0.0
    %1808 = vmatprep.subr.mxu0 0.0
    %1809 = vmatpush1.msra.mxu0 0.0
    %1810 = vmatprep.subr.mxu0 0.0
    %1811 = vmatpush1.msra.mxu0 0.0
    %1812 = vmatprep.subr.mxu0 0.0
    %1813 = vmatpush1.msra.mxu0 0.0
    %1814 = vmatprep.subr.mxu0 0.0
    %1815 = vmatpush1.msra.mxu0 0.0
    %1816 = vmatprep.subr.mxu0 0.0
    %1817 = vmatpush1.msra.mxu0 0.0
    %1818 = vmatprep.subr.mxu0 0.0
    %1819 = vmatpush1.msra.mxu0 0.0
    %1820 = vmatprep.subr.mxu0 0.0
    %1821 = vmatpush1.msra.mxu0 0.0
    %1822 = vmatprep.subr.mxu0 0.0
    %1823 = vmatpush1.msra.mxu0 0.0
    %1824 = vmatprep.subr.mxu0 0.0
    %1825 = vmatpush1.msra.mxu0 0.0
    %1826 = vmatprep.subr.mxu0 0.0
    %1827 = vmatpush1.msra.mxu0 0.0
    %1828 = vmatprep.subr.mxu0 0.0
    %1829 = vmatpush1.msra.mxu0 0.0
    %1830 = vmatprep.subr.mxu0 0.0
    %1831 = vmatpush1.msra.mxu0 0.0
    %1832 = vmatprep.subr.mxu0 0.0
    %1833 = vmatpush1.msra.mxu0 0.0
    %1834 = vmatprep.subr.mxu0 %v1723
    %1835 = vmatpush1.msra.mxu0 %v1724
    %1836 = vmatprep.subr.mxu0 0.0
    %1837 = vmatpush2.msra.mxu0 0.0
    %1838 = vmatprep.subr.mxu0 0.0
    %1839 = vmatpush2.msra.mxu0 0.0
    %1840 = vmatprep.subr.mxu0 0.0
    %1841 = vmatpush2.msra.mxu0 0.0
    %1842 = vmatprep.subr.mxu0 0.0
    %1843 = vmatpush2.msra.mxu0 0.0
    %1844 = vmatprep.subr.mxu0 0.0
    %1845 = vmatpush2.msra.mxu0 0.0
    %1846 = vmatprep.subr.mxu0 0.0
    %1847 = vmatpush2.msra.mxu0 0.0
    %1848 = vmatprep.subr.mxu0 0.0
    %1849 = vmatpush2.msra.mxu0 0.0
    %1850 = vmatprep.subr.mxu0 0.0
    %1851 = vmatpush2.msra.mxu0 0.0
    %1852 = vmatprep.subr.mxu0 0.0
    %1853 = vmatpush2.msra.mxu0 0.0
    %1854 = vmatprep.subr.mxu0 0.0
    %1855 = vmatpush2.msra.mxu0 0.0
    %1856 = vmatprep.subr.mxu0 0.0
    %1857 = vmatpush2.msra.mxu0 0.0
    %1858 = vmatprep.subr.mxu0 0.0
    %1859 = vmatpush2.msra.mxu0 0.0
    %1860 = vmatprep.subr.mxu0 0.0
    %1861 = vmatpush2.msra.mxu0 0.0
    %1862 = vmatprep.subr.mxu0 0.0
    %1863 = vmatpush2.msra.mxu0 0.0
    %1864 = vmatprep.subr.mxu0 0.0
    %1865 = vmatpush2.msra.mxu0 0.0
    %1866 = vmatprep.subr.mxu0 0.0
    %1867 = vmatpush2.msra.mxu0 0.0
    %1868 = vmatprep.mubr.f32.mxu0 0.0
    %1869 = vmatmul.mubr.f32.gmra.mxu0 %v1731
    %v1870 = vpop.f32.mrf.mxu0
    %v1871 = vadd.f32 0.0, %v1870
    %v1872 = vpop.f32.mrf.mxu0
    %v1873 = vadd.f32 0.0, %v1872
    %1874 = vdwg.mxu0
    %1875 = vmatprep.subr.mxu0 0.0
    %1876 = vmatpush1.msra.mxu0 0.0
    %1877 = vmatprep.subr.mxu0 0.0
    %1878 = vmatpush1.msra.mxu0 0.0
    %1879 = vmatprep.subr.mxu0 0.0
    %1880 = vmatpush1.msra.mxu0 0.0
    %1881 = vmatprep.subr.mxu0 0.0
    %1882 = vmatpush1.msra.mxu0 0.0
    %1883 = vmatprep.subr.mxu0 0.0
    %1884 = vmatpush1.msra.mxu0 0.0
    %1885 = vmatprep.subr.mxu0 0.0
    %1886 = vmatpush1.msra.mxu0 0.0
    %1887 = vmatprep.subr.mxu0 0.0
    %1888 = vmatpush1.msra.mxu0 0.0
    %1889 = vmatprep.subr.mxu0 0.0
    %1890 = vmatpush1.msra.mxu0 0.0
    %1891 = vmatprep.subr.mxu0 0.0
    %1892 = vmatpush1.msra.mxu0 0.0
    %1893 = vmatprep.subr.mxu0 0.0
    %1894 = vmatpush1.msra.mxu0 0.0
    %1895 = vmatprep.subr.mxu0 0.0
    %1896 = vmatpush1.msra.mxu0 0.0
    %1897 = vmatprep.subr.mxu0 0.0
    %1898 = vmatpush1.msra.mxu0 0.0
    %1899 = vmatprep.subr.mxu0 0.0
    %1900 = vmatpush1.msra.mxu0 0.0
    %1901 = vmatprep.subr.mxu0 0.0
    %1902 = vmatpush1.msra.mxu0 0.0
    %1903 = vmatprep.subr.mxu0 0.0
    %1904 = vmatpush1.msra.mxu0 0.0
    %1905 = vmatprep.subr.mxu0 %v1727
    %1906 = vmatpush1.msra.mxu0 %v1722
    %1907 = vmatprep.subr.mxu0 0.0
    %1908 = vmatpush2.msra.mxu0 0.0
    %1909 = vmatprep.subr.mxu0 0.0
    %1910 = vmatpush2.msra.mxu0 0.0
    %1911 = vmatprep.subr.mxu0 0.0
    %1912 = vmatpush2.msra.mxu0 0.0
    %1913 = vmatprep.subr.mxu0 0.0
    %1914 = vmatpush2.msra.mxu0 0.0
    %1915 = vmatprep.subr.mxu0 0.0
    %1916 = vmatpush2.msra.mxu0 0.0
    %1917 = vmatprep.subr.mxu0 0.0
    %1918 = vmatpush2.msra.mxu0 0.0
    %1919 = vmatprep.subr.mxu0 0.0
    %1920 = vmatpush2.msra.mxu0 0.0
    %1921 = vmatprep.subr.mxu0 0.0
    %1922 = vmatpush2.msra.mxu0 0.0
    %1923 = vmatprep.subr.mxu0 0.0
    %1924 = vmatpush2.msra.mxu0 0.0
    %1925 = vmatprep.subr.mxu0 0.0
    %1926 = vmatpush2.msra.mxu0 0.0
    %1927 = vmatprep.subr.mxu0 0.0
    %1928 = vmatpush2.msra.mxu0 0.0
    %1929 = vmatprep.subr.mxu0 0.0
    %1930 = vmatpush2.msra.mxu0 0.0
    %1931 = vmatprep.subr.mxu0 0.0
    %1932 = vmatpush2.msra.mxu0 0.0
    %1933 = vmatprep.subr.mxu0 0.0
    %1934 = vmatpush2.msra.mxu0 0.0
    %1935 = vmatprep.subr.mxu0 0.0
    %1936 = vmatpush2.msra.mxu0 0.0
    %1937 = vmatprep.subr.mxu0 0.0
    %1938 = vmatpush2.msra.mxu0 0.0
    %1939 = vmatprep.mubr.f32.mxu0 0.0
    %1940 = vmatmul.mubr.f32.gmra.mxu0 %v1731
    %v1941 = vpop.f32.mrf.mxu0
    %v1942 = vadd.f32 0.0, %v1941
    %v1943 = vpop.f32.mrf.mxu0
    %v1944 = vadd.f32 0.0, %v1943
    %1945 = vdwg.mxu0
    %v1946 = vadd.f32 %v1703, %v1800
    %v1947 = vadd.f32 %v1704, %v1802
    %v1948 = vadd.f32 %v1705, %v1871
    %v1949 = vadd.f32 %v1706, %v1873
    %v1950 = vadd.f32 %v1707, %v1942
    %v1951 = vadd.f32 %v1708, %v1944
    %1952 = vrot.lane.b32.xlu0 %v30, 109
    %v1953 = vpop.permute.xlu0 %1952
    %1954 = vrot.lane.b32.xlu0 %v31, 109
    %v1955 = vpop.permute.xlu0 %1954
    %1956 = vrot.lane.b32.xlu0 %v32, 109
    %v1957 = vpop.permute.xlu0 %1956
    %1958 = vrot.lane.b32.xlu0 %v33, 109
    %v1959 = vpop.permute.xlu0 %1958
    %1960 = vrot.lane.b32.xlu0 %v34, 109
    %v1961 = vpop.permute.xlu0 %1960
    %1962 = vrot.lane.b32.xlu0 %v35, 109
    %v1963 = vpop.permute.xlu0 %1962
    %vm1964 = vcmp.lt.s32.totalorder %v50, 109
    %v1965 = vsel %vm1964, %v1961, %v1963
    %v1966 = vsel %vm1964, %v1959, %v1961
    %v1967 = vsel %vm1964, %v1957, %v1959
    %v1968 = vsel %vm1964, %v1955, %v1957
    %v1969 = vsel %vm1964, %v1953, %v1955
    %v1970 = vsel %vm1964, %v1963, %v1953
    %s1971 = scalar_lea.vmem %s2, 64
    %v1972 = vld [vmem:[%s1971] sm:$0xff]
    %v1974 = vsel %vm80, %v1972, 0
    %1976 = vmatprep.subr.mxu0 0.0
    %1977 = vmatpush1.msra.mxu0 0.0
    %1978 = vmatprep.subr.mxu0 0.0
    %1979 = vmatpush1.msra.mxu0 0.0
    %1980 = vmatprep.subr.mxu0 0.0
    %1981 = vmatpush1.msra.mxu0 0.0
    %1982 = vmatprep.subr.mxu0 0.0
    %1983 = vmatpush1.msra.mxu0 0.0
    %1984 = vmatprep.subr.mxu0 0.0
    %1985 = vmatpush1.msra.mxu0 0.0
    %1986 = vmatprep.subr.mxu0 0.0
    %1987 = vmatpush1.msra.mxu0 0.0
    %1988 = vmatprep.subr.mxu0 0.0
    %1989 = vmatpush1.msra.mxu0 0.0
    %1990 = vmatprep.subr.mxu0 0.0
    %1991 = vmatpush1.msra.mxu0 0.0
    %1992 = vmatprep.subr.mxu0 0.0
    %1993 = vmatpush1.msra.mxu0 0.0
    %1994 = vmatprep.subr.mxu0 0.0
    %1995 = vmatpush1.msra.mxu0 0.0
    %1996 = vmatprep.subr.mxu0 0.0
    %1997 = vmatpush1.msra.mxu0 0.0
    %1998 = vmatprep.subr.mxu0 0.0
    %1999 = vmatpush1.msra.mxu0 0.0
    %2000 = vmatprep.subr.mxu0 0.0
    %2001 = vmatpush1.msra.mxu0 0.0
    %2002 = vmatprep.subr.mxu0 0.0
    %2003 = vmatpush1.msra.mxu0 0.0
    %2004 = vmatprep.subr.mxu0 0.0
    %2005 = vmatpush1.msra.mxu0 0.0
    %2006 = vmatprep.subr.mxu0 %v1968
    %2007 = vmatpush1.msra.mxu0 %v1969
    %2008 = vmatprep.subr.mxu0 0.0
    %2009 = vmatpush2.msra.mxu0 0.0
    %2010 = vmatprep.subr.mxu0 0.0
    %2011 = vmatpush2.msra.mxu0 0.0
    %2012 = vmatprep.subr.mxu0 0.0
    %2013 = vmatpush2.msra.mxu0 0.0
    %2014 = vmatprep.subr.mxu0 0.0
    %2015 = vmatpush2.msra.mxu0 0.0
    %2016 = vmatprep.subr.mxu0 0.0
    %2017 = vmatpush2.msra.mxu0 0.0
    %2018 = vmatprep.subr.mxu0 0.0
    %2019 = vmatpush2.msra.mxu0 0.0
    %2020 = vmatprep.subr.mxu0 0.0
    %2021 = vmatpush2.msra.mxu0 0.0
    %2022 = vmatprep.subr.mxu0 0.0
    %2023 = vmatpush2.msra.mxu0 0.0
    %2024 = vmatprep.subr.mxu0 0.0
    %2025 = vmatpush2.msra.mxu0 0.0
    %2026 = vmatprep.subr.mxu0 0.0
    %2027 = vmatpush2.msra.mxu0 0.0
    %2028 = vmatprep.subr.mxu0 0.0
    %2029 = vmatpush2.msra.mxu0 0.0
    %2030 = vmatprep.subr.mxu0 0.0
    %2031 = vmatpush2.msra.mxu0 0.0
    %2032 = vmatprep.subr.mxu0 0.0
    %2033 = vmatpush2.msra.mxu0 0.0
    %2034 = vmatprep.subr.mxu0 0.0
    %2035 = vmatpush2.msra.mxu0 0.0
    %2036 = vmatprep.subr.mxu0 0.0
    %2037 = vmatpush2.msra.mxu0 0.0
    %2038 = vmatprep.subr.mxu0 0.0
    %2039 = vmatpush2.msra.mxu0 0.0
    %2040 = vmatprep.mubr.f32.mxu0 0.0
    %2041 = vmatmul.mubr.f32.gmra.mxu0 %v1974
    %v2042 = vpop.f32.mrf.mxu0
    %v2043 = vadd.f32 0.0, %v2042
    %v2044 = vpop.f32.mrf.mxu0
    %v2045 = vadd.f32 0.0, %v2044
    %2046 = vdwg.mxu0
    %2047 = vmatprep.subr.mxu0 0.0
    %2048 = vmatpush1.msra.mxu0 0.0
    %2049 = vmatprep.subr.mxu0 0.0
    %2050 = vmatpush1.msra.mxu0 0.0
    %2051 = vmatprep.subr.mxu0 0.0
    %2052 = vmatpush1.msra.mxu0 0.0
    %2053 = vmatprep.subr.mxu0 0.0
    %2054 = vmatpush1.msra.mxu0 0.0
    %2055 = vmatprep.subr.mxu0 0.0
    %2056 = vmatpush1.msra.mxu0 0.0
    %2057 = vmatprep.subr.mxu0 0.0
    %2058 = vmatpush1.msra.mxu0 0.0
    %2059 = vmatprep.subr.mxu0 0.0
    %2060 = vmatpush1.msra.mxu0 0.0
    %2061 = vmatprep.subr.mxu0 0.0
    %2062 = vmatpush1.msra.mxu0 0.0
    %2063 = vmatprep.subr.mxu0 0.0
    %2064 = vmatpush1.msra.mxu0 0.0
    %2065 = vmatprep.subr.mxu0 0.0
    %2066 = vmatpush1.msra.mxu0 0.0
    %2067 = vmatprep.subr.mxu0 0.0
    %2068 = vmatpush1.msra.mxu0 0.0
    %2069 = vmatprep.subr.mxu0 0.0
    %2070 = vmatpush1.msra.mxu0 0.0
    %2071 = vmatprep.subr.mxu0 0.0
    %2072 = vmatpush1.msra.mxu0 0.0
    %2073 = vmatprep.subr.mxu0 0.0
    %2074 = vmatpush1.msra.mxu0 0.0
    %2075 = vmatprep.subr.mxu0 0.0
    %2076 = vmatpush1.msra.mxu0 0.0
    %2077 = vmatprep.subr.mxu0 %v1966
    %2078 = vmatpush1.msra.mxu0 %v1967
    %2079 = vmatprep.subr.mxu0 0.0
    %2080 = vmatpush2.msra.mxu0 0.0
    %2081 = vmatprep.subr.mxu0 0.0
    %2082 = vmatpush2.msra.mxu0 0.0
    %2083 = vmatprep.subr.mxu0 0.0
    %2084 = vmatpush2.msra.mxu0 0.0
    %2085 = vmatprep.subr.mxu0 0.0
    %2086 = vmatpush2.msra.mxu0 0.0
    %2087 = vmatprep.subr.mxu0 0.0
    %2088 = vmatpush2.msra.mxu0 0.0
    %2089 = vmatprep.subr.mxu0 0.0
    %2090 = vmatpush2.msra.mxu0 0.0
    %2091 = vmatprep.subr.mxu0 0.0
    %2092 = vmatpush2.msra.mxu0 0.0
    %2093 = vmatprep.subr.mxu0 0.0
    %2094 = vmatpush2.msra.mxu0 0.0
    %2095 = vmatprep.subr.mxu0 0.0
    %2096 = vmatpush2.msra.mxu0 0.0
    %2097 = vmatprep.subr.mxu0 0.0
    %2098 = vmatpush2.msra.mxu0 0.0
    %2099 = vmatprep.subr.mxu0 0.0
    %2100 = vmatpush2.msra.mxu0 0.0
    %2101 = vmatprep.subr.mxu0 0.0
    %2102 = vmatpush2.msra.mxu0 0.0
    %2103 = vmatprep.subr.mxu0 0.0
    %2104 = vmatpush2.msra.mxu0 0.0
    %2105 = vmatprep.subr.mxu0 0.0
    %2106 = vmatpush2.msra.mxu0 0.0
    %2107 = vmatprep.subr.mxu0 0.0
    %2108 = vmatpush2.msra.mxu0 0.0
    %2109 = vmatprep.subr.mxu0 0.0
    %2110 = vmatpush2.msra.mxu0 0.0
    %2111 = vmatprep.mubr.f32.mxu0 0.0
    %2112 = vmatmul.mubr.f32.gmra.mxu0 %v1974
    %v2113 = vpop.f32.mrf.mxu0
    %v2114 = vadd.f32 0.0, %v2113
    %v2115 = vpop.f32.mrf.mxu0
    %v2116 = vadd.f32 0.0, %v2115
    %2117 = vdwg.mxu0
    %2118 = vmatprep.subr.mxu0 0.0
    %2119 = vmatpush1.msra.mxu0 0.0
    %2120 = vmatprep.subr.mxu0 0.0
    %2121 = vmatpush1.msra.mxu0 0.0
    %2122 = vmatprep.subr.mxu0 0.0
    %2123 = vmatpush1.msra.mxu0 0.0
    %2124 = vmatprep.subr.mxu0 0.0
    %2125 = vmatpush1.msra.mxu0 0.0
    %2126 = vmatprep.subr.mxu0 0.0
    %2127 = vmatpush1.msra.mxu0 0.0
    %2128 = vmatprep.subr.mxu0 0.0
    %2129 = vmatpush1.msra.mxu0 0.0
    %2130 = vmatprep.subr.mxu0 0.0
    %2131 = vmatpush1.msra.mxu0 0.0
    %2132 = vmatprep.subr.mxu0 0.0
    %2133 = vmatpush1.msra.mxu0 0.0
    %2134 = vmatprep.subr.mxu0 0.0
    %2135 = vmatpush1.msra.mxu0 0.0
    %2136 = vmatprep.subr.mxu0 0.0
    %2137 = vmatpush1.msra.mxu0 0.0
    %2138 = vmatprep.subr.mxu0 0.0
    %2139 = vmatpush1.msra.mxu0 0.0
    %2140 = vmatprep.subr.mxu0 0.0
    %2141 = vmatpush1.msra.mxu0 0.0
    %2142 = vmatprep.subr.mxu0 0.0
    %2143 = vmatpush1.msra.mxu0 0.0
    %2144 = vmatprep.subr.mxu0 0.0
    %2145 = vmatpush1.msra.mxu0 0.0
    %2146 = vmatprep.subr.mxu0 0.0
    %2147 = vmatpush1.msra.mxu0 0.0
    %2148 = vmatprep.subr.mxu0 %v1970
    %2149 = vmatpush1.msra.mxu0 %v1965
    %2150 = vmatprep.subr.mxu0 0.0
    %2151 = vmatpush2.msra.mxu0 0.0
    %2152 = vmatprep.subr.mxu0 0.0
    %2153 = vmatpush2.msra.mxu0 0.0
    %2154 = vmatprep.subr.mxu0 0.0
    %2155 = vmatpush2.msra.mxu0 0.0
    %2156 = vmatprep.subr.mxu0 0.0
    %2157 = vmatpush2.msra.mxu0 0.0
    %2158 = vmatprep.subr.mxu0 0.0
    %2159 = vmatpush2.msra.mxu0 0.0
    %2160 = vmatprep.subr.mxu0 0.0
    %2161 = vmatpush2.msra.mxu0 0.0
    %2162 = vmatprep.subr.mxu0 0.0
    %2163 = vmatpush2.msra.mxu0 0.0
    %2164 = vmatprep.subr.mxu0 0.0
    %2165 = vmatpush2.msra.mxu0 0.0
    %2166 = vmatprep.subr.mxu0 0.0
    %2167 = vmatpush2.msra.mxu0 0.0
    %2168 = vmatprep.subr.mxu0 0.0
    %2169 = vmatpush2.msra.mxu0 0.0
    %2170 = vmatprep.subr.mxu0 0.0
    %2171 = vmatpush2.msra.mxu0 0.0
    %2172 = vmatprep.subr.mxu0 0.0
    %2173 = vmatpush2.msra.mxu0 0.0
    %2174 = vmatprep.subr.mxu0 0.0
    %2175 = vmatpush2.msra.mxu0 0.0
    %2176 = vmatprep.subr.mxu0 0.0
    %2177 = vmatpush2.msra.mxu0 0.0
    %2178 = vmatprep.subr.mxu0 0.0
    %2179 = vmatpush2.msra.mxu0 0.0
    %2180 = vmatprep.subr.mxu0 0.0
    %2181 = vmatpush2.msra.mxu0 0.0
    %2182 = vmatprep.mubr.f32.mxu0 0.0
    %2183 = vmatmul.mubr.f32.gmra.mxu0 %v1974
    %v2184 = vpop.f32.mrf.mxu0
    %v2185 = vadd.f32 0.0, %v2184
    %v2186 = vpop.f32.mrf.mxu0
    %v2187 = vadd.f32 0.0, %v2186
    %2188 = vdwg.mxu0
    %v2189 = vadd.f32 %v1946, %v2043
    %v2190 = vadd.f32 %v1947, %v2045
    %v2191 = vadd.f32 %v1948, %v2114
    %v2192 = vadd.f32 %v1949, %v2116
    %v2193 = vadd.f32 %v1950, %v2185
    %v2194 = vadd.f32 %v1951, %v2187
    %v2195 = vld [vmem:[%s3] sm:$0xff]
    %v2196 = vld [vmem:[%s4] sm:$0xff]
    %v2198 = vlaneseq
    %v2199 = vshrl.u32 %v2198, 7
    %v2200 = vsub.s32 0, %v2199
    %v2201 = vrot.slane %v36, %v2200
    %v2202 = vlaneseq
    %v2203 = vshrl.u32 %v2202, 7
    %v2204 = vsub.s32 1, %v2203
    %v2205 = vrot.slane %v36, %v2204
    %v2206 = vlaneseq
    %v2207 = vshrl.u32 %v2206, 7
    %v2208 = vsub.s32 2, %v2207
    %v2209 = vrot.slane %v36, %v2208
    %v2210 = vlaneseq
    %v2211 = vshrl.u32 %v2210, 7
    %v2212 = vsub.s32 3, %v2211
    %v2213 = vrot.slane %v36, %v2212
    %v2214 = vlaneseq
    %v2215 = vshrl.u32 %v2214, 7
    %v2216 = vsub.s32 4, %v2215
    %v2217 = vrot.slane %v36, %v2216
    %v2218 = vlaneseq
    %v2219 = vshrl.u32 %v2218, 7
    %v2220 = vsub.s32 5, %v2219
    %v2221 = vrot.slane %v36, %v2220
    %v2228 = vmul.f32 %v2189, %v2201
    %v2229 = vmul.f32 %v2190, %v2205
    %v2230 = vmul.f32 %v2191, %v2209
    %v2231 = vmul.f32 %v2192, %v2213
    %v2232 = vmul.f32 %v2193, %v2217
    %v2233 = vmul.f32 %v2194, %v2221
    %v2234 = vadd.f32 %v2228, %v2229
    %v2235 = vadd.f32 %v2234, %v2230
    %v2236 = vadd.f32 %v2235, %v2231
    %v2237 = vadd.f32 %v2236, %v2232
    %v2238 = vadd.f32 %v2237, %v2233
    %2239 = vadd.xlane.f32.xlu0 %v2238
    %v2240 = vpop.xlane.xlu0 %2239
    %v2241 = vmul.f32 %v2240, 0.001953125
    %v2242 = vsub.f32 %v2189, %v2241
    %v2243 = vsub.f32 %v2190, %v2241
    %v2244 = vsub.f32 %v2191, %v2241
    %v2245 = vsub.f32 %v2192, %v2241
    %v2246 = vsub.f32 %v2193, %v2241
    %v2247 = vsub.f32 %v2194, %v2241
    %v2248 = vmul.f32 %v2242, %v2201
    %v2249 = vmul.f32 %v2243, %v2205
    %v2250 = vmul.f32 %v2244, %v2209
    %v2251 = vmul.f32 %v2245, %v2213
    %v2252 = vmul.f32 %v2246, %v2217
    %v2253 = vmul.f32 %v2247, %v2221
    %v2254 = vmul.f32 %v2248, %v2248
    %v2255 = vmul.f32 %v2249, %v2249
    %v2256 = vmul.f32 %v2250, %v2250
    %v2257 = vmul.f32 %v2251, %v2251
    %v2258 = vmul.f32 %v2252, %v2252
    %v2259 = vmul.f32 %v2253, %v2253
    %v2260 = vadd.f32 %v2254, %v2255
    %v2261 = vadd.f32 %v2260, %v2256
    %v2262 = vadd.f32 %v2261, %v2257
    %v2263 = vadd.f32 %v2262, %v2258
    %v2264 = vadd.f32 %v2263, %v2259
    %2265 = vadd.xlane.f32.xlu0 %v2264
    %v2266 = vpop.xlane.xlu0 %2265
    %v2267 = vmul.f32 %v2266, 0.001953125
    %v2268 = vadd.f32 %v2267, 1e-05
    %v2269 = vrsqrt.pop %v2268
    %v2270 = vmul.f32 %v2195, %v2269
    %2272 = vset.pattern.permute.xlu0 0
    %2273 = vperm.xlu0 %2272, %v2270
    %v2274 = vpop.permute.xlu0 %2273
    %v2276 = vmul.f32 %v2248, %v2274
    %v2277 = vmul.f32 %v2249, %v2274
    %v2278 = vmul.f32 %v2250, %v2274
    %v2279 = vmul.f32 %v2251, %v2274
    %v2280 = vmul.f32 %v2252, %v2274
    %v2281 = vmul.f32 %v2253, %v2274
    %2283 = vset.pattern.permute.xlu0 0
    %2284 = vperm.xlu0 %2283, %v2196
    %v2285 = vpop.permute.xlu0 %2284
    %v2287 = vmul.f32 %v2285, %v2201
    %v2288 = vmul.f32 %v2285, %v2205
    %v2289 = vmul.f32 %v2285, %v2209
    %v2290 = vmul.f32 %v2285, %v2213
    %v2291 = vmul.f32 %v2285, %v2217
    %v2292 = vmul.f32 %v2285, %v2221
    %v2293 = vadd.f32 %v2276, %v2287
    %v2294 = vadd.f32 %v2277, %v2288
    %v2295 = vadd.f32 %v2278, %v2289
    %v2296 = vadd.f32 %v2279, %v2290
    %v2297 = vadd.f32 %v2280, %v2291
    %v2298 = vadd.f32 %v2281, %v2292
    %v2299 = vmax.f32 %v2293, 0.0
    %v2300 = vmax.f32 %v2294, 0.0
    %v2301 = vmax.f32 %v2295, 0.0
    %v2302 = vmax.f32 %v2296, 0.0
    %v2303 = vmax.f32 %v2297, 0.0
    %v2304 = vmax.f32 %v2298, 0.0
    %2305 = vrot.lane.b32.xlu0 %v2299, 19
    %v2306 = vpop.permute.xlu0 %2305
    %2307 = vrot.lane.b32.xlu0 %v2300, 19
    %v2308 = vpop.permute.xlu0 %2307
    %2309 = vrot.lane.b32.xlu0 %v2301, 19
    %v2310 = vpop.permute.xlu0 %2309
    %2311 = vrot.lane.b32.xlu0 %v2302, 19
    %v2312 = vpop.permute.xlu0 %2311
    %2313 = vrot.lane.b32.xlu0 %v2303, 19
    %v2314 = vpop.permute.xlu0 %2313
    %2315 = vrot.lane.b32.xlu0 %v2304, 19
    %v2316 = vpop.permute.xlu0 %2315
    %v2317 = vsel %vm51, %v2314, %v2316
    %v2318 = vsel %vm51, %v2312, %v2314
    %v2319 = vsel %vm51, %v2310, %v2312
    %v2320 = vsel %vm51, %v2308, %v2310
    %v2321 = vsel %vm51, %v2306, %v2308
    %v2322 = vsel %vm51, %v2316, %v2306
    %v2323 = vld [vmem:[%s5] sm:$0xff]
    %2324 = vrot.lane.b32.xlu0 %v2299, 18
    %v2325 = vpop.permute.xlu0 %2324
    %2326 = vrot.lane.b32.xlu0 %v2300, 18
    %v2327 = vpop.permute.xlu0 %2326
    %2328 = vrot.lane.b32.xlu0 %v2301, 18
    %v2329 = vpop.permute.xlu0 %2328
    %2330 = vrot.lane.b32.xlu0 %v2302, 18
    %v2331 = vpop.permute.xlu0 %2330
    %2332 = vrot.lane.b32.xlu0 %v2303, 18
    %v2333 = vpop.permute.xlu0 %2332
    %2334 = vrot.lane.b32.xlu0 %v2304, 18
    %v2335 = vpop.permute.xlu0 %2334
    %v2336 = vsel %vm71, %v2333, %v2335
    %v2337 = vsel %vm71, %v2331, %v2333
    %v2338 = vsel %vm71, %v2329, %v2331
    %v2339 = vsel %vm71, %v2327, %v2329
    %v2340 = vsel %vm71, %v2325, %v2327
    %v2341 = vsel %vm71, %v2335, %v2325
    %s2342 = scalar_lea.vmem %s5, 8
    %v2343 = vld [vmem:[%s2342] sm:$0xff]
    %v2345 = vsel %vm80, %v2343, 0
    %2347 = vmatprep.subr.mxu0 0.0
    %2348 = vmatpush1.msra.mxu0 0.0
    %2349 = vmatprep.subr.mxu0 0.0
    %2350 = vmatpush1.msra.mxu0 0.0
    %2351 = vmatprep.subr.mxu0 0.0
    %2352 = vmatpush1.msra.mxu0 0.0
    %2353 = vmatprep.subr.mxu0 0.0
    %2354 = vmatpush1.msra.mxu0 0.0
    %2355 = vmatprep.subr.mxu0 0.0
    %2356 = vmatpush1.msra.mxu0 0.0
    %2357 = vmatprep.subr.mxu0 0.0
    %2358 = vmatpush1.msra.mxu0 0.0
    %2359 = vmatprep.subr.mxu0 0.0
    %2360 = vmatpush1.msra.mxu0 0.0
    %2361 = vmatprep.subr.mxu0 0.0
    %2362 = vmatpush1.msra.mxu0 0.0
    %2363 = vmatprep.subr.mxu0 0.0
    %2364 = vmatpush1.msra.mxu0 0.0
    %2365 = vmatprep.subr.mxu0 0.0
    %2366 = vmatpush1.msra.mxu0 0.0
    %2367 = vmatprep.subr.mxu0 0.0
    %2368 = vmatpush1.msra.mxu0 0.0
    %2369 = vmatprep.subr.mxu0 0.0
    %2370 = vmatpush1.msra.mxu0 0.0
    %2371 = vmatprep.subr.mxu0 0.0
    %2372 = vmatpush1.msra.mxu0 0.0
    %2373 = vmatprep.subr.mxu0 0.0
    %2374 = vmatpush1.msra.mxu0 0.0
    %2375 = vmatprep.subr.mxu0 0.0
    %2376 = vmatpush1.msra.mxu0 0.0
    %2377 = vmatprep.subr.mxu0 %v2340
    %2378 = vmatpush1.msra.mxu0 %v2341
    %2379 = vmatprep.subr.mxu0 0.0
    %2380 = vmatpush2.msra.mxu0 0.0
    %2381 = vmatprep.subr.mxu0 0.0
    %2382 = vmatpush2.msra.mxu0 0.0
    %2383 = vmatprep.subr.mxu0 0.0
    %2384 = vmatpush2.msra.mxu0 0.0
    %2385 = vmatprep.subr.mxu0 0.0
    %2386 = vmatpush2.msra.mxu0 0.0
    %2387 = vmatprep.subr.mxu0 0.0
    %2388 = vmatpush2.msra.mxu0 0.0
    %2389 = vmatprep.subr.mxu0 0.0
    %2390 = vmatpush2.msra.mxu0 0.0
    %2391 = vmatprep.subr.mxu0 0.0
    %2392 = vmatpush2.msra.mxu0 0.0
    %2393 = vmatprep.subr.mxu0 0.0
    %2394 = vmatpush2.msra.mxu0 0.0
    %2395 = vmatprep.subr.mxu0 0.0
    %2396 = vmatpush2.msra.mxu0 0.0
    %2397 = vmatprep.subr.mxu0 0.0
    %2398 = vmatpush2.msra.mxu0 0.0
    %2399 = vmatprep.subr.mxu0 0.0
    %2400 = vmatpush2.msra.mxu0 0.0
    %2401 = vmatprep.subr.mxu0 0.0
    %2402 = vmatpush2.msra.mxu0 0.0
    %2403 = vmatprep.subr.mxu0 0.0
    %2404 = vmatpush2.msra.mxu0 0.0
    %2405 = vmatprep.subr.mxu0 0.0
    %2406 = vmatpush2.msra.mxu0 0.0
    %2407 = vmatprep.subr.mxu0 0.0
    %2408 = vmatpush2.msra.mxu0 0.0
    %2409 = vmatprep.subr.mxu0 0.0
    %2410 = vmatpush2.msra.mxu0 0.0
    %2411 = vmatprep.mubr.f32.mxu0 0.0
    %2412 = vmatmul.mubr.f32.gmra.mxu0 %v2345
    %v2413 = vpop.f32.mrf.mxu0
    %v2414 = vadd.f32 0.0, %v2413
    %v2415 = vpop.f32.mrf.mxu0
    %v2416 = vadd.f32 0.0, %v2415
    %2417 = vdwg.mxu0
    %2418 = vmatprep.subr.mxu0 0.0
    %2419 = vmatpush1.msra.mxu0 0.0
    %2420 = vmatprep.subr.mxu0 0.0
    %2421 = vmatpush1.msra.mxu0 0.0
    %2422 = vmatprep.subr.mxu0 0.0
    %2423 = vmatpush1.msra.mxu0 0.0
    %2424 = vmatprep.subr.mxu0 0.0
    %2425 = vmatpush1.msra.mxu0 0.0
    %2426 = vmatprep.subr.mxu0 0.0
    %2427 = vmatpush1.msra.mxu0 0.0
    %2428 = vmatprep.subr.mxu0 0.0
    %2429 = vmatpush1.msra.mxu0 0.0
    %2430 = vmatprep.subr.mxu0 0.0
    %2431 = vmatpush1.msra.mxu0 0.0
    %2432 = vmatprep.subr.mxu0 0.0
    %2433 = vmatpush1.msra.mxu0 0.0
    %2434 = vmatprep.subr.mxu0 0.0
    %2435 = vmatpush1.msra.mxu0 0.0
    %2436 = vmatprep.subr.mxu0 0.0
    %2437 = vmatpush1.msra.mxu0 0.0
    %2438 = vmatprep.subr.mxu0 0.0
    %2439 = vmatpush1.msra.mxu0 0.0
    %2440 = vmatprep.subr.mxu0 0.0
    %2441 = vmatpush1.msra.mxu0 0.0
    %2442 = vmatprep.subr.mxu0 0.0
    %2443 = vmatpush1.msra.mxu0 0.0
    %2444 = vmatprep.subr.mxu0 0.0
    %2445 = vmatpush1.msra.mxu0 0.0
    %2446 = vmatprep.subr.mxu0 0.0
    %2447 = vmatpush1.msra.mxu0 0.0
    %2448 = vmatprep.subr.mxu0 %v2338
    %2449 = vmatpush1.msra.mxu0 %v2339
    %2450 = vmatprep.subr.mxu0 0.0
    %2451 = vmatpush2.msra.mxu0 0.0
    %2452 = vmatprep.subr.mxu0 0.0
    %2453 = vmatpush2.msra.mxu0 0.0
    %2454 = vmatprep.subr.mxu0 0.0
    %2455 = vmatpush2.msra.mxu0 0.0
    %2456 = vmatprep.subr.mxu0 0.0
    %2457 = vmatpush2.msra.mxu0 0.0
    %2458 = vmatprep.subr.mxu0 0.0
    %2459 = vmatpush2.msra.mxu0 0.0
    %2460 = vmatprep.subr.mxu0 0.0
    %2461 = vmatpush2.msra.mxu0 0.0
    %2462 = vmatprep.subr.mxu0 0.0
    %2463 = vmatpush2.msra.mxu0 0.0
    %2464 = vmatprep.subr.mxu0 0.0
    %2465 = vmatpush2.msra.mxu0 0.0
    %2466 = vmatprep.subr.mxu0 0.0
    %2467 = vmatpush2.msra.mxu0 0.0
    %2468 = vmatprep.subr.mxu0 0.0
    %2469 = vmatpush2.msra.mxu0 0.0
    %2470 = vmatprep.subr.mxu0 0.0
    %2471 = vmatpush2.msra.mxu0 0.0
    %2472 = vmatprep.subr.mxu0 0.0
    %2473 = vmatpush2.msra.mxu0 0.0
    %2474 = vmatprep.subr.mxu0 0.0
    %2475 = vmatpush2.msra.mxu0 0.0
    %2476 = vmatprep.subr.mxu0 0.0
    %2477 = vmatpush2.msra.mxu0 0.0
    %2478 = vmatprep.subr.mxu0 0.0
    %2479 = vmatpush2.msra.mxu0 0.0
    %2480 = vmatprep.subr.mxu0 0.0
    %2481 = vmatpush2.msra.mxu0 0.0
    %2482 = vmatprep.mubr.f32.mxu0 0.0
    %2483 = vmatmul.mubr.f32.gmra.mxu0 %v2345
    %v2484 = vpop.f32.mrf.mxu0
    %v2485 = vadd.f32 0.0, %v2484
    %v2486 = vpop.f32.mrf.mxu0
    %v2487 = vadd.f32 0.0, %v2486
    %2488 = vdwg.mxu0
    %2489 = vmatprep.subr.mxu0 0.0
    %2490 = vmatpush1.msra.mxu0 0.0
    %2491 = vmatprep.subr.mxu0 0.0
    %2492 = vmatpush1.msra.mxu0 0.0
    %2493 = vmatprep.subr.mxu0 0.0
    %2494 = vmatpush1.msra.mxu0 0.0
    %2495 = vmatprep.subr.mxu0 0.0
    %2496 = vmatpush1.msra.mxu0 0.0
    %2497 = vmatprep.subr.mxu0 0.0
    %2498 = vmatpush1.msra.mxu0 0.0
    %2499 = vmatprep.subr.mxu0 0.0
    %2500 = vmatpush1.msra.mxu0 0.0
    %2501 = vmatprep.subr.mxu0 0.0
    %2502 = vmatpush1.msra.mxu0 0.0
    %2503 = vmatprep.subr.mxu0 0.0
    %2504 = vmatpush1.msra.mxu0 0.0
    %2505 = vmatprep.subr.mxu0 0.0
    %2506 = vmatpush1.msra.mxu0 0.0
    %2507 = vmatprep.subr.mxu0 0.0
    %2508 = vmatpush1.msra.mxu0 0.0
    %2509 = vmatprep.subr.mxu0 0.0
    %2510 = vmatpush1.msra.mxu0 0.0
    %2511 = vmatprep.subr.mxu0 0.0
    %2512 = vmatpush1.msra.mxu0 0.0
    %2513 = vmatprep.subr.mxu0 0.0
    %2514 = vmatpush1.msra.mxu0 0.0
    %2515 = vmatprep.subr.mxu0 0.0
    %2516 = vmatpush1.msra.mxu0 0.0
    %2517 = vmatprep.subr.mxu0 0.0
    %2518 = vmatpush1.msra.mxu0 0.0
    %2519 = vmatprep.subr.mxu0 %v2336
    %2520 = vmatpush1.msra.mxu0 %v2337
    %2521 = vmatprep.subr.mxu0 0.0
    %2522 = vmatpush2.msra.mxu0 0.0
    %2523 = vmatprep.subr.mxu0 0.0
    %2524 = vmatpush2.msra.mxu0 0.0
    %2525 = vmatprep.subr.mxu0 0.0
    %2526 = vmatpush2.msra.mxu0 0.0
    %2527 = vmatprep.subr.mxu0 0.0
    %2528 = vmatpush2.msra.mxu0 0.0
    %2529 = vmatprep.subr.mxu0 0.0
    %2530 = vmatpush2.msra.mxu0 0.0
    %2531 = vmatprep.subr.mxu0 0.0
    %2532 = vmatpush2.msra.mxu0 0.0
    %2533 = vmatprep.subr.mxu0 0.0
    %2534 = vmatpush2.msra.mxu0 0.0
    %2535 = vmatprep.subr.mxu0 0.0
    %2536 = vmatpush2.msra.mxu0 0.0
    %2537 = vmatprep.subr.mxu0 0.0
    %2538 = vmatpush2.msra.mxu0 0.0
    %2539 = vmatprep.subr.mxu0 0.0
    %2540 = vmatpush2.msra.mxu0 0.0
    %2541 = vmatprep.subr.mxu0 0.0
    %2542 = vmatpush2.msra.mxu0 0.0
    %2543 = vmatprep.subr.mxu0 0.0
    %2544 = vmatpush2.msra.mxu0 0.0
    %2545 = vmatprep.subr.mxu0 0.0
    %2546 = vmatpush2.msra.mxu0 0.0
    %2547 = vmatprep.subr.mxu0 0.0
    %2548 = vmatpush2.msra.mxu0 0.0
    %2549 = vmatprep.subr.mxu0 0.0
    %2550 = vmatpush2.msra.mxu0 0.0
    %2551 = vmatprep.subr.mxu0 0.0
    %2552 = vmatpush2.msra.mxu0 0.0
    %2553 = vmatprep.mubr.f32.mxu0 0.0
    %2554 = vmatmul.mubr.f32.gmra.mxu0 %v2345
    %v2555 = vpop.f32.mrf.mxu0
    %v2556 = vadd.f32 0.0, %v2555
    %v2557 = vpop.f32.mrf.mxu0
    %v2558 = vadd.f32 0.0, %v2557
    %2559 = vdwg.mxu0
    %v2561 = vsel %vm80, %v2323, 0
    %2563 = vmatprep.subr.mxu0 0.0
    %2564 = vmatpush1.msra.mxu0 0.0
    %2565 = vmatprep.subr.mxu0 0.0
    %2566 = vmatpush1.msra.mxu0 0.0
    %2567 = vmatprep.subr.mxu0 0.0
    %2568 = vmatpush1.msra.mxu0 0.0
    %2569 = vmatprep.subr.mxu0 0.0
    %2570 = vmatpush1.msra.mxu0 0.0
    %2571 = vmatprep.subr.mxu0 0.0
    %2572 = vmatpush1.msra.mxu0 0.0
    %2573 = vmatprep.subr.mxu0 0.0
    %2574 = vmatpush1.msra.mxu0 0.0
    %2575 = vmatprep.subr.mxu0 0.0
    %2576 = vmatpush1.msra.mxu0 0.0
    %2577 = vmatprep.subr.mxu0 0.0
    %2578 = vmatpush1.msra.mxu0 0.0
    %2579 = vmatprep.subr.mxu0 0.0
    %2580 = vmatpush1.msra.mxu0 0.0
    %2581 = vmatprep.subr.mxu0 0.0
    %2582 = vmatpush1.msra.mxu0 0.0
    %2583 = vmatprep.subr.mxu0 0.0
    %2584 = vmatpush1.msra.mxu0 0.0
    %2585 = vmatprep.subr.mxu0 0.0
    %2586 = vmatpush1.msra.mxu0 0.0
    %2587 = vmatprep.subr.mxu0 0.0
    %2588 = vmatpush1.msra.mxu0 0.0
    %2589 = vmatprep.subr.mxu0 0.0
    %2590 = vmatpush1.msra.mxu0 0.0
    %2591 = vmatprep.subr.mxu0 0.0
    %2592 = vmatpush1.msra.mxu0 0.0
    %2593 = vmatprep.subr.mxu0 %v2321
    %2594 = vmatpush1.msra.mxu0 %v2322
    %2595 = vmatprep.subr.mxu0 0.0
    %2596 = vmatpush2.msra.mxu0 0.0
    %2597 = vmatprep.subr.mxu0 0.0
    %2598 = vmatpush2.msra.mxu0 0.0
    %2599 = vmatprep.subr.mxu0 0.0
    %2600 = vmatpush2.msra.mxu0 0.0
    %2601 = vmatprep.subr.mxu0 0.0
    %2602 = vmatpush2.msra.mxu0 0.0
    %2603 = vmatprep.subr.mxu0 0.0
    %2604 = vmatpush2.msra.mxu0 0.0
    %2605 = vmatprep.subr.mxu0 0.0
    %2606 = vmatpush2.msra.mxu0 0.0
    %2607 = vmatprep.subr.mxu0 0.0
    %2608 = vmatpush2.msra.mxu0 0.0
    %2609 = vmatprep.subr.mxu0 0.0
    %2610 = vmatpush2.msra.mxu0 0.0
    %2611 = vmatprep.subr.mxu0 0.0
    %2612 = vmatpush2.msra.mxu0 0.0
    %2613 = vmatprep.subr.mxu0 0.0
    %2614 = vmatpush2.msra.mxu0 0.0
    %2615 = vmatprep.subr.mxu0 0.0
    %2616 = vmatpush2.msra.mxu0 0.0
    %2617 = vmatprep.subr.mxu0 0.0
    %2618 = vmatpush2.msra.mxu0 0.0
    %2619 = vmatprep.subr.mxu0 0.0
    %2620 = vmatpush2.msra.mxu0 0.0
    %2621 = vmatprep.subr.mxu0 0.0
    %2622 = vmatpush2.msra.mxu0 0.0
    %2623 = vmatprep.subr.mxu0 0.0
    %2624 = vmatpush2.msra.mxu0 0.0
    %2625 = vmatprep.subr.mxu0 0.0
    %2626 = vmatpush2.msra.mxu0 0.0
    %2627 = vmatprep.mubr.f32.mxu0 0.0
    %2628 = vmatmul.mubr.f32.gmra.mxu0 %v2561
    %v2629 = vpop.f32.mrf.mxu0
    %v2630 = vadd.f32 %v2414, %v2629
    %v2631 = vpop.f32.mrf.mxu0
    %v2632 = vadd.f32 %v2416, %v2631
    %2633 = vdwg.mxu0
    %2634 = vmatprep.subr.mxu0 0.0
    %2635 = vmatpush1.msra.mxu0 0.0
    %2636 = vmatprep.subr.mxu0 0.0
    %2637 = vmatpush1.msra.mxu0 0.0
    %2638 = vmatprep.subr.mxu0 0.0
    %2639 = vmatpush1.msra.mxu0 0.0
    %2640 = vmatprep.subr.mxu0 0.0
    %2641 = vmatpush1.msra.mxu0 0.0
    %2642 = vmatprep.subr.mxu0 0.0
    %2643 = vmatpush1.msra.mxu0 0.0
    %2644 = vmatprep.subr.mxu0 0.0
    %2645 = vmatpush1.msra.mxu0 0.0
    %2646 = vmatprep.subr.mxu0 0.0
    %2647 = vmatpush1.msra.mxu0 0.0
    %2648 = vmatprep.subr.mxu0 0.0
    %2649 = vmatpush1.msra.mxu0 0.0
    %2650 = vmatprep.subr.mxu0 0.0
    %2651 = vmatpush1.msra.mxu0 0.0
    %2652 = vmatprep.subr.mxu0 0.0
    %2653 = vmatpush1.msra.mxu0 0.0
    %2654 = vmatprep.subr.mxu0 0.0
    %2655 = vmatpush1.msra.mxu0 0.0
    %2656 = vmatprep.subr.mxu0 0.0
    %2657 = vmatpush1.msra.mxu0 0.0
    %2658 = vmatprep.subr.mxu0 0.0
    %2659 = vmatpush1.msra.mxu0 0.0
    %2660 = vmatprep.subr.mxu0 0.0
    %2661 = vmatpush1.msra.mxu0 0.0
    %2662 = vmatprep.subr.mxu0 0.0
    %2663 = vmatpush1.msra.mxu0 0.0
    %2664 = vmatprep.subr.mxu0 %v2319
    %2665 = vmatpush1.msra.mxu0 %v2320
    %2666 = vmatprep.subr.mxu0 0.0
    %2667 = vmatpush2.msra.mxu0 0.0
    %2668 = vmatprep.subr.mxu0 0.0
    %2669 = vmatpush2.msra.mxu0 0.0
    %2670 = vmatprep.subr.mxu0 0.0
    %2671 = vmatpush2.msra.mxu0 0.0
    %2672 = vmatprep.subr.mxu0 0.0
    %2673 = vmatpush2.msra.mxu0 0.0
    %2674 = vmatprep.subr.mxu0 0.0
    %2675 = vmatpush2.msra.mxu0 0.0
    %2676 = vmatprep.subr.mxu0 0.0
    %2677 = vmatpush2.msra.mxu0 0.0
    %2678 = vmatprep.subr.mxu0 0.0
    %2679 = vmatpush2.msra.mxu0 0.0
    %2680 = vmatprep.subr.mxu0 0.0
    %2681 = vmatpush2.msra.mxu0 0.0
    %2682 = vmatprep.subr.mxu0 0.0
    %2683 = vmatpush2.msra.mxu0 0.0
    %2684 = vmatprep.subr.mxu0 0.0
    %2685 = vmatpush2.msra.mxu0 0.0
    %2686 = vmatprep.subr.mxu0 0.0
    %2687 = vmatpush2.msra.mxu0 0.0
    %2688 = vmatprep.subr.mxu0 0.0
    %2689 = vmatpush2.msra.mxu0 0.0
    %2690 = vmatprep.subr.mxu0 0.0
    %2691 = vmatpush2.msra.mxu0 0.0
    %2692 = vmatprep.subr.mxu0 0.0
    %2693 = vmatpush2.msra.mxu0 0.0
    %2694 = vmatprep.subr.mxu0 0.0
    %2695 = vmatpush2.msra.mxu0 0.0
    %2696 = vmatprep.subr.mxu0 0.0
    %2697 = vmatpush2.msra.mxu0 0.0
    %2698 = vmatprep.mubr.f32.mxu0 0.0
    %2699 = vmatmul.mubr.f32.gmra.mxu0 %v2561
    %v2700 = vpop.f32.mrf.mxu0
    %v2701 = vadd.f32 %v2485, %v2700
    %v2702 = vpop.f32.mrf.mxu0
    %v2703 = vadd.f32 %v2487, %v2702
    %2704 = vdwg.mxu0
    %2705 = vmatprep.subr.mxu0 0.0
    %2706 = vmatpush1.msra.mxu0 0.0
    %2707 = vmatprep.subr.mxu0 0.0
    %2708 = vmatpush1.msra.mxu0 0.0
    %2709 = vmatprep.subr.mxu0 0.0
    %2710 = vmatpush1.msra.mxu0 0.0
    %2711 = vmatprep.subr.mxu0 0.0
    %2712 = vmatpush1.msra.mxu0 0.0
    %2713 = vmatprep.subr.mxu0 0.0
    %2714 = vmatpush1.msra.mxu0 0.0
    %2715 = vmatprep.subr.mxu0 0.0
    %2716 = vmatpush1.msra.mxu0 0.0
    %2717 = vmatprep.subr.mxu0 0.0
    %2718 = vmatpush1.msra.mxu0 0.0
    %2719 = vmatprep.subr.mxu0 0.0
    %2720 = vmatpush1.msra.mxu0 0.0
    %2721 = vmatprep.subr.mxu0 0.0
    %2722 = vmatpush1.msra.mxu0 0.0
    %2723 = vmatprep.subr.mxu0 0.0
    %2724 = vmatpush1.msra.mxu0 0.0
    %2725 = vmatprep.subr.mxu0 0.0
    %2726 = vmatpush1.msra.mxu0 0.0
    %2727 = vmatprep.subr.mxu0 0.0
    %2728 = vmatpush1.msra.mxu0 0.0
    %2729 = vmatprep.subr.mxu0 0.0
    %2730 = vmatpush1.msra.mxu0 0.0
    %2731 = vmatprep.subr.mxu0 0.0
    %2732 = vmatpush1.msra.mxu0 0.0
    %2733 = vmatprep.subr.mxu0 0.0
    %2734 = vmatpush1.msra.mxu0 0.0
    %2735 = vmatprep.subr.mxu0 %v2317
    %2736 = vmatpush1.msra.mxu0 %v2318
    %2737 = vmatprep.subr.mxu0 0.0
    %2738 = vmatpush2.msra.mxu0 0.0
    %2739 = vmatprep.subr.mxu0 0.0
    %2740 = vmatpush2.msra.mxu0 0.0
    %2741 = vmatprep.subr.mxu0 0.0
    %2742 = vmatpush2.msra.mxu0 0.0
    %2743 = vmatprep.subr.mxu0 0.0
    %2744 = vmatpush2.msra.mxu0 0.0
    %2745 = vmatprep.subr.mxu0 0.0
    %2746 = vmatpush2.msra.mxu0 0.0
    %2747 = vmatprep.subr.mxu0 0.0
    %2748 = vmatpush2.msra.mxu0 0.0
    %2749 = vmatprep.subr.mxu0 0.0
    %2750 = vmatpush2.msra.mxu0 0.0
    %2751 = vmatprep.subr.mxu0 0.0
    %2752 = vmatpush2.msra.mxu0 0.0
    %2753 = vmatprep.subr.mxu0 0.0
    %2754 = vmatpush2.msra.mxu0 0.0
    %2755 = vmatprep.subr.mxu0 0.0
    %2756 = vmatpush2.msra.mxu0 0.0
    %2757 = vmatprep.subr.mxu0 0.0
    %2758 = vmatpush2.msra.mxu0 0.0
    %2759 = vmatprep.subr.mxu0 0.0
    %2760 = vmatpush2.msra.mxu0 0.0
    %2761 = vmatprep.subr.mxu0 0.0
    %2762 = vmatpush2.msra.mxu0 0.0
    %2763 = vmatprep.subr.mxu0 0.0
    %2764 = vmatpush2.msra.mxu0 0.0
    %2765 = vmatprep.subr.mxu0 0.0
    %2766 = vmatpush2.msra.mxu0 0.0
    %2767 = vmatprep.subr.mxu0 0.0
    %2768 = vmatpush2.msra.mxu0 0.0
    %2769 = vmatprep.mubr.f32.mxu0 0.0
    %2770 = vmatmul.mubr.f32.gmra.mxu0 %v2561
    %v2771 = vpop.f32.mrf.mxu0
    %v2772 = vadd.f32 %v2556, %v2771
    %v2773 = vpop.f32.mrf.mxu0
    %v2774 = vadd.f32 %v2558, %v2773
    %2775 = vdwg.mxu0
    %2776 = vrot.lane.b32.xlu0 %v2299, 17
    %v2777 = vpop.permute.xlu0 %2776
    %2778 = vrot.lane.b32.xlu0 %v2300, 17
    %v2779 = vpop.permute.xlu0 %2778
    %2780 = vrot.lane.b32.xlu0 %v2301, 17
    %v2781 = vpop.permute.xlu0 %2780
    %2782 = vrot.lane.b32.xlu0 %v2302, 17
    %v2783 = vpop.permute.xlu0 %2782
    %2784 = vrot.lane.b32.xlu0 %v2303, 17
    %v2785 = vpop.permute.xlu0 %2784
    %2786 = vrot.lane.b32.xlu0 %v2304, 17
    %v2787 = vpop.permute.xlu0 %2786
    %v2788 = vsel %vm525, %v2785, %v2787
    %v2789 = vsel %vm525, %v2783, %v2785
    %v2790 = vsel %vm525, %v2781, %v2783
    %v2791 = vsel %vm525, %v2779, %v2781
    %v2792 = vsel %vm525, %v2777, %v2779
    %v2793 = vsel %vm525, %v2787, %v2777
    %s2794 = scalar_lea.vmem %s5, 16
    %v2795 = vld [vmem:[%s2794] sm:$0xff]
    %v2797 = vsel %vm80, %v2795, 0
    %2799 = vmatprep.subr.mxu0 0.0
    %2800 = vmatpush1.msra.mxu0 0.0
    %2801 = vmatprep.subr.mxu0 0.0
    %2802 = vmatpush1.msra.mxu0 0.0
    %2803 = vmatprep.subr.mxu0 0.0
    %2804 = vmatpush1.msra.mxu0 0.0
    %2805 = vmatprep.subr.mxu0 0.0
    %2806 = vmatpush1.msra.mxu0 0.0
    %2807 = vmatprep.subr.mxu0 0.0
    %2808 = vmatpush1.msra.mxu0 0.0
    %2809 = vmatprep.subr.mxu0 0.0
    %2810 = vmatpush1.msra.mxu0 0.0
    %2811 = vmatprep.subr.mxu0 0.0
    %2812 = vmatpush1.msra.mxu0 0.0
    %2813 = vmatprep.subr.mxu0 0.0
    %2814 = vmatpush1.msra.mxu0 0.0
    %2815 = vmatprep.subr.mxu0 0.0
    %2816 = vmatpush1.msra.mxu0 0.0
    %2817 = vmatprep.subr.mxu0 0.0
    %2818 = vmatpush1.msra.mxu0 0.0
    %2819 = vmatprep.subr.mxu0 0.0
    %2820 = vmatpush1.msra.mxu0 0.0
    %2821 = vmatprep.subr.mxu0 0.0
    %2822 = vmatpush1.msra.mxu0 0.0
    %2823 = vmatprep.subr.mxu0 0.0
    %2824 = vmatpush1.msra.mxu0 0.0
    %2825 = vmatprep.subr.mxu0 0.0
    %2826 = vmatpush1.msra.mxu0 0.0
    %2827 = vmatprep.subr.mxu0 0.0
    %2828 = vmatpush1.msra.mxu0 0.0
    %2829 = vmatprep.subr.mxu0 %v2792
    %2830 = vmatpush1.msra.mxu0 %v2793
    %2831 = vmatprep.subr.mxu0 0.0
    %2832 = vmatpush2.msra.mxu0 0.0
    %2833 = vmatprep.subr.mxu0 0.0
    %2834 = vmatpush2.msra.mxu0 0.0
    %2835 = vmatprep.subr.mxu0 0.0
    %2836 = vmatpush2.msra.mxu0 0.0
    %2837 = vmatprep.subr.mxu0 0.0
    %2838 = vmatpush2.msra.mxu0 0.0
    %2839 = vmatprep.subr.mxu0 0.0
    %2840 = vmatpush2.msra.mxu0 0.0
    %2841 = vmatprep.subr.mxu0 0.0
    %2842 = vmatpush2.msra.mxu0 0.0
    %2843 = vmatprep.subr.mxu0 0.0
    %2844 = vmatpush2.msra.mxu0 0.0
    %2845 = vmatprep.subr.mxu0 0.0
    %2846 = vmatpush2.msra.mxu0 0.0
    %2847 = vmatprep.subr.mxu0 0.0
    %2848 = vmatpush2.msra.mxu0 0.0
    %2849 = vmatprep.subr.mxu0 0.0
    %2850 = vmatpush2.msra.mxu0 0.0
    %2851 = vmatprep.subr.mxu0 0.0
    %2852 = vmatpush2.msra.mxu0 0.0
    %2853 = vmatprep.subr.mxu0 0.0
    %2854 = vmatpush2.msra.mxu0 0.0
    %2855 = vmatprep.subr.mxu0 0.0
    %2856 = vmatpush2.msra.mxu0 0.0
    %2857 = vmatprep.subr.mxu0 0.0
    %2858 = vmatpush2.msra.mxu0 0.0
    %2859 = vmatprep.subr.mxu0 0.0
    %2860 = vmatpush2.msra.mxu0 0.0
    %2861 = vmatprep.subr.mxu0 0.0
    %2862 = vmatpush2.msra.mxu0 0.0
    %2863 = vmatprep.mubr.f32.mxu0 0.0
    %2864 = vmatmul.mubr.f32.gmra.mxu0 %v2797
    %v2865 = vpop.f32.mrf.mxu0
    %v2866 = vadd.f32 0.0, %v2865
    %v2867 = vpop.f32.mrf.mxu0
    %v2868 = vadd.f32 0.0, %v2867
    %2869 = vdwg.mxu0
    %2870 = vmatprep.subr.mxu0 0.0
    %2871 = vmatpush1.msra.mxu0 0.0
    %2872 = vmatprep.subr.mxu0 0.0
    %2873 = vmatpush1.msra.mxu0 0.0
    %2874 = vmatprep.subr.mxu0 0.0
    %2875 = vmatpush1.msra.mxu0 0.0
    %2876 = vmatprep.subr.mxu0 0.0
    %2877 = vmatpush1.msra.mxu0 0.0
    %2878 = vmatprep.subr.mxu0 0.0
    %2879 = vmatpush1.msra.mxu0 0.0
    %2880 = vmatprep.subr.mxu0 0.0
    %2881 = vmatpush1.msra.mxu0 0.0
    %2882 = vmatprep.subr.mxu0 0.0
    %2883 = vmatpush1.msra.mxu0 0.0
    %2884 = vmatprep.subr.mxu0 0.0
    %2885 = vmatpush1.msra.mxu0 0.0
    %2886 = vmatprep.subr.mxu0 0.0
    %2887 = vmatpush1.msra.mxu0 0.0
    %2888 = vmatprep.subr.mxu0 0.0
    %2889 = vmatpush1.msra.mxu0 0.0
    %2890 = vmatprep.subr.mxu0 0.0
    %2891 = vmatpush1.msra.mxu0 0.0
    %2892 = vmatprep.subr.mxu0 0.0
    %2893 = vmatpush1.msra.mxu0 0.0
    %2894 = vmatprep.subr.mxu0 0.0
    %2895 = vmatpush1.msra.mxu0 0.0
    %2896 = vmatprep.subr.mxu0 0.0
    %2897 = vmatpush1.msra.mxu0 0.0
    %2898 = vmatprep.subr.mxu0 0.0
    %2899 = vmatpush1.msra.mxu0 0.0
    %2900 = vmatprep.subr.mxu0 %v2790
    %2901 = vmatpush1.msra.mxu0 %v2791
    %2902 = vmatprep.subr.mxu0 0.0
    %2903 = vmatpush2.msra.mxu0 0.0
    %2904 = vmatprep.subr.mxu0 0.0
    %2905 = vmatpush2.msra.mxu0 0.0
    %2906 = vmatprep.subr.mxu0 0.0
    %2907 = vmatpush2.msra.mxu0 0.0
    %2908 = vmatprep.subr.mxu0 0.0
    %2909 = vmatpush2.msra.mxu0 0.0
    %2910 = vmatprep.subr.mxu0 0.0
    %2911 = vmatpush2.msra.mxu0 0.0
    %2912 = vmatprep.subr.mxu0 0.0
    %2913 = vmatpush2.msra.mxu0 0.0
    %2914 = vmatprep.subr.mxu0 0.0
    %2915 = vmatpush2.msra.mxu0 0.0
    %2916 = vmatprep.subr.mxu0 0.0
    %2917 = vmatpush2.msra.mxu0 0.0
    %2918 = vmatprep.subr.mxu0 0.0
    %2919 = vmatpush2.msra.mxu0 0.0
    %2920 = vmatprep.subr.mxu0 0.0
    %2921 = vmatpush2.msra.mxu0 0.0
    %2922 = vmatprep.subr.mxu0 0.0
    %2923 = vmatpush2.msra.mxu0 0.0
    %2924 = vmatprep.subr.mxu0 0.0
    %2925 = vmatpush2.msra.mxu0 0.0
    %2926 = vmatprep.subr.mxu0 0.0
    %2927 = vmatpush2.msra.mxu0 0.0
    %2928 = vmatprep.subr.mxu0 0.0
    %2929 = vmatpush2.msra.mxu0 0.0
    %2930 = vmatprep.subr.mxu0 0.0
    %2931 = vmatpush2.msra.mxu0 0.0
    %2932 = vmatprep.subr.mxu0 0.0
    %2933 = vmatpush2.msra.mxu0 0.0
    %2934 = vmatprep.mubr.f32.mxu0 0.0
    %2935 = vmatmul.mubr.f32.gmra.mxu0 %v2797
    %v2936 = vpop.f32.mrf.mxu0
    %v2937 = vadd.f32 0.0, %v2936
    %v2938 = vpop.f32.mrf.mxu0
    %v2939 = vadd.f32 0.0, %v2938
    %2940 = vdwg.mxu0
    %2941 = vmatprep.subr.mxu0 0.0
    %2942 = vmatpush1.msra.mxu0 0.0
    %2943 = vmatprep.subr.mxu0 0.0
    %2944 = vmatpush1.msra.mxu0 0.0
    %2945 = vmatprep.subr.mxu0 0.0
    %2946 = vmatpush1.msra.mxu0 0.0
    %2947 = vmatprep.subr.mxu0 0.0
    %2948 = vmatpush1.msra.mxu0 0.0
    %2949 = vmatprep.subr.mxu0 0.0
    %2950 = vmatpush1.msra.mxu0 0.0
    %2951 = vmatprep.subr.mxu0 0.0
    %2952 = vmatpush1.msra.mxu0 0.0
    %2953 = vmatprep.subr.mxu0 0.0
    %2954 = vmatpush1.msra.mxu0 0.0
    %2955 = vmatprep.subr.mxu0 0.0
    %2956 = vmatpush1.msra.mxu0 0.0
    %2957 = vmatprep.subr.mxu0 0.0
    %2958 = vmatpush1.msra.mxu0 0.0
    %2959 = vmatprep.subr.mxu0 0.0
    %2960 = vmatpush1.msra.mxu0 0.0
    %2961 = vmatprep.subr.mxu0 0.0
    %2962 = vmatpush1.msra.mxu0 0.0
    %2963 = vmatprep.subr.mxu0 0.0
    %2964 = vmatpush1.msra.mxu0 0.0
    %2965 = vmatprep.subr.mxu0 0.0
    %2966 = vmatpush1.msra.mxu0 0.0
    %2967 = vmatprep.subr.mxu0 0.0
    %2968 = vmatpush1.msra.mxu0 0.0
    %2969 = vmatprep.subr.mxu0 0.0
    %2970 = vmatpush1.msra.mxu0 0.0
    %2971 = vmatprep.subr.mxu0 %v2788
    %2972 = vmatpush1.msra.mxu0 %v2789
    %2973 = vmatprep.subr.mxu0 0.0
    %2974 = vmatpush2.msra.mxu0 0.0
    %2975 = vmatprep.subr.mxu0 0.0
    %2976 = vmatpush2.msra.mxu0 0.0
    %2977 = vmatprep.subr.mxu0 0.0
    %2978 = vmatpush2.msra.mxu0 0.0
    %2979 = vmatprep.subr.mxu0 0.0
    %2980 = vmatpush2.msra.mxu0 0.0
    %2981 = vmatprep.subr.mxu0 0.0
    %2982 = vmatpush2.msra.mxu0 0.0
    %2983 = vmatprep.subr.mxu0 0.0
    %2984 = vmatpush2.msra.mxu0 0.0
    %2985 = vmatprep.subr.mxu0 0.0
    %2986 = vmatpush2.msra.mxu0 0.0
    %2987 = vmatprep.subr.mxu0 0.0
    %2988 = vmatpush2.msra.mxu0 0.0
    %2989 = vmatprep.subr.mxu0 0.0
    %2990 = vmatpush2.msra.mxu0 0.0
    %2991 = vmatprep.subr.mxu0 0.0
    %2992 = vmatpush2.msra.mxu0 0.0
    %2993 = vmatprep.subr.mxu0 0.0
    %2994 = vmatpush2.msra.mxu0 0.0
    %2995 = vmatprep.subr.mxu0 0.0
    %2996 = vmatpush2.msra.mxu0 0.0
    %2997 = vmatprep.subr.mxu0 0.0
    %2998 = vmatpush2.msra.mxu0 0.0
    %2999 = vmatprep.subr.mxu0 0.0
    %3000 = vmatpush2.msra.mxu0 0.0
    %3001 = vmatprep.subr.mxu0 0.0
    %3002 = vmatpush2.msra.mxu0 0.0
    %3003 = vmatprep.subr.mxu0 0.0
    %3004 = vmatpush2.msra.mxu0 0.0
    %3005 = vmatprep.mubr.f32.mxu0 0.0
    %3006 = vmatmul.mubr.f32.gmra.mxu0 %v2797
    %v3007 = vpop.f32.mrf.mxu0
    %v3008 = vadd.f32 0.0, %v3007
    %v3009 = vpop.f32.mrf.mxu0
    %v3010 = vadd.f32 0.0, %v3009
    %3011 = vdwg.mxu0
    %v3012 = vadd.f32 %v2630, %v2866
    %v3013 = vadd.f32 %v2632, %v2868
    %v3014 = vadd.f32 %v2701, %v2937
    %v3015 = vadd.f32 %v2703, %v2939
    %v3016 = vadd.f32 %v2772, %v3008
    %v3017 = vadd.f32 %v2774, %v3010
    %3018 = vrot.lane.b32.xlu0 %v2299, 1
    %v3019 = vpop.permute.xlu0 %3018
    %3020 = vrot.lane.b32.xlu0 %v2300, 1
    %v3021 = vpop.permute.xlu0 %3020
    %3022 = vrot.lane.b32.xlu0 %v2301, 1
    %v3023 = vpop.permute.xlu0 %3022
    %3024 = vrot.lane.b32.xlu0 %v2302, 1
    %v3025 = vpop.permute.xlu0 %3024
    %3026 = vrot.lane.b32.xlu0 %v2303, 1
    %v3027 = vpop.permute.xlu0 %3026
    %3028 = vrot.lane.b32.xlu0 %v2304, 1
    %v3029 = vpop.permute.xlu0 %3028
    %v3030 = vsel %vm768, %v3027, %v3029
    %v3031 = vsel %vm768, %v3025, %v3027
    %v3032 = vsel %vm768, %v3023, %v3025
    %v3033 = vsel %vm768, %v3021, %v3023
    %v3034 = vsel %vm768, %v3019, %v3021
    %v3035 = vsel %vm768, %v3029, %v3019
    %s3036 = scalar_lea.vmem %s5, 24
    %v3037 = vld [vmem:[%s3036] sm:$0xff]
    %v3039 = vsel %vm80, %v3037, 0
    %3041 = vmatprep.subr.mxu0 0.0
    %3042 = vmatpush1.msra.mxu0 0.0
    %3043 = vmatprep.subr.mxu0 0.0
    %3044 = vmatpush1.msra.mxu0 0.0
    %3045 = vmatprep.subr.mxu0 0.0
    %3046 = vmatpush1.msra.mxu0 0.0
    %3047 = vmatprep.subr.mxu0 0.0
    %3048 = vmatpush1.msra.mxu0 0.0
    %3049 = vmatprep.subr.mxu0 0.0
    %3050 = vmatpush1.msra.mxu0 0.0
    %3051 = vmatprep.subr.mxu0 0.0
    %3052 = vmatpush1.msra.mxu0 0.0
    %3053 = vmatprep.subr.mxu0 0.0
    %3054 = vmatpush1.msra.mxu0 0.0
    %3055 = vmatprep.subr.mxu0 0.0
    %3056 = vmatpush1.msra.mxu0 0.0
    %3057 = vmatprep.subr.mxu0 0.0
    %3058 = vmatpush1.msra.mxu0 0.0
    %3059 = vmatprep.subr.mxu0 0.0
    %3060 = vmatpush1.msra.mxu0 0.0
    %3061 = vmatprep.subr.mxu0 0.0
    %3062 = vmatpush1.msra.mxu0 0.0
    %3063 = vmatprep.subr.mxu0 0.0
    %3064 = vmatpush1.msra.mxu0 0.0
    %3065 = vmatprep.subr.mxu0 0.0
    %3066 = vmatpush1.msra.mxu0 0.0
    %3067 = vmatprep.subr.mxu0 0.0
    %3068 = vmatpush1.msra.mxu0 0.0
    %3069 = vmatprep.subr.mxu0 0.0
    %3070 = vmatpush1.msra.mxu0 0.0
    %3071 = vmatprep.subr.mxu0 %v3034
    %3072 = vmatpush1.msra.mxu0 %v3035
    %3073 = vmatprep.subr.mxu0 0.0
    %3074 = vmatpush2.msra.mxu0 0.0
    %3075 = vmatprep.subr.mxu0 0.0
    %3076 = vmatpush2.msra.mxu0 0.0
    %3077 = vmatprep.subr.mxu0 0.0
    %3078 = vmatpush2.msra.mxu0 0.0
    %3079 = vmatprep.subr.mxu0 0.0
    %3080 = vmatpush2.msra.mxu0 0.0
    %3081 = vmatprep.subr.mxu0 0.0
    %3082 = vmatpush2.msra.mxu0 0.0
    %3083 = vmatprep.subr.mxu0 0.0
    %3084 = vmatpush2.msra.mxu0 0.0
    %3085 = vmatprep.subr.mxu0 0.0
    %3086 = vmatpush2.msra.mxu0 0.0
    %3087 = vmatprep.subr.mxu0 0.0
    %3088 = vmatpush2.msra.mxu0 0.0
    %3089 = vmatprep.subr.mxu0 0.0
    %3090 = vmatpush2.msra.mxu0 0.0
    %3091 = vmatprep.subr.mxu0 0.0
    %3092 = vmatpush2.msra.mxu0 0.0
    %3093 = vmatprep.subr.mxu0 0.0
    %3094 = vmatpush2.msra.mxu0 0.0
    %3095 = vmatprep.subr.mxu0 0.0
    %3096 = vmatpush2.msra.mxu0 0.0
    %3097 = vmatprep.subr.mxu0 0.0
    %3098 = vmatpush2.msra.mxu0 0.0
    %3099 = vmatprep.subr.mxu0 0.0
    %3100 = vmatpush2.msra.mxu0 0.0
    %3101 = vmatprep.subr.mxu0 0.0
    %3102 = vmatpush2.msra.mxu0 0.0
    %3103 = vmatprep.subr.mxu0 0.0
    %3104 = vmatpush2.msra.mxu0 0.0
    %3105 = vmatprep.mubr.f32.mxu0 0.0
    %3106 = vmatmul.mubr.f32.gmra.mxu0 %v3039
    %v3107 = vpop.f32.mrf.mxu0
    %v3108 = vadd.f32 0.0, %v3107
    %v3109 = vpop.f32.mrf.mxu0
    %v3110 = vadd.f32 0.0, %v3109
    %3111 = vdwg.mxu0
    %3112 = vmatprep.subr.mxu0 0.0
    %3113 = vmatpush1.msra.mxu0 0.0
    %3114 = vmatprep.subr.mxu0 0.0
    %3115 = vmatpush1.msra.mxu0 0.0
    %3116 = vmatprep.subr.mxu0 0.0
    %3117 = vmatpush1.msra.mxu0 0.0
    %3118 = vmatprep.subr.mxu0 0.0
    %3119 = vmatpush1.msra.mxu0 0.0
    %3120 = vmatprep.subr.mxu0 0.0
    %3121 = vmatpush1.msra.mxu0 0.0
    %3122 = vmatprep.subr.mxu0 0.0
    %3123 = vmatpush1.msra.mxu0 0.0
    %3124 = vmatprep.subr.mxu0 0.0
    %3125 = vmatpush1.msra.mxu0 0.0
    %3126 = vmatprep.subr.mxu0 0.0
    %3127 = vmatpush1.msra.mxu0 0.0
    %3128 = vmatprep.subr.mxu0 0.0
    %3129 = vmatpush1.msra.mxu0 0.0
    %3130 = vmatprep.subr.mxu0 0.0
    %3131 = vmatpush1.msra.mxu0 0.0
    %3132 = vmatprep.subr.mxu0 0.0
    %3133 = vmatpush1.msra.mxu0 0.0
    %3134 = vmatprep.subr.mxu0 0.0
    %3135 = vmatpush1.msra.mxu0 0.0
    %3136 = vmatprep.subr.mxu0 0.0
    %3137 = vmatpush1.msra.mxu0 0.0
    %3138 = vmatprep.subr.mxu0 0.0
    %3139 = vmatpush1.msra.mxu0 0.0
    %3140 = vmatprep.subr.mxu0 0.0
    %3141 = vmatpush1.msra.mxu0 0.0
    %3142 = vmatprep.subr.mxu0 %v3032
    %3143 = vmatpush1.msra.mxu0 %v3033
    %3144 = vmatprep.subr.mxu0 0.0
    %3145 = vmatpush2.msra.mxu0 0.0
    %3146 = vmatprep.subr.mxu0 0.0
    %3147 = vmatpush2.msra.mxu0 0.0
    %3148 = vmatprep.subr.mxu0 0.0
    %3149 = vmatpush2.msra.mxu0 0.0
    %3150 = vmatprep.subr.mxu0 0.0
    %3151 = vmatpush2.msra.mxu0 0.0
    %3152 = vmatprep.subr.mxu0 0.0
    %3153 = vmatpush2.msra.mxu0 0.0
    %3154 = vmatprep.subr.mxu0 0.0
    %3155 = vmatpush2.msra.mxu0 0.0
    %3156 = vmatprep.subr.mxu0 0.0
    %3157 = vmatpush2.msra.mxu0 0.0
    %3158 = vmatprep.subr.mxu0 0.0
    %3159 = vmatpush2.msra.mxu0 0.0
    %3160 = vmatprep.subr.mxu0 0.0
    %3161 = vmatpush2.msra.mxu0 0.0
    %3162 = vmatprep.subr.mxu0 0.0
    %3163 = vmatpush2.msra.mxu0 0.0
    %3164 = vmatprep.subr.mxu0 0.0
    %3165 = vmatpush2.msra.mxu0 0.0
    %3166 = vmatprep.subr.mxu0 0.0
    %3167 = vmatpush2.msra.mxu0 0.0
    %3168 = vmatprep.subr.mxu0 0.0
    %3169 = vmatpush2.msra.mxu0 0.0
    %3170 = vmatprep.subr.mxu0 0.0
    %3171 = vmatpush2.msra.mxu0 0.0
    %3172 = vmatprep.subr.mxu0 0.0
    %3173 = vmatpush2.msra.mxu0 0.0
    %3174 = vmatprep.subr.mxu0 0.0
    %3175 = vmatpush2.msra.mxu0 0.0
    %3176 = vmatprep.mubr.f32.mxu0 0.0
    %3177 = vmatmul.mubr.f32.gmra.mxu0 %v3039
    %v3178 = vpop.f32.mrf.mxu0
    %v3179 = vadd.f32 0.0, %v3178
    %v3180 = vpop.f32.mrf.mxu0
    %v3181 = vadd.f32 0.0, %v3180
    %3182 = vdwg.mxu0
    %3183 = vmatprep.subr.mxu0 0.0
    %3184 = vmatpush1.msra.mxu0 0.0
    %3185 = vmatprep.subr.mxu0 0.0
    %3186 = vmatpush1.msra.mxu0 0.0
    %3187 = vmatprep.subr.mxu0 0.0
    %3188 = vmatpush1.msra.mxu0 0.0
    %3189 = vmatprep.subr.mxu0 0.0
    %3190 = vmatpush1.msra.mxu0 0.0
    %3191 = vmatprep.subr.mxu0 0.0
    %3192 = vmatpush1.msra.mxu0 0.0
    %3193 = vmatprep.subr.mxu0 0.0
    %3194 = vmatpush1.msra.mxu0 0.0
    %3195 = vmatprep.subr.mxu0 0.0
    %3196 = vmatpush1.msra.mxu0 0.0
    %3197 = vmatprep.subr.mxu0 0.0
    %3198 = vmatpush1.msra.mxu0 0.0
    %3199 = vmatprep.subr.mxu0 0.0
    %3200 = vmatpush1.msra.mxu0 0.0
    %3201 = vmatprep.subr.mxu0 0.0
    %3202 = vmatpush1.msra.mxu0 0.0
    %3203 = vmatprep.subr.mxu0 0.0
    %3204 = vmatpush1.msra.mxu0 0.0
    %3205 = vmatprep.subr.mxu0 0.0
    %3206 = vmatpush1.msra.mxu0 0.0
    %3207 = vmatprep.subr.mxu0 0.0
    %3208 = vmatpush1.msra.mxu0 0.0
    %3209 = vmatprep.subr.mxu0 0.0
    %3210 = vmatpush1.msra.mxu0 0.0
    %3211 = vmatprep.subr.mxu0 0.0
    %3212 = vmatpush1.msra.mxu0 0.0
    %3213 = vmatprep.subr.mxu0 %v3030
    %3214 = vmatpush1.msra.mxu0 %v3031
    %3215 = vmatprep.subr.mxu0 0.0
    %3216 = vmatpush2.msra.mxu0 0.0
    %3217 = vmatprep.subr.mxu0 0.0
    %3218 = vmatpush2.msra.mxu0 0.0
    %3219 = vmatprep.subr.mxu0 0.0
    %3220 = vmatpush2.msra.mxu0 0.0
    %3221 = vmatprep.subr.mxu0 0.0
    %3222 = vmatpush2.msra.mxu0 0.0
    %3223 = vmatprep.subr.mxu0 0.0
    %3224 = vmatpush2.msra.mxu0 0.0
    %3225 = vmatprep.subr.mxu0 0.0
    %3226 = vmatpush2.msra.mxu0 0.0
    %3227 = vmatprep.subr.mxu0 0.0
    %3228 = vmatpush2.msra.mxu0 0.0
    %3229 = vmatprep.subr.mxu0 0.0
    %3230 = vmatpush2.msra.mxu0 0.0
    %3231 = vmatprep.subr.mxu0 0.0
    %3232 = vmatpush2.msra.mxu0 0.0
    %3233 = vmatprep.subr.mxu0 0.0
    %3234 = vmatpush2.msra.mxu0 0.0
    %3235 = vmatprep.subr.mxu0 0.0
    %3236 = vmatpush2.msra.mxu0 0.0
    %3237 = vmatprep.subr.mxu0 0.0
    %3238 = vmatpush2.msra.mxu0 0.0
    %3239 = vmatprep.subr.mxu0 0.0
    %3240 = vmatpush2.msra.mxu0 0.0
    %3241 = vmatprep.subr.mxu0 0.0
    %3242 = vmatpush2.msra.mxu0 0.0
    %3243 = vmatprep.subr.mxu0 0.0
    %3244 = vmatpush2.msra.mxu0 0.0
    %3245 = vmatprep.subr.mxu0 0.0
    %3246 = vmatpush2.msra.mxu0 0.0
    %3247 = vmatprep.mubr.f32.mxu0 0.0
    %3248 = vmatmul.mubr.f32.gmra.mxu0 %v3039
    %v3249 = vpop.f32.mrf.mxu0
    %v3250 = vadd.f32 0.0, %v3249
    %v3251 = vpop.f32.mrf.mxu0
    %v3252 = vadd.f32 0.0, %v3251
    %3253 = vdwg.mxu0
    %v3254 = vadd.f32 %v3012, %v3108
    %v3255 = vadd.f32 %v3013, %v3110
    %v3256 = vadd.f32 %v3014, %v3179
    %v3257 = vadd.f32 %v3015, %v3181
    %v3258 = vadd.f32 %v3016, %v3250
    %v3259 = vadd.f32 %v3017, %v3252
    %s3260 = scalar_lea.vmem %s5, 32
    %v3261 = vld [vmem:[%s3260] sm:$0xff]
    %v3263 = vsel %vm80, %v3261, 0
    %3265 = vmatprep.subr.mxu0 0.0
    %3266 = vmatpush1.msra.mxu0 0.0
    %3267 = vmatprep.subr.mxu0 0.0
    %3268 = vmatpush1.msra.mxu0 0.0
    %3269 = vmatprep.subr.mxu0 0.0
    %3270 = vmatpush1.msra.mxu0 0.0
    %3271 = vmatprep.subr.mxu0 0.0
    %3272 = vmatpush1.msra.mxu0 0.0
    %3273 = vmatprep.subr.mxu0 0.0
    %3274 = vmatpush1.msra.mxu0 0.0
    %3275 = vmatprep.subr.mxu0 0.0
    %3276 = vmatpush1.msra.mxu0 0.0
    %3277 = vmatprep.subr.mxu0 0.0
    %3278 = vmatpush1.msra.mxu0 0.0
    %3279 = vmatprep.subr.mxu0 0.0
    %3280 = vmatpush1.msra.mxu0 0.0
    %3281 = vmatprep.subr.mxu0 0.0
    %3282 = vmatpush1.msra.mxu0 0.0
    %3283 = vmatprep.subr.mxu0 0.0
    %3284 = vmatpush1.msra.mxu0 0.0
    %3285 = vmatprep.subr.mxu0 0.0
    %3286 = vmatpush1.msra.mxu0 0.0
    %3287 = vmatprep.subr.mxu0 0.0
    %3288 = vmatpush1.msra.mxu0 0.0
    %3289 = vmatprep.subr.mxu0 0.0
    %3290 = vmatpush1.msra.mxu0 0.0
    %3291 = vmatprep.subr.mxu0 0.0
    %3292 = vmatpush1.msra.mxu0 0.0
    %3293 = vmatprep.subr.mxu0 0.0
    %3294 = vmatpush1.msra.mxu0 0.0
    %3295 = vmatprep.subr.mxu0 %v2300
    %3296 = vmatpush1.msra.mxu0 %v2299
    %3297 = vmatprep.subr.mxu0 0.0
    %3298 = vmatpush2.msra.mxu0 0.0
    %3299 = vmatprep.subr.mxu0 0.0
    %3300 = vmatpush2.msra.mxu0 0.0
    %3301 = vmatprep.subr.mxu0 0.0
    %3302 = vmatpush2.msra.mxu0 0.0
    %3303 = vmatprep.subr.mxu0 0.0
    %3304 = vmatpush2.msra.mxu0 0.0
    %3305 = vmatprep.subr.mxu0 0.0
    %3306 = vmatpush2.msra.mxu0 0.0
    %3307 = vmatprep.subr.mxu0 0.0
    %3308 = vmatpush2.msra.mxu0 0.0
    %3309 = vmatprep.subr.mxu0 0.0
    %3310 = vmatpush2.msra.mxu0 0.0
    %3311 = vmatprep.subr.mxu0 0.0
    %3312 = vmatpush2.msra.mxu0 0.0
    %3313 = vmatprep.subr.mxu0 0.0
    %3314 = vmatpush2.msra.mxu0 0.0
    %3315 = vmatprep.subr.mxu0 0.0
    %3316 = vmatpush2.msra.mxu0 0.0
    %3317 = vmatprep.subr.mxu0 0.0
    %3318 = vmatpush2.msra.mxu0 0.0
    %3319 = vmatprep.subr.mxu0 0.0
    %3320 = vmatpush2.msra.mxu0 0.0
    %3321 = vmatprep.subr.mxu0 0.0
    %3322 = vmatpush2.msra.mxu0 0.0
    %3323 = vmatprep.subr.mxu0 0.0
    %3324 = vmatpush2.msra.mxu0 0.0
    %3325 = vmatprep.subr.mxu0 0.0
    %3326 = vmatpush2.msra.mxu0 0.0
    %3327 = vmatprep.subr.mxu0 0.0
    %3328 = vmatpush2.msra.mxu0 0.0
    %3329 = vmatprep.mubr.f32.mxu0 0.0
    %3330 = vmatmul.mubr.f32.gmra.mxu0 %v3263
    %v3331 = vpop.f32.mrf.mxu0
    %v3332 = vadd.f32 0.0, %v3331
    %v3333 = vpop.f32.mrf.mxu0
    %v3334 = vadd.f32 0.0, %v3333
    %3335 = vdwg.mxu0
    %3336 = vmatprep.subr.mxu0 0.0
    %3337 = vmatpush1.msra.mxu0 0.0
    %3338 = vmatprep.subr.mxu0 0.0
    %3339 = vmatpush1.msra.mxu0 0.0
    %3340 = vmatprep.subr.mxu0 0.0
    %3341 = vmatpush1.msra.mxu0 0.0
    %3342 = vmatprep.subr.mxu0 0.0
    %3343 = vmatpush1.msra.mxu0 0.0
    %3344 = vmatprep.subr.mxu0 0.0
    %3345 = vmatpush1.msra.mxu0 0.0
    %3346 = vmatprep.subr.mxu0 0.0
    %3347 = vmatpush1.msra.mxu0 0.0
    %3348 = vmatprep.subr.mxu0 0.0
    %3349 = vmatpush1.msra.mxu0 0.0
    %3350 = vmatprep.subr.mxu0 0.0
    %3351 = vmatpush1.msra.mxu0 0.0
    %3352 = vmatprep.subr.mxu0 0.0
    %3353 = vmatpush1.msra.mxu0 0.0
    %3354 = vmatprep.subr.mxu0 0.0
    %3355 = vmatpush1.msra.mxu0 0.0
    %3356 = vmatprep.subr.mxu0 0.0
    %3357 = vmatpush1.msra.mxu0 0.0
    %3358 = vmatprep.subr.mxu0 0.0
    %3359 = vmatpush1.msra.mxu0 0.0
    %3360 = vmatprep.subr.mxu0 0.0
    %3361 = vmatpush1.msra.mxu0 0.0
    %3362 = vmatprep.subr.mxu0 0.0
    %3363 = vmatpush1.msra.mxu0 0.0
    %3364 = vmatprep.subr.mxu0 0.0
    %3365 = vmatpush1.msra.mxu0 0.0
    %3366 = vmatprep.subr.mxu0 %v2302
    %3367 = vmatpush1.msra.mxu0 %v2301
    %3368 = vmatprep.subr.mxu0 0.0
    %3369 = vmatpush2.msra.mxu0 0.0
    %3370 = vmatprep.subr.mxu0 0.0
    %3371 = vmatpush2.msra.mxu0 0.0
    %3372 = vmatprep.subr.mxu0 0.0
    %3373 = vmatpush2.msra.mxu0 0.0
    %3374 = vmatprep.subr.mxu0 0.0
    %3375 = vmatpush2.msra.mxu0 0.0
    %3376 = vmatprep.subr.mxu0 0.0
    %3377 = vmatpush2.msra.mxu0 0.0
    %3378 = vmatprep.subr.mxu0 0.0
    %3379 = vmatpush2.msra.mxu0 0.0
    %3380 = vmatprep.subr.mxu0 0.0
    %3381 = vmatpush2.msra.mxu0 0.0
    %3382 = vmatprep.subr.mxu0 0.0
    %3383 = vmatpush2.msra.mxu0 0.0
    %3384 = vmatprep.subr.mxu0 0.0
    %3385 = vmatpush2.msra.mxu0 0.0
    %3386 = vmatprep.subr.mxu0 0.0
    %3387 = vmatpush2.msra.mxu0 0.0
    %3388 = vmatprep.subr.mxu0 0.0
    %3389 = vmatpush2.msra.mxu0 0.0
    %3390 = vmatprep.subr.mxu0 0.0
    %3391 = vmatpush2.msra.mxu0 0.0
    %3392 = vmatprep.subr.mxu0 0.0
    %3393 = vmatpush2.msra.mxu0 0.0
    %3394 = vmatprep.subr.mxu0 0.0
    %3395 = vmatpush2.msra.mxu0 0.0
    %3396 = vmatprep.subr.mxu0 0.0
    %3397 = vmatpush2.msra.mxu0 0.0
    %3398 = vmatprep.subr.mxu0 0.0
    %3399 = vmatpush2.msra.mxu0 0.0
    %3400 = vmatprep.mubr.f32.mxu0 0.0
    %3401 = vmatmul.mubr.f32.gmra.mxu0 %v3263
    %v3402 = vpop.f32.mrf.mxu0
    %v3403 = vadd.f32 0.0, %v3402
    %v3404 = vpop.f32.mrf.mxu0
    %v3405 = vadd.f32 0.0, %v3404
    %3406 = vdwg.mxu0
    %3407 = vmatprep.subr.mxu0 0.0
    %3408 = vmatpush1.msra.mxu0 0.0
    %3409 = vmatprep.subr.mxu0 0.0
    %3410 = vmatpush1.msra.mxu0 0.0
    %3411 = vmatprep.subr.mxu0 0.0
    %3412 = vmatpush1.msra.mxu0 0.0
    %3413 = vmatprep.subr.mxu0 0.0
    %3414 = vmatpush1.msra.mxu0 0.0
    %3415 = vmatprep.subr.mxu0 0.0
    %3416 = vmatpush1.msra.mxu0 0.0
    %3417 = vmatprep.subr.mxu0 0.0
    %3418 = vmatpush1.msra.mxu0 0.0
    %3419 = vmatprep.subr.mxu0 0.0
    %3420 = vmatpush1.msra.mxu0 0.0
    %3421 = vmatprep.subr.mxu0 0.0
    %3422 = vmatpush1.msra.mxu0 0.0
    %3423 = vmatprep.subr.mxu0 0.0
    %3424 = vmatpush1.msra.mxu0 0.0
    %3425 = vmatprep.subr.mxu0 0.0
    %3426 = vmatpush1.msra.mxu0 0.0
    %3427 = vmatprep.subr.mxu0 0.0
    %3428 = vmatpush1.msra.mxu0 0.0
    %3429 = vmatprep.subr.mxu0 0.0
    %3430 = vmatpush1.msra.mxu0 0.0
    %3431 = vmatprep.subr.mxu0 0.0
    %3432 = vmatpush1.msra.mxu0 0.0
    %3433 = vmatprep.subr.mxu0 0.0
    %3434 = vmatpush1.msra.mxu0 0.0
    %3435 = vmatprep.subr.mxu0 0.0
    %3436 = vmatpush1.msra.mxu0 0.0
    %3437 = vmatprep.subr.mxu0 %v2304
    %3438 = vmatpush1.msra.mxu0 %v2303
    %3439 = vmatprep.subr.mxu0 0.0
    %3440 = vmatpush2.msra.mxu0 0.0
    %3441 = vmatprep.subr.mxu0 0.0
    %3442 = vmatpush2.msra.mxu0 0.0
    %3443 = vmatprep.subr.mxu0 0.0
    %3444 = vmatpush2.msra.mxu0 0.0
    %3445 = vmatprep.subr.mxu0 0.0
    %3446 = vmatpush2.msra.mxu0 0.0
    %3447 = vmatprep.subr.mxu0 0.0
    %3448 = vmatpush2.msra.mxu0 0.0
    %3449 = vmatprep.subr.mxu0 0.0
    %3450 = vmatpush2.msra.mxu0 0.0
    %3451 = vmatprep.subr.mxu0 0.0
    %3452 = vmatpush2.msra.mxu0 0.0
    %3453 = vmatprep.subr.mxu0 0.0
    %3454 = vmatpush2.msra.mxu0 0.0
    %3455 = vmatprep.subr.mxu0 0.0
    %3456 = vmatpush2.msra.mxu0 0.0
    %3457 = vmatprep.subr.mxu0 0.0
    %3458 = vmatpush2.msra.mxu0 0.0
    %3459 = vmatprep.subr.mxu0 0.0
    %3460 = vmatpush2.msra.mxu0 0.0
    %3461 = vmatprep.subr.mxu0 0.0
    %3462 = vmatpush2.msra.mxu0 0.0
    %3463 = vmatprep.subr.mxu0 0.0
    %3464 = vmatpush2.msra.mxu0 0.0
    %3465 = vmatprep.subr.mxu0 0.0
    %3466 = vmatpush2.msra.mxu0 0.0
    %3467 = vmatprep.subr.mxu0 0.0
    %3468 = vmatpush2.msra.mxu0 0.0
    %3469 = vmatprep.subr.mxu0 0.0
    %3470 = vmatpush2.msra.mxu0 0.0
    %3471 = vmatprep.mubr.f32.mxu0 0.0
    %3472 = vmatmul.mubr.f32.gmra.mxu0 %v3263
    %v3473 = vpop.f32.mrf.mxu0
    %v3474 = vadd.f32 0.0, %v3473
    %v3475 = vpop.f32.mrf.mxu0
    %v3476 = vadd.f32 0.0, %v3475
    %3477 = vdwg.mxu0
    %v3478 = vadd.f32 %v3254, %v3332
    %v3479 = vadd.f32 %v3255, %v3334
    %v3480 = vadd.f32 %v3256, %v3403
    %v3481 = vadd.f32 %v3257, %v3405
    %v3482 = vadd.f32 %v3258, %v3474
    %v3483 = vadd.f32 %v3259, %v3476
    %3484 = vrot.lane.b32.xlu0 %v2299, 127
    %v3485 = vpop.permute.xlu0 %3484
    %3486 = vrot.lane.b32.xlu0 %v2300, 127
    %v3487 = vpop.permute.xlu0 %3486
    %3488 = vrot.lane.b32.xlu0 %v2301, 127
    %v3489 = vpop.permute.xlu0 %3488
    %3490 = vrot.lane.b32.xlu0 %v2302, 127
    %v3491 = vpop.permute.xlu0 %3490
    %3492 = vrot.lane.b32.xlu0 %v2303, 127
    %v3493 = vpop.permute.xlu0 %3492
    %3494 = vrot.lane.b32.xlu0 %v2304, 127
    %v3495 = vpop.permute.xlu0 %3494
    %v3496 = vsel %vm1235, %v3493, %v3495
    %v3497 = vsel %vm1235, %v3491, %v3493
    %v3498 = vsel %vm1235, %v3489, %v3491
    %v3499 = vsel %vm1235, %v3487, %v3489
    %v3500 = vsel %vm1235, %v3485, %v3487
    %v3501 = vsel %vm1235, %v3495, %v3485
    %s3502 = scalar_lea.vmem %s5, 40
    %v3503 = vld [vmem:[%s3502] sm:$0xff]
    %v3505 = vsel %vm80, %v3503, 0
    %3507 = vmatprep.subr.mxu0 0.0
    %3508 = vmatpush1.msra.mxu0 0.0
    %3509 = vmatprep.subr.mxu0 0.0
    %3510 = vmatpush1.msra.mxu0 0.0
    %3511 = vmatprep.subr.mxu0 0.0
    %3512 = vmatpush1.msra.mxu0 0.0
    %3513 = vmatprep.subr.mxu0 0.0
    %3514 = vmatpush1.msra.mxu0 0.0
    %3515 = vmatprep.subr.mxu0 0.0
    %3516 = vmatpush1.msra.mxu0 0.0
    %3517 = vmatprep.subr.mxu0 0.0
    %3518 = vmatpush1.msra.mxu0 0.0
    %3519 = vmatprep.subr.mxu0 0.0
    %3520 = vmatpush1.msra.mxu0 0.0
    %3521 = vmatprep.subr.mxu0 0.0
    %3522 = vmatpush1.msra.mxu0 0.0
    %3523 = vmatprep.subr.mxu0 0.0
    %3524 = vmatpush1.msra.mxu0 0.0
    %3525 = vmatprep.subr.mxu0 0.0
    %3526 = vmatpush1.msra.mxu0 0.0
    %3527 = vmatprep.subr.mxu0 0.0
    %3528 = vmatpush1.msra.mxu0 0.0
    %3529 = vmatprep.subr.mxu0 0.0
    %3530 = vmatpush1.msra.mxu0 0.0
    %3531 = vmatprep.subr.mxu0 0.0
    %3532 = vmatpush1.msra.mxu0 0.0
    %3533 = vmatprep.subr.mxu0 0.0
    %3534 = vmatpush1.msra.mxu0 0.0
    %3535 = vmatprep.subr.mxu0 0.0
    %3536 = vmatpush1.msra.mxu0 0.0
    %3537 = vmatprep.subr.mxu0 %v3499
    %3538 = vmatpush1.msra.mxu0 %v3500
    %3539 = vmatprep.subr.mxu0 0.0
    %3540 = vmatpush2.msra.mxu0 0.0
    %3541 = vmatprep.subr.mxu0 0.0
    %3542 = vmatpush2.msra.mxu0 0.0
    %3543 = vmatprep.subr.mxu0 0.0
    %3544 = vmatpush2.msra.mxu0 0.0
    %3545 = vmatprep.subr.mxu0 0.0
    %3546 = vmatpush2.msra.mxu0 0.0
    %3547 = vmatprep.subr.mxu0 0.0
    %3548 = vmatpush2.msra.mxu0 0.0
    %3549 = vmatprep.subr.mxu0 0.0
    %3550 = vmatpush2.msra.mxu0 0.0
    %3551 = vmatprep.subr.mxu0 0.0
    %3552 = vmatpush2.msra.mxu0 0.0
    %3553 = vmatprep.subr.mxu0 0.0
    %3554 = vmatpush2.msra.mxu0 0.0
    %3555 = vmatprep.subr.mxu0 0.0
    %3556 = vmatpush2.msra.mxu0 0.0
    %3557 = vmatprep.subr.mxu0 0.0
    %3558 = vmatpush2.msra.mxu0 0.0
    %3559 = vmatprep.subr.mxu0 0.0
    %3560 = vmatpush2.msra.mxu0 0.0
    %3561 = vmatprep.subr.mxu0 0.0
    %3562 = vmatpush2.msra.mxu0 0.0
    %3563 = vmatprep.subr.mxu0 0.0
    %3564 = vmatpush2.msra.mxu0 0.0
    %3565 = vmatprep.subr.mxu0 0.0
    %3566 = vmatpush2.msra.mxu0 0.0
    %3567 = vmatprep.subr.mxu0 0.0
    %3568 = vmatpush2.msra.mxu0 0.0
    %3569 = vmatprep.subr.mxu0 0.0
    %3570 = vmatpush2.msra.mxu0 0.0
    %3571 = vmatprep.mubr.f32.mxu0 0.0
    %3572 = vmatmul.mubr.f32.gmra.mxu0 %v3505
    %v3573 = vpop.f32.mrf.mxu0
    %v3574 = vadd.f32 0.0, %v3573
    %v3575 = vpop.f32.mrf.mxu0
    %v3576 = vadd.f32 0.0, %v3575
    %3577 = vdwg.mxu0
    %3578 = vmatprep.subr.mxu0 0.0
    %3579 = vmatpush1.msra.mxu0 0.0
    %3580 = vmatprep.subr.mxu0 0.0
    %3581 = vmatpush1.msra.mxu0 0.0
    %3582 = vmatprep.subr.mxu0 0.0
    %3583 = vmatpush1.msra.mxu0 0.0
    %3584 = vmatprep.subr.mxu0 0.0
    %3585 = vmatpush1.msra.mxu0 0.0
    %3586 = vmatprep.subr.mxu0 0.0
    %3587 = vmatpush1.msra.mxu0 0.0
    %3588 = vmatprep.subr.mxu0 0.0
    %3589 = vmatpush1.msra.mxu0 0.0
    %3590 = vmatprep.subr.mxu0 0.0
    %3591 = vmatpush1.msra.mxu0 0.0
    %3592 = vmatprep.subr.mxu0 0.0
    %3593 = vmatpush1.msra.mxu0 0.0
    %3594 = vmatprep.subr.mxu0 0.0
    %3595 = vmatpush1.msra.mxu0 0.0
    %3596 = vmatprep.subr.mxu0 0.0
    %3597 = vmatpush1.msra.mxu0 0.0
    %3598 = vmatprep.subr.mxu0 0.0
    %3599 = vmatpush1.msra.mxu0 0.0
    %3600 = vmatprep.subr.mxu0 0.0
    %3601 = vmatpush1.msra.mxu0 0.0
    %3602 = vmatprep.subr.mxu0 0.0
    %3603 = vmatpush1.msra.mxu0 0.0
    %3604 = vmatprep.subr.mxu0 0.0
    %3605 = vmatpush1.msra.mxu0 0.0
    %3606 = vmatprep.subr.mxu0 0.0
    %3607 = vmatpush1.msra.mxu0 0.0
    %3608 = vmatprep.subr.mxu0 %v3497
    %3609 = vmatpush1.msra.mxu0 %v3498
    %3610 = vmatprep.subr.mxu0 0.0
    %3611 = vmatpush2.msra.mxu0 0.0
    %3612 = vmatprep.subr.mxu0 0.0
    %3613 = vmatpush2.msra.mxu0 0.0
    %3614 = vmatprep.subr.mxu0 0.0
    %3615 = vmatpush2.msra.mxu0 0.0
    %3616 = vmatprep.subr.mxu0 0.0
    %3617 = vmatpush2.msra.mxu0 0.0
    %3618 = vmatprep.subr.mxu0 0.0
    %3619 = vmatpush2.msra.mxu0 0.0
    %3620 = vmatprep.subr.mxu0 0.0
    %3621 = vmatpush2.msra.mxu0 0.0
    %3622 = vmatprep.subr.mxu0 0.0
    %3623 = vmatpush2.msra.mxu0 0.0
    %3624 = vmatprep.subr.mxu0 0.0
    %3625 = vmatpush2.msra.mxu0 0.0
    %3626 = vmatprep.subr.mxu0 0.0
    %3627 = vmatpush2.msra.mxu0 0.0
    %3628 = vmatprep.subr.mxu0 0.0
    %3629 = vmatpush2.msra.mxu0 0.0
    %3630 = vmatprep.subr.mxu0 0.0
    %3631 = vmatpush2.msra.mxu0 0.0
    %3632 = vmatprep.subr.mxu0 0.0
    %3633 = vmatpush2.msra.mxu0 0.0
    %3634 = vmatprep.subr.mxu0 0.0
    %3635 = vmatpush2.msra.mxu0 0.0
    %3636 = vmatprep.subr.mxu0 0.0
    %3637 = vmatpush2.msra.mxu0 0.0
    %3638 = vmatprep.subr.mxu0 0.0
    %3639 = vmatpush2.msra.mxu0 0.0
    %3640 = vmatprep.subr.mxu0 0.0
    %3641 = vmatpush2.msra.mxu0 0.0
    %3642 = vmatprep.mubr.f32.mxu0 0.0
    %3643 = vmatmul.mubr.f32.gmra.mxu0 %v3505
    %v3644 = vpop.f32.mrf.mxu0
    %v3645 = vadd.f32 0.0, %v3644
    %v3646 = vpop.f32.mrf.mxu0
    %v3647 = vadd.f32 0.0, %v3646
    %3648 = vdwg.mxu0
    %3649 = vmatprep.subr.mxu0 0.0
    %3650 = vmatpush1.msra.mxu0 0.0
    %3651 = vmatprep.subr.mxu0 0.0
    %3652 = vmatpush1.msra.mxu0 0.0
    %3653 = vmatprep.subr.mxu0 0.0
    %3654 = vmatpush1.msra.mxu0 0.0
    %3655 = vmatprep.subr.mxu0 0.0
    %3656 = vmatpush1.msra.mxu0 0.0
    %3657 = vmatprep.subr.mxu0 0.0
    %3658 = vmatpush1.msra.mxu0 0.0
    %3659 = vmatprep.subr.mxu0 0.0
    %3660 = vmatpush1.msra.mxu0 0.0
    %3661 = vmatprep.subr.mxu0 0.0
    %3662 = vmatpush1.msra.mxu0 0.0
    %3663 = vmatprep.subr.mxu0 0.0
    %3664 = vmatpush1.msra.mxu0 0.0
    %3665 = vmatprep.subr.mxu0 0.0
    %3666 = vmatpush1.msra.mxu0 0.0
    %3667 = vmatprep.subr.mxu0 0.0
    %3668 = vmatpush1.msra.mxu0 0.0
    %3669 = vmatprep.subr.mxu0 0.0
    %3670 = vmatpush1.msra.mxu0 0.0
    %3671 = vmatprep.subr.mxu0 0.0
    %3672 = vmatpush1.msra.mxu0 0.0
    %3673 = vmatprep.subr.mxu0 0.0
    %3674 = vmatpush1.msra.mxu0 0.0
    %3675 = vmatprep.subr.mxu0 0.0
    %3676 = vmatpush1.msra.mxu0 0.0
    %3677 = vmatprep.subr.mxu0 0.0
    %3678 = vmatpush1.msra.mxu0 0.0
    %3679 = vmatprep.subr.mxu0 %v3501
    %3680 = vmatpush1.msra.mxu0 %v3496
    %3681 = vmatprep.subr.mxu0 0.0
    %3682 = vmatpush2.msra.mxu0 0.0
    %3683 = vmatprep.subr.mxu0 0.0
    %3684 = vmatpush2.msra.mxu0 0.0
    %3685 = vmatprep.subr.mxu0 0.0
    %3686 = vmatpush2.msra.mxu0 0.0
    %3687 = vmatprep.subr.mxu0 0.0
    %3688 = vmatpush2.msra.mxu0 0.0
    %3689 = vmatprep.subr.mxu0 0.0
    %3690 = vmatpush2.msra.mxu0 0.0
    %3691 = vmatprep.subr.mxu0 0.0
    %3692 = vmatpush2.msra.mxu0 0.0
    %3693 = vmatprep.subr.mxu0 0.0
    %3694 = vmatpush2.msra.mxu0 0.0
    %3695 = vmatprep.subr.mxu0 0.0
    %3696 = vmatpush2.msra.mxu0 0.0
    %3697 = vmatprep.subr.mxu0 0.0
    %3698 = vmatpush2.msra.mxu0 0.0
    %3699 = vmatprep.subr.mxu0 0.0
    %3700 = vmatpush2.msra.mxu0 0.0
    %3701 = vmatprep.subr.mxu0 0.0
    %3702 = vmatpush2.msra.mxu0 0.0
    %3703 = vmatprep.subr.mxu0 0.0
    %3704 = vmatpush2.msra.mxu0 0.0
    %3705 = vmatprep.subr.mxu0 0.0
    %3706 = vmatpush2.msra.mxu0 0.0
    %3707 = vmatprep.subr.mxu0 0.0
    %3708 = vmatpush2.msra.mxu0 0.0
    %3709 = vmatprep.subr.mxu0 0.0
    %3710 = vmatpush2.msra.mxu0 0.0
    %3711 = vmatprep.subr.mxu0 0.0
    %3712 = vmatpush2.msra.mxu0 0.0
    %3713 = vmatprep.mubr.f32.mxu0 0.0
    %3714 = vmatmul.mubr.f32.gmra.mxu0 %v3505
    %v3715 = vpop.f32.mrf.mxu0
    %v3716 = vadd.f32 0.0, %v3715
    %v3717 = vpop.f32.mrf.mxu0
    %v3718 = vadd.f32 0.0, %v3717
    %3719 = vdwg.mxu0
    %v3720 = vadd.f32 %v3478, %v3574
    %v3721 = vadd.f32 %v3479, %v3576
    %v3722 = vadd.f32 %v3480, %v3645
    %v3723 = vadd.f32 %v3481, %v3647
    %v3724 = vadd.f32 %v3482, %v3716
    %v3725 = vadd.f32 %v3483, %v3718
    %3726 = vrot.lane.b32.xlu0 %v2299, 111
    %v3727 = vpop.permute.xlu0 %3726
    %3728 = vrot.lane.b32.xlu0 %v2300, 111
    %v3729 = vpop.permute.xlu0 %3728
    %3730 = vrot.lane.b32.xlu0 %v2301, 111
    %v3731 = vpop.permute.xlu0 %3730
    %3732 = vrot.lane.b32.xlu0 %v2302, 111
    %v3733 = vpop.permute.xlu0 %3732
    %3734 = vrot.lane.b32.xlu0 %v2303, 111
    %v3735 = vpop.permute.xlu0 %3734
    %3736 = vrot.lane.b32.xlu0 %v2304, 111
    %v3737 = vpop.permute.xlu0 %3736
    %v3738 = vsel %vm1478, %v3735, %v3737
    %v3739 = vsel %vm1478, %v3733, %v3735
    %v3740 = vsel %vm1478, %v3731, %v3733
    %v3741 = vsel %vm1478, %v3729, %v3731
    %v3742 = vsel %vm1478, %v3727, %v3729
    %v3743 = vsel %vm1478, %v3737, %v3727
    %s3744 = scalar_lea.vmem %s5, 48
    %v3745 = vld [vmem:[%s3744] sm:$0xff]
    %v3747 = vsel %vm80, %v3745, 0
    %3749 = vmatprep.subr.mxu0 0.0
    %3750 = vmatpush1.msra.mxu0 0.0
    %3751 = vmatprep.subr.mxu0 0.0
    %3752 = vmatpush1.msra.mxu0 0.0
    %3753 = vmatprep.subr.mxu0 0.0
    %3754 = vmatpush1.msra.mxu0 0.0
    %3755 = vmatprep.subr.mxu0 0.0
    %3756 = vmatpush1.msra.mxu0 0.0
    %3757 = vmatprep.subr.mxu0 0.0
    %3758 = vmatpush1.msra.mxu0 0.0
    %3759 = vmatprep.subr.mxu0 0.0
    %3760 = vmatpush1.msra.mxu0 0.0
    %3761 = vmatprep.subr.mxu0 0.0
    %3762 = vmatpush1.msra.mxu0 0.0
    %3763 = vmatprep.subr.mxu0 0.0
    %3764 = vmatpush1.msra.mxu0 0.0
    %3765 = vmatprep.subr.mxu0 0.0
    %3766 = vmatpush1.msra.mxu0 0.0
    %3767 = vmatprep.subr.mxu0 0.0
    %3768 = vmatpush1.msra.mxu0 0.0
    %3769 = vmatprep.subr.mxu0 0.0
    %3770 = vmatpush1.msra.mxu0 0.0
    %3771 = vmatprep.subr.mxu0 0.0
    %3772 = vmatpush1.msra.mxu0 0.0
    %3773 = vmatprep.subr.mxu0 0.0
    %3774 = vmatpush1.msra.mxu0 0.0
    %3775 = vmatprep.subr.mxu0 0.0
    %3776 = vmatpush1.msra.mxu0 0.0
    %3777 = vmatprep.subr.mxu0 0.0
    %3778 = vmatpush1.msra.mxu0 0.0
    %3779 = vmatprep.subr.mxu0 %v3741
    %3780 = vmatpush1.msra.mxu0 %v3742
    %3781 = vmatprep.subr.mxu0 0.0
    %3782 = vmatpush2.msra.mxu0 0.0
    %3783 = vmatprep.subr.mxu0 0.0
    %3784 = vmatpush2.msra.mxu0 0.0
    %3785 = vmatprep.subr.mxu0 0.0
    %3786 = vmatpush2.msra.mxu0 0.0
    %3787 = vmatprep.subr.mxu0 0.0
    %3788 = vmatpush2.msra.mxu0 0.0
    %3789 = vmatprep.subr.mxu0 0.0
    %3790 = vmatpush2.msra.mxu0 0.0
    %3791 = vmatprep.subr.mxu0 0.0
    %3792 = vmatpush2.msra.mxu0 0.0
    %3793 = vmatprep.subr.mxu0 0.0
    %3794 = vmatpush2.msra.mxu0 0.0
    %3795 = vmatprep.subr.mxu0 0.0
    %3796 = vmatpush2.msra.mxu0 0.0
    %3797 = vmatprep.subr.mxu0 0.0
    %3798 = vmatpush2.msra.mxu0 0.0
    %3799 = vmatprep.subr.mxu0 0.0
    %3800 = vmatpush2.msra.mxu0 0.0
    %3801 = vmatprep.subr.mxu0 0.0
    %3802 = vmatpush2.msra.mxu0 0.0
    %3803 = vmatprep.subr.mxu0 0.0
    %3804 = vmatpush2.msra.mxu0 0.0
    %3805 = vmatprep.subr.mxu0 0.0
    %3806 = vmatpush2.msra.mxu0 0.0
    %3807 = vmatprep.subr.mxu0 0.0
    %3808 = vmatpush2.msra.mxu0 0.0
    %3809 = vmatprep.subr.mxu0 0.0
    %3810 = vmatpush2.msra.mxu0 0.0
    %3811 = vmatprep.subr.mxu0 0.0
    %3812 = vmatpush2.msra.mxu0 0.0
    %3813 = vmatprep.mubr.f32.mxu0 0.0
    %3814 = vmatmul.mubr.f32.gmra.mxu0 %v3747
    %v3815 = vpop.f32.mrf.mxu0
    %v3816 = vadd.f32 0.0, %v3815
    %v3817 = vpop.f32.mrf.mxu0
    %v3818 = vadd.f32 0.0, %v3817
    %3819 = vdwg.mxu0
    %3820 = vmatprep.subr.mxu0 0.0
    %3821 = vmatpush1.msra.mxu0 0.0
    %3822 = vmatprep.subr.mxu0 0.0
    %3823 = vmatpush1.msra.mxu0 0.0
    %3824 = vmatprep.subr.mxu0 0.0
    %3825 = vmatpush1.msra.mxu0 0.0
    %3826 = vmatprep.subr.mxu0 0.0
    %3827 = vmatpush1.msra.mxu0 0.0
    %3828 = vmatprep.subr.mxu0 0.0
    %3829 = vmatpush1.msra.mxu0 0.0
    %3830 = vmatprep.subr.mxu0 0.0
    %3831 = vmatpush1.msra.mxu0 0.0
    %3832 = vmatprep.subr.mxu0 0.0
    %3833 = vmatpush1.msra.mxu0 0.0
    %3834 = vmatprep.subr.mxu0 0.0
    %3835 = vmatpush1.msra.mxu0 0.0
    %3836 = vmatprep.subr.mxu0 0.0
    %3837 = vmatpush1.msra.mxu0 0.0
    %3838 = vmatprep.subr.mxu0 0.0
    %3839 = vmatpush1.msra.mxu0 0.0
    %3840 = vmatprep.subr.mxu0 0.0
    %3841 = vmatpush1.msra.mxu0 0.0
    %3842 = vmatprep.subr.mxu0 0.0
    %3843 = vmatpush1.msra.mxu0 0.0
    %3844 = vmatprep.subr.mxu0 0.0
    %3845 = vmatpush1.msra.mxu0 0.0
    %3846 = vmatprep.subr.mxu0 0.0
    %3847 = vmatpush1.msra.mxu0 0.0
    %3848 = vmatprep.subr.mxu0 0.0
    %3849 = vmatpush1.msra.mxu0 0.0
    %3850 = vmatprep.subr.mxu0 %v3739
    %3851 = vmatpush1.msra.mxu0 %v3740
    %3852 = vmatprep.subr.mxu0 0.0
    %3853 = vmatpush2.msra.mxu0 0.0
    %3854 = vmatprep.subr.mxu0 0.0
    %3855 = vmatpush2.msra.mxu0 0.0
    %3856 = vmatprep.subr.mxu0 0.0
    %3857 = vmatpush2.msra.mxu0 0.0
    %3858 = vmatprep.subr.mxu0 0.0
    %3859 = vmatpush2.msra.mxu0 0.0
    %3860 = vmatprep.subr.mxu0 0.0
    %3861 = vmatpush2.msra.mxu0 0.0
    %3862 = vmatprep.subr.mxu0 0.0
    %3863 = vmatpush2.msra.mxu0 0.0
    %3864 = vmatprep.subr.mxu0 0.0
    %3865 = vmatpush2.msra.mxu0 0.0
    %3866 = vmatprep.subr.mxu0 0.0
    %3867 = vmatpush2.msra.mxu0 0.0
    %3868 = vmatprep.subr.mxu0 0.0
    %3869 = vmatpush2.msra.mxu0 0.0
    %3870 = vmatprep.subr.mxu0 0.0
    %3871 = vmatpush2.msra.mxu0 0.0
    %3872 = vmatprep.subr.mxu0 0.0
    %3873 = vmatpush2.msra.mxu0 0.0
    %3874 = vmatprep.subr.mxu0 0.0
    %3875 = vmatpush2.msra.mxu0 0.0
    %3876 = vmatprep.subr.mxu0 0.0
    %3877 = vmatpush2.msra.mxu0 0.0
    %3878 = vmatprep.subr.mxu0 0.0
    %3879 = vmatpush2.msra.mxu0 0.0
    %3880 = vmatprep.subr.mxu0 0.0
    %3881 = vmatpush2.msra.mxu0 0.0
    %3882 = vmatprep.subr.mxu0 0.0
    %3883 = vmatpush2.msra.mxu0 0.0
    %3884 = vmatprep.mubr.f32.mxu0 0.0
    %3885 = vmatmul.mubr.f32.gmra.mxu0 %v3747
    %v3886 = vpop.f32.mrf.mxu0
    %v3887 = vadd.f32 0.0, %v3886
    %v3888 = vpop.f32.mrf.mxu0
    %v3889 = vadd.f32 0.0, %v3888
    %3890 = vdwg.mxu0
    %3891 = vmatprep.subr.mxu0 0.0
    %3892 = vmatpush1.msra.mxu0 0.0
    %3893 = vmatprep.subr.mxu0 0.0
    %3894 = vmatpush1.msra.mxu0 0.0
    %3895 = vmatprep.subr.mxu0 0.0
    %3896 = vmatpush1.msra.mxu0 0.0
    %3897 = vmatprep.subr.mxu0 0.0
    %3898 = vmatpush1.msra.mxu0 0.0
    %3899 = vmatprep.subr.mxu0 0.0
    %3900 = vmatpush1.msra.mxu0 0.0
    %3901 = vmatprep.subr.mxu0 0.0
    %3902 = vmatpush1.msra.mxu0 0.0
    %3903 = vmatprep.subr.mxu0 0.0
    %3904 = vmatpush1.msra.mxu0 0.0
    %3905 = vmatprep.subr.mxu0 0.0
    %3906 = vmatpush1.msra.mxu0 0.0
    %3907 = vmatprep.subr.mxu0 0.0
    %3908 = vmatpush1.msra.mxu0 0.0
    %3909 = vmatprep.subr.mxu0 0.0
    %3910 = vmatpush1.msra.mxu0 0.0
    %3911 = vmatprep.subr.mxu0 0.0
    %3912 = vmatpush1.msra.mxu0 0.0
    %3913 = vmatprep.subr.mxu0 0.0
    %3914 = vmatpush1.msra.mxu0 0.0
    %3915 = vmatprep.subr.mxu0 0.0
    %3916 = vmatpush1.msra.mxu0 0.0
    %3917 = vmatprep.subr.mxu0 0.0
    %3918 = vmatpush1.msra.mxu0 0.0
    %3919 = vmatprep.subr.mxu0 0.0
    %3920 = vmatpush1.msra.mxu0 0.0
    %3921 = vmatprep.subr.mxu0 %v3743
    %3922 = vmatpush1.msra.mxu0 %v3738
    %3923 = vmatprep.subr.mxu0 0.0
    %3924 = vmatpush2.msra.mxu0 0.0
    %3925 = vmatprep.subr.mxu0 0.0
    %3926 = vmatpush2.msra.mxu0 0.0
    %3927 = vmatprep.subr.mxu0 0.0
    %3928 = vmatpush2.msra.mxu0 0.0
    %3929 = vmatprep.subr.mxu0 0.0
    %3930 = vmatpush2.msra.mxu0 0.0
    %3931 = vmatprep.subr.mxu0 0.0
    %3932 = vmatpush2.msra.mxu0 0.0
    %3933 = vmatprep.subr.mxu0 0.0
    %3934 = vmatpush2.msra.mxu0 0.0
    %3935 = vmatprep.subr.mxu0 0.0
    %3936 = vmatpush2.msra.mxu0 0.0
    %3937 = vmatprep.subr.mxu0 0.0
    %3938 = vmatpush2.msra.mxu0 0.0
    %3939 = vmatprep.subr.mxu0 0.0
    %3940 = vmatpush2.msra.mxu0 0.0
    %3941 = vmatprep.subr.mxu0 0.0
    %3942 = vmatpush2.msra.mxu0 0.0
    %3943 = vmatprep.subr.mxu0 0.0
    %3944 = vmatpush2.msra.mxu0 0.0
    %3945 = vmatprep.subr.mxu0 0.0
    %3946 = vmatpush2.msra.mxu0 0.0
    %3947 = vmatprep.subr.mxu0 0.0
    %3948 = vmatpush2.msra.mxu0 0.0
    %3949 = vmatprep.subr.mxu0 0.0
    %3950 = vmatpush2.msra.mxu0 0.0
    %3951 = vmatprep.subr.mxu0 0.0
    %3952 = vmatpush2.msra.mxu0 0.0
    %3953 = vmatprep.subr.mxu0 0.0
    %3954 = vmatpush2.msra.mxu0 0.0
    %3955 = vmatprep.mubr.f32.mxu0 0.0
    %3956 = vmatmul.mubr.f32.gmra.mxu0 %v3747
    %v3957 = vpop.f32.mrf.mxu0
    %v3958 = vadd.f32 0.0, %v3957
    %v3959 = vpop.f32.mrf.mxu0
    %v3960 = vadd.f32 0.0, %v3959
    %3961 = vdwg.mxu0
    %v3962 = vadd.f32 %v3720, %v3816
    %v3963 = vadd.f32 %v3721, %v3818
    %v3964 = vadd.f32 %v3722, %v3887
    %v3965 = vadd.f32 %v3723, %v3889
    %v3966 = vadd.f32 %v3724, %v3958
    %v3967 = vadd.f32 %v3725, %v3960
    %3968 = vrot.lane.b32.xlu0 %v2299, 110
    %v3969 = vpop.permute.xlu0 %3968
    %3970 = vrot.lane.b32.xlu0 %v2300, 110
    %v3971 = vpop.permute.xlu0 %3970
    %3972 = vrot.lane.b32.xlu0 %v2301, 110
    %v3973 = vpop.permute.xlu0 %3972
    %3974 = vrot.lane.b32.xlu0 %v2302, 110
    %v3975 = vpop.permute.xlu0 %3974
    %3976 = vrot.lane.b32.xlu0 %v2303, 110
    %v3977 = vpop.permute.xlu0 %3976
    %3978 = vrot.lane.b32.xlu0 %v2304, 110
    %v3979 = vpop.permute.xlu0 %3978
    %v3980 = vsel %vm1721, %v3977, %v3979
    %v3981 = vsel %vm1721, %v3975, %v3977
    %v3982 = vsel %vm1721, %v3973, %v3975
    %v3983 = vsel %vm1721, %v3971, %v3973
    %v3984 = vsel %vm1721, %v3969, %v3971
    %v3985 = vsel %vm1721, %v3979, %v3969
    %s3986 = scalar_lea.vmem %s5, 56
    %v3987 = vld [vmem:[%s3986] sm:$0xff]
    %v3989 = vsel %vm80, %v3987, 0
    %3991 = vmatprep.subr.mxu0 0.0
    %3992 = vmatpush1.msra.mxu0 0.0
    %3993 = vmatprep.subr.mxu0 0.0
    %3994 = vmatpush1.msra.mxu0 0.0
    %3995 = vmatprep.subr.mxu0 0.0
    %3996 = vmatpush1.msra.mxu0 0.0
    %3997 = vmatprep.subr.mxu0 0.0
    %3998 = vmatpush1.msra.mxu0 0.0
    %3999 = vmatprep.subr.mxu0 0.0
    %4000 = vmatpush1.msra.mxu0 0.0
    %4001 = vmatprep.subr.mxu0 0.0
    %4002 = vmatpush1.msra.mxu0 0.0
    %4003 = vmatprep.subr.mxu0 0.0
    %4004 = vmatpush1.msra.mxu0 0.0
    %4005 = vmatprep.subr.mxu0 0.0
    %4006 = vmatpush1.msra.mxu0 0.0
    %4007 = vmatprep.subr.mxu0 0.0
    %4008 = vmatpush1.msra.mxu0 0.0
    %4009 = vmatprep.subr.mxu0 0.0
    %4010 = vmatpush1.msra.mxu0 0.0
    %4011 = vmatprep.subr.mxu0 0.0
    %4012 = vmatpush1.msra.mxu0 0.0
    %4013 = vmatprep.subr.mxu0 0.0
    %4014 = vmatpush1.msra.mxu0 0.0
    %4015 = vmatprep.subr.mxu0 0.0
    %4016 = vmatpush1.msra.mxu0 0.0
    %4017 = vmatprep.subr.mxu0 0.0
    %4018 = vmatpush1.msra.mxu0 0.0
    %4019 = vmatprep.subr.mxu0 0.0
    %4020 = vmatpush1.msra.mxu0 0.0
    %4021 = vmatprep.subr.mxu0 %v3983
    %4022 = vmatpush1.msra.mxu0 %v3984
    %4023 = vmatprep.subr.mxu0 0.0
    %4024 = vmatpush2.msra.mxu0 0.0
    %4025 = vmatprep.subr.mxu0 0.0
    %4026 = vmatpush2.msra.mxu0 0.0
    %4027 = vmatprep.subr.mxu0 0.0
    %4028 = vmatpush2.msra.mxu0 0.0
    %4029 = vmatprep.subr.mxu0 0.0
    %4030 = vmatpush2.msra.mxu0 0.0
    %4031 = vmatprep.subr.mxu0 0.0
    %4032 = vmatpush2.msra.mxu0 0.0
    %4033 = vmatprep.subr.mxu0 0.0
    %4034 = vmatpush2.msra.mxu0 0.0
    %4035 = vmatprep.subr.mxu0 0.0
    %4036 = vmatpush2.msra.mxu0 0.0
    %4037 = vmatprep.subr.mxu0 0.0
    %4038 = vmatpush2.msra.mxu0 0.0
    %4039 = vmatprep.subr.mxu0 0.0
    %4040 = vmatpush2.msra.mxu0 0.0
    %4041 = vmatprep.subr.mxu0 0.0
    %4042 = vmatpush2.msra.mxu0 0.0
    %4043 = vmatprep.subr.mxu0 0.0
    %4044 = vmatpush2.msra.mxu0 0.0
    %4045 = vmatprep.subr.mxu0 0.0
    %4046 = vmatpush2.msra.mxu0 0.0
    %4047 = vmatprep.subr.mxu0 0.0
    %4048 = vmatpush2.msra.mxu0 0.0
    %4049 = vmatprep.subr.mxu0 0.0
    %4050 = vmatpush2.msra.mxu0 0.0
    %4051 = vmatprep.subr.mxu0 0.0
    %4052 = vmatpush2.msra.mxu0 0.0
    %4053 = vmatprep.subr.mxu0 0.0
    %4054 = vmatpush2.msra.mxu0 0.0
    %4055 = vmatprep.mubr.f32.mxu0 0.0
    %4056 = vmatmul.mubr.f32.gmra.mxu0 %v3989
    %v4057 = vpop.f32.mrf.mxu0
    %v4058 = vadd.f32 0.0, %v4057
    %v4059 = vpop.f32.mrf.mxu0
    %v4060 = vadd.f32 0.0, %v4059
    %4061 = vdwg.mxu0
    %4062 = vmatprep.subr.mxu0 0.0
    %4063 = vmatpush1.msra.mxu0 0.0
    %4064 = vmatprep.subr.mxu0 0.0
    %4065 = vmatpush1.msra.mxu0 0.0
    %4066 = vmatprep.subr.mxu0 0.0
    %4067 = vmatpush1.msra.mxu0 0.0
    %4068 = vmatprep.subr.mxu0 0.0
    %4069 = vmatpush1.msra.mxu0 0.0
    %4070 = vmatprep.subr.mxu0 0.0
    %4071 = vmatpush1.msra.mxu0 0.0
    %4072 = vmatprep.subr.mxu0 0.0
    %4073 = vmatpush1.msra.mxu0 0.0
    %4074 = vmatprep.subr.mxu0 0.0
    %4075 = vmatpush1.msra.mxu0 0.0
    %4076 = vmatprep.subr.mxu0 0.0
    %4077 = vmatpush1.msra.mxu0 0.0
    %4078 = vmatprep.subr.mxu0 0.0
    %4079 = vmatpush1.msra.mxu0 0.0
    %4080 = vmatprep.subr.mxu0 0.0
    %4081 = vmatpush1.msra.mxu0 0.0
    %4082 = vmatprep.subr.mxu0 0.0
    %4083 = vmatpush1.msra.mxu0 0.0
    %4084 = vmatprep.subr.mxu0 0.0
    %4085 = vmatpush1.msra.mxu0 0.0
    %4086 = vmatprep.subr.mxu0 0.0
    %4087 = vmatpush1.msra.mxu0 0.0
    %4088 = vmatprep.subr.mxu0 0.0
    %4089 = vmatpush1.msra.mxu0 0.0
    %4090 = vmatprep.subr.mxu0 0.0
    %4091 = vmatpush1.msra.mxu0 0.0
    %4092 = vmatprep.subr.mxu0 %v3981
    %4093 = vmatpush1.msra.mxu0 %v3982
    %4094 = vmatprep.subr.mxu0 0.0
    %4095 = vmatpush2.msra.mxu0 0.0
    %4096 = vmatprep.subr.mxu0 0.0
    %4097 = vmatpush2.msra.mxu0 0.0
    %4098 = vmatprep.subr.mxu0 0.0
    %4099 = vmatpush2.msra.mxu0 0.0
    %4100 = vmatprep.subr.mxu0 0.0
    %4101 = vmatpush2.msra.mxu0 0.0
    %4102 = vmatprep.subr.mxu0 0.0
    %4103 = vmatpush2.msra.mxu0 0.0
    %4104 = vmatprep.subr.mxu0 0.0
    %4105 = vmatpush2.msra.mxu0 0.0
    %4106 = vmatprep.subr.mxu0 0.0
    %4107 = vmatpush2.msra.mxu0 0.0
    %4108 = vmatprep.subr.mxu0 0.0
    %4109 = vmatpush2.msra.mxu0 0.0
    %4110 = vmatprep.subr.mxu0 0.0
    %4111 = vmatpush2.msra.mxu0 0.0
    %4112 = vmatprep.subr.mxu0 0.0
    %4113 = vmatpush2.msra.mxu0 0.0
    %4114 = vmatprep.subr.mxu0 0.0
    %4115 = vmatpush2.msra.mxu0 0.0
    %4116 = vmatprep.subr.mxu0 0.0
    %4117 = vmatpush2.msra.mxu0 0.0
    %4118 = vmatprep.subr.mxu0 0.0
    %4119 = vmatpush2.msra.mxu0 0.0
    %4120 = vmatprep.subr.mxu0 0.0
    %4121 = vmatpush2.msra.mxu0 0.0
    %4122 = vmatprep.subr.mxu0 0.0
    %4123 = vmatpush2.msra.mxu0 0.0
    %4124 = vmatprep.subr.mxu0 0.0
    %4125 = vmatpush2.msra.mxu0 0.0
    %4126 = vmatprep.mubr.f32.mxu0 0.0
    %4127 = vmatmul.mubr.f32.gmra.mxu0 %v3989
    %v4128 = vpop.f32.mrf.mxu0
    %v4129 = vadd.f32 0.0, %v4128
    %v4130 = vpop.f32.mrf.mxu0
    %v4131 = vadd.f32 0.0, %v4130
    %4132 = vdwg.mxu0
    %4133 = vmatprep.subr.mxu0 0.0
    %4134 = vmatpush1.msra.mxu0 0.0
    %4135 = vmatprep.subr.mxu0 0.0
    %4136 = vmatpush1.msra.mxu0 0.0
    %4137 = vmatprep.subr.mxu0 0.0
    %4138 = vmatpush1.msra.mxu0 0.0
    %4139 = vmatprep.subr.mxu0 0.0
    %4140 = vmatpush1.msra.mxu0 0.0
    %4141 = vmatprep.subr.mxu0 0.0
    %4142 = vmatpush1.msra.mxu0 0.0
    %4143 = vmatprep.subr.mxu0 0.0
    %4144 = vmatpush1.msra.mxu0 0.0
    %4145 = vmatprep.subr.mxu0 0.0
    %4146 = vmatpush1.msra.mxu0 0.0
    %4147 = vmatprep.subr.mxu0 0.0
    %4148 = vmatpush1.msra.mxu0 0.0
    %4149 = vmatprep.subr.mxu0 0.0
    %4150 = vmatpush1.msra.mxu0 0.0
    %4151 = vmatprep.subr.mxu0 0.0
    %4152 = vmatpush1.msra.mxu0 0.0
    %4153 = vmatprep.subr.mxu0 0.0
    %4154 = vmatpush1.msra.mxu0 0.0
    %4155 = vmatprep.subr.mxu0 0.0
    %4156 = vmatpush1.msra.mxu0 0.0
    %4157 = vmatprep.subr.mxu0 0.0
    %4158 = vmatpush1.msra.mxu0 0.0
    %4159 = vmatprep.subr.mxu0 0.0
    %4160 = vmatpush1.msra.mxu0 0.0
    %4161 = vmatprep.subr.mxu0 0.0
    %4162 = vmatpush1.msra.mxu0 0.0
    %4163 = vmatprep.subr.mxu0 %v3985
    %4164 = vmatpush1.msra.mxu0 %v3980
    %4165 = vmatprep.subr.mxu0 0.0
    %4166 = vmatpush2.msra.mxu0 0.0
    %4167 = vmatprep.subr.mxu0 0.0
    %4168 = vmatpush2.msra.mxu0 0.0
    %4169 = vmatprep.subr.mxu0 0.0
    %4170 = vmatpush2.msra.mxu0 0.0
    %4171 = vmatprep.subr.mxu0 0.0
    %4172 = vmatpush2.msra.mxu0 0.0
    %4173 = vmatprep.subr.mxu0 0.0
    %4174 = vmatpush2.msra.mxu0 0.0
    %4175 = vmatprep.subr.mxu0 0.0
    %4176 = vmatpush2.msra.mxu0 0.0
    %4177 = vmatprep.subr.mxu0 0.0
    %4178 = vmatpush2.msra.mxu0 0.0
    %4179 = vmatprep.subr.mxu0 0.0
    %4180 = vmatpush2.msra.mxu0 0.0
    %4181 = vmatprep.subr.mxu0 0.0
    %4182 = vmatpush2.msra.mxu0 0.0
    %4183 = vmatprep.subr.mxu0 0.0
    %4184 = vmatpush2.msra.mxu0 0.0
    %4185 = vmatprep.subr.mxu0 0.0
    %4186 = vmatpush2.msra.mxu0 0.0
    %4187 = vmatprep.subr.mxu0 0.0
    %4188 = vmatpush2.msra.mxu0 0.0
    %4189 = vmatprep.subr.mxu0 0.0
    %4190 = vmatpush2.msra.mxu0 0.0
    %4191 = vmatprep.subr.mxu0 0.0
    %4192 = vmatpush2.msra.mxu0 0.0
    %4193 = vmatprep.subr.mxu0 0.0
    %4194 = vmatpush2.msra.mxu0 0.0
    %4195 = vmatprep.subr.mxu0 0.0
    %4196 = vmatpush2.msra.mxu0 0.0
    %4197 = vmatprep.mubr.f32.mxu0 0.0
    %4198 = vmatmul.mubr.f32.gmra.mxu0 %v3989
    %v4199 = vpop.f32.mrf.mxu0
    %v4200 = vadd.f32 0.0, %v4199
    %v4201 = vpop.f32.mrf.mxu0
    %v4202 = vadd.f32 0.0, %v4201
    %4203 = vdwg.mxu0
    %v4204 = vadd.f32 %v3962, %v4058
    %v4205 = vadd.f32 %v3963, %v4060
    %v4206 = vadd.f32 %v3964, %v4129
    %v4207 = vadd.f32 %v3965, %v4131
    %v4208 = vadd.f32 %v3966, %v4200
    %v4209 = vadd.f32 %v3967, %v4202
    %4210 = vrot.lane.b32.xlu0 %v2299, 109
    %v4211 = vpop.permute.xlu0 %4210
    %4212 = vrot.lane.b32.xlu0 %v2300, 109
    %v4213 = vpop.permute.xlu0 %4212
    %4214 = vrot.lane.b32.xlu0 %v2301, 109
    %v4215 = vpop.permute.xlu0 %4214
    %4216 = vrot.lane.b32.xlu0 %v2302, 109
    %v4217 = vpop.permute.xlu0 %4216
    %4218 = vrot.lane.b32.xlu0 %v2303, 109
    %v4219 = vpop.permute.xlu0 %4218
    %4220 = vrot.lane.b32.xlu0 %v2304, 109
    %v4221 = vpop.permute.xlu0 %4220
    %v4222 = vsel %vm1964, %v4219, %v4221
    %v4223 = vsel %vm1964, %v4217, %v4219
    %v4224 = vsel %vm1964, %v4215, %v4217
    %v4225 = vsel %vm1964, %v4213, %v4215
    %v4226 = vsel %vm1964, %v4211, %v4213
    %v4227 = vsel %vm1964, %v4221, %v4211
    %s4228 = scalar_lea.vmem %s5, 64
    %v4229 = vld [vmem:[%s4228] sm:$0xff]
    %v4231 = vsel %vm80, %v4229, 0
    %4233 = vmatprep.subr.mxu0 0.0
    %4234 = vmatpush1.msra.mxu0 0.0
    %4235 = vmatprep.subr.mxu0 0.0
    %4236 = vmatpush1.msra.mxu0 0.0
    %4237 = vmatprep.subr.mxu0 0.0
    %4238 = vmatpush1.msra.mxu0 0.0
    %4239 = vmatprep.subr.mxu0 0.0
    %4240 = vmatpush1.msra.mxu0 0.0
    %4241 = vmatprep.subr.mxu0 0.0
    %4242 = vmatpush1.msra.mxu0 0.0
    %4243 = vmatprep.subr.mxu0 0.0
    %4244 = vmatpush1.msra.mxu0 0.0
    %4245 = vmatprep.subr.mxu0 0.0
    %4246 = vmatpush1.msra.mxu0 0.0
    %4247 = vmatprep.subr.mxu0 0.0
    %4248 = vmatpush1.msra.mxu0 0.0
    %4249 = vmatprep.subr.mxu0 0.0
    %4250 = vmatpush1.msra.mxu0 0.0
    %4251 = vmatprep.subr.mxu0 0.0
    %4252 = vmatpush1.msra.mxu0 0.0
    %4253 = vmatprep.subr.mxu0 0.0
    %4254 = vmatpush1.msra.mxu0 0.0
    %4255 = vmatprep.subr.mxu0 0.0
    %4256 = vmatpush1.msra.mxu0 0.0
    %4257 = vmatprep.subr.mxu0 0.0
    %4258 = vmatpush1.msra.mxu0 0.0
    %4259 = vmatprep.subr.mxu0 0.0
    %4260 = vmatpush1.msra.mxu0 0.0
    %4261 = vmatprep.subr.mxu0 0.0
    %4262 = vmatpush1.msra.mxu0 0.0
    %4263 = vmatprep.subr.mxu0 %v4225
    %4264 = vmatpush1.msra.mxu0 %v4226
    %4265 = vmatprep.subr.mxu0 0.0
    %4266 = vmatpush2.msra.mxu0 0.0
    %4267 = vmatprep.subr.mxu0 0.0
    %4268 = vmatpush2.msra.mxu0 0.0
    %4269 = vmatprep.subr.mxu0 0.0
    %4270 = vmatpush2.msra.mxu0 0.0
    %4271 = vmatprep.subr.mxu0 0.0
    %4272 = vmatpush2.msra.mxu0 0.0
    %4273 = vmatprep.subr.mxu0 0.0
    %4274 = vmatpush2.msra.mxu0 0.0
    %4275 = vmatprep.subr.mxu0 0.0
    %4276 = vmatpush2.msra.mxu0 0.0
    %4277 = vmatprep.subr.mxu0 0.0
    %4278 = vmatpush2.msra.mxu0 0.0
    %4279 = vmatprep.subr.mxu0 0.0
    %4280 = vmatpush2.msra.mxu0 0.0
    %4281 = vmatprep.subr.mxu0 0.0
    %4282 = vmatpush2.msra.mxu0 0.0
    %4283 = vmatprep.subr.mxu0 0.0
    %4284 = vmatpush2.msra.mxu0 0.0
    %4285 = vmatprep.subr.mxu0 0.0
    %4286 = vmatpush2.msra.mxu0 0.0
    %4287 = vmatprep.subr.mxu0 0.0
    %4288 = vmatpush2.msra.mxu0 0.0
    %4289 = vmatprep.subr.mxu0 0.0
    %4290 = vmatpush2.msra.mxu0 0.0
    %4291 = vmatprep.subr.mxu0 0.0
    %4292 = vmatpush2.msra.mxu0 0.0
    %4293 = vmatprep.subr.mxu0 0.0
    %4294 = vmatpush2.msra.mxu0 0.0
    %4295 = vmatprep.subr.mxu0 0.0
    %4296 = vmatpush2.msra.mxu0 0.0
    %4297 = vmatprep.mubr.f32.mxu0 0.0
    %4298 = vmatmul.mubr.f32.gmra.mxu0 %v4231
    %v4299 = vpop.f32.mrf.mxu0
    %v4300 = vadd.f32 0.0, %v4299
    %v4301 = vpop.f32.mrf.mxu0
    %v4302 = vadd.f32 0.0, %v4301
    %4303 = vdwg.mxu0
    %4304 = vmatprep.subr.mxu0 0.0
    %4305 = vmatpush1.msra.mxu0 0.0
    %4306 = vmatprep.subr.mxu0 0.0
    %4307 = vmatpush1.msra.mxu0 0.0
    %4308 = vmatprep.subr.mxu0 0.0
    %4309 = vmatpush1.msra.mxu0 0.0
    %4310 = vmatprep.subr.mxu0 0.0
    %4311 = vmatpush1.msra.mxu0 0.0
    %4312 = vmatprep.subr.mxu0 0.0
    %4313 = vmatpush1.msra.mxu0 0.0
    %4314 = vmatprep.subr.mxu0 0.0
    %4315 = vmatpush1.msra.mxu0 0.0
    %4316 = vmatprep.subr.mxu0 0.0
    %4317 = vmatpush1.msra.mxu0 0.0
    %4318 = vmatprep.subr.mxu0 0.0
    %4319 = vmatpush1.msra.mxu0 0.0
    %4320 = vmatprep.subr.mxu0 0.0
    %4321 = vmatpush1.msra.mxu0 0.0
    %4322 = vmatprep.subr.mxu0 0.0
    %4323 = vmatpush1.msra.mxu0 0.0
    %4324 = vmatprep.subr.mxu0 0.0
    %4325 = vmatpush1.msra.mxu0 0.0
    %4326 = vmatprep.subr.mxu0 0.0
    %4327 = vmatpush1.msra.mxu0 0.0
    %4328 = vmatprep.subr.mxu0 0.0
    %4329 = vmatpush1.msra.mxu0 0.0
    %4330 = vmatprep.subr.mxu0 0.0
    %4331 = vmatpush1.msra.mxu0 0.0
    %4332 = vmatprep.subr.mxu0 0.0
    %4333 = vmatpush1.msra.mxu0 0.0
    %4334 = vmatprep.subr.mxu0 %v4223
    %4335 = vmatpush1.msra.mxu0 %v4224
    %4336 = vmatprep.subr.mxu0 0.0
    %4337 = vmatpush2.msra.mxu0 0.0
    %4338 = vmatprep.subr.mxu0 0.0
    %4339 = vmatpush2.msra.mxu0 0.0
    %4340 = vmatprep.subr.mxu0 0.0
    %4341 = vmatpush2.msra.mxu0 0.0
    %4342 = vmatprep.subr.mxu0 0.0
    %4343 = vmatpush2.msra.mxu0 0.0
    %4344 = vmatprep.subr.mxu0 0.0
    %4345 = vmatpush2.msra.mxu0 0.0
    %4346 = vmatprep.subr.mxu0 0.0
    %4347 = vmatpush2.msra.mxu0 0.0
    %4348 = vmatprep.subr.mxu0 0.0
    %4349 = vmatpush2.msra.mxu0 0.0
    %4350 = vmatprep.subr.mxu0 0.0
    %4351 = vmatpush2.msra.mxu0 0.0
    %4352 = vmatprep.subr.mxu0 0.0
    %4353 = vmatpush2.msra.mxu0 0.0
    %4354 = vmatprep.subr.mxu0 0.0
    %4355 = vmatpush2.msra.mxu0 0.0
    %4356 = vmatprep.subr.mxu0 0.0
    %4357 = vmatpush2.msra.mxu0 0.0
    %4358 = vmatprep.subr.mxu0 0.0
    %4359 = vmatpush2.msra.mxu0 0.0
    %4360 = vmatprep.subr.mxu0 0.0
    %4361 = vmatpush2.msra.mxu0 0.0
    %4362 = vmatprep.subr.mxu0 0.0
    %4363 = vmatpush2.msra.mxu0 0.0
    %4364 = vmatprep.subr.mxu0 0.0
    %4365 = vmatpush2.msra.mxu0 0.0
    %4366 = vmatprep.subr.mxu0 0.0
    %4367 = vmatpush2.msra.mxu0 0.0
    %4368 = vmatprep.mubr.f32.mxu0 0.0
    %4369 = vmatmul.mubr.f32.gmra.mxu0 %v4231
    %v4370 = vpop.f32.mrf.mxu0
    %v4371 = vadd.f32 0.0, %v4370
    %v4372 = vpop.f32.mrf.mxu0
    %v4373 = vadd.f32 0.0, %v4372
    %4374 = vdwg.mxu0
    %4375 = vmatprep.subr.mxu0 0.0
    %4376 = vmatpush1.msra.mxu0 0.0
    %4377 = vmatprep.subr.mxu0 0.0
    %4378 = vmatpush1.msra.mxu0 0.0
    %4379 = vmatprep.subr.mxu0 0.0
    %4380 = vmatpush1.msra.mxu0 0.0
    %4381 = vmatprep.subr.mxu0 0.0
    %4382 = vmatpush1.msra.mxu0 0.0
    %4383 = vmatprep.subr.mxu0 0.0
    %4384 = vmatpush1.msra.mxu0 0.0
    %4385 = vmatprep.subr.mxu0 0.0
    %4386 = vmatpush1.msra.mxu0 0.0
    %4387 = vmatprep.subr.mxu0 0.0
    %4388 = vmatpush1.msra.mxu0 0.0
    %4389 = vmatprep.subr.mxu0 0.0
    %4390 = vmatpush1.msra.mxu0 0.0
    %4391 = vmatprep.subr.mxu0 0.0
    %4392 = vmatpush1.msra.mxu0 0.0
    %4393 = vmatprep.subr.mxu0 0.0
    %4394 = vmatpush1.msra.mxu0 0.0
    %4395 = vmatprep.subr.mxu0 0.0
    %4396 = vmatpush1.msra.mxu0 0.0
    %4397 = vmatprep.subr.mxu0 0.0
    %4398 = vmatpush1.msra.mxu0 0.0
    %4399 = vmatprep.subr.mxu0 0.0
    %4400 = vmatpush1.msra.mxu0 0.0
    %4401 = vmatprep.subr.mxu0 0.0
    %4402 = vmatpush1.msra.mxu0 0.0
    %4403 = vmatprep.subr.mxu0 0.0
    %4404 = vmatpush1.msra.mxu0 0.0
    %4405 = vmatprep.subr.mxu0 %v4227
    %4406 = vmatpush1.msra.mxu0 %v4222
    %4407 = vmatprep.subr.mxu0 0.0
    %4408 = vmatpush2.msra.mxu0 0.0
    %4409 = vmatprep.subr.mxu0 0.0
    %4410 = vmatpush2.msra.mxu0 0.0
    %4411 = vmatprep.subr.mxu0 0.0
    %4412 = vmatpush2.msra.mxu0 0.0
    %4413 = vmatprep.subr.mxu0 0.0
    %4414 = vmatpush2.msra.mxu0 0.0
    %4415 = vmatprep.subr.mxu0 0.0
    %4416 = vmatpush2.msra.mxu0 0.0
    %4417 = vmatprep.subr.mxu0 0.0
    %4418 = vmatpush2.msra.mxu0 0.0
    %4419 = vmatprep.subr.mxu0 0.0
    %4420 = vmatpush2.msra.mxu0 0.0
    %4421 = vmatprep.subr.mxu0 0.0
    %4422 = vmatpush2.msra.mxu0 0.0
    %4423 = vmatprep.subr.mxu0 0.0
    %4424 = vmatpush2.msra.mxu0 0.0
    %4425 = vmatprep.subr.mxu0 0.0
    %4426 = vmatpush2.msra.mxu0 0.0
    %4427 = vmatprep.subr.mxu0 0.0
    %4428 = vmatpush2.msra.mxu0 0.0
    %4429 = vmatprep.subr.mxu0 0.0
    %4430 = vmatpush2.msra.mxu0 0.0
    %4431 = vmatprep.subr.mxu0 0.0
    %4432 = vmatpush2.msra.mxu0 0.0
    %4433 = vmatprep.subr.mxu0 0.0
    %4434 = vmatpush2.msra.mxu0 0.0
    %4435 = vmatprep.subr.mxu0 0.0
    %4436 = vmatpush2.msra.mxu0 0.0
    %4437 = vmatprep.subr.mxu0 0.0
    %4438 = vmatpush2.msra.mxu0 0.0
    %4439 = vmatprep.mubr.f32.mxu0 0.0
    %4440 = vmatmul.mubr.f32.gmra.mxu0 %v4231
    %v4441 = vpop.f32.mrf.mxu0
    %v4442 = vadd.f32 0.0, %v4441
    %v4443 = vpop.f32.mrf.mxu0
    %v4444 = vadd.f32 0.0, %v4443
    %4445 = vdwg.mxu0
    %v4446 = vadd.f32 %v4204, %v4300
    %v4447 = vadd.f32 %v4205, %v4302
    %v4448 = vadd.f32 %v4206, %v4371
    %v4449 = vadd.f32 %v4207, %v4373
    %v4450 = vadd.f32 %v4208, %v4442
    %v4451 = vadd.f32 %v4209, %v4444
    %v4452 = vld [vmem:[%s6] sm:$0xff]
    %v4453 = vld [vmem:[%s7] sm:$0xff]
    %v4454 = vmul.f32 %v4446, %v2201
    %v4455 = vmul.f32 %v4447, %v2205
    %v4456 = vmul.f32 %v4448, %v2209
    %v4457 = vmul.f32 %v4449, %v2213
    %v4458 = vmul.f32 %v4450, %v2217
    %v4459 = vmul.f32 %v4451, %v2221
    %v4460 = vadd.f32 %v4454, %v4455
    %v4461 = vadd.f32 %v4460, %v4456
    %v4462 = vadd.f32 %v4461, %v4457
    %v4463 = vadd.f32 %v4462, %v4458
    %v4464 = vadd.f32 %v4463, %v4459
    %4465 = vadd.xlane.f32.xlu0 %v4464
    %v4466 = vpop.xlane.xlu0 %4465
    %v4467 = vmul.f32 %v4466, 0.001953125
    %v4468 = vsub.f32 %v4446, %v4467
    %v4469 = vsub.f32 %v4447, %v4467
    %v4470 = vsub.f32 %v4448, %v4467
    %v4471 = vsub.f32 %v4449, %v4467
    %v4472 = vsub.f32 %v4450, %v4467
    %v4473 = vsub.f32 %v4451, %v4467
    %v4474 = vmul.f32 %v4468, %v2201
    %v4475 = vmul.f32 %v4469, %v2205
    %v4476 = vmul.f32 %v4470, %v2209
    %v4477 = vmul.f32 %v4471, %v2213
    %v4478 = vmul.f32 %v4472, %v2217
    %v4479 = vmul.f32 %v4473, %v2221
    %v4480 = vmul.f32 %v4474, %v4474
    %v4481 = vmul.f32 %v4475, %v4475
    %v4482 = vmul.f32 %v4476, %v4476
    %v4483 = vmul.f32 %v4477, %v4477
    %v4484 = vmul.f32 %v4478, %v4478
    %v4485 = vmul.f32 %v4479, %v4479
    %v4486 = vadd.f32 %v4480, %v4481
    %v4487 = vadd.f32 %v4486, %v4482
    %v4488 = vadd.f32 %v4487, %v4483
    %v4489 = vadd.f32 %v4488, %v4484
    %v4490 = vadd.f32 %v4489, %v4485
    %4491 = vadd.xlane.f32.xlu0 %v4490
    %v4492 = vpop.xlane.xlu0 %4491
    %v4493 = vmul.f32 %v4492, 0.001953125
    %v4494 = vadd.f32 %v4493, 1e-05
    %v4495 = vrsqrt.pop %v4494
    %v4496 = vmul.f32 %v4452, %v4495
    %4498 = vset.pattern.permute.xlu0 0
    %4499 = vperm.xlu0 %4498, %v4496
    %v4500 = vpop.permute.xlu0 %4499
    %v4502 = vmul.f32 %v4474, %v4500
    %v4503 = vmul.f32 %v4475, %v4500
    %v4504 = vmul.f32 %v4476, %v4500
    %v4505 = vmul.f32 %v4477, %v4500
    %v4506 = vmul.f32 %v4478, %v4500
    %v4507 = vmul.f32 %v4479, %v4500
    %4509 = vset.pattern.permute.xlu0 0
    %4510 = vperm.xlu0 %4509, %v4453
    %v4511 = vpop.permute.xlu0 %4510
    %v4513 = vmul.f32 %v4511, %v2201
    %v4514 = vmul.f32 %v4511, %v2205
    %v4515 = vmul.f32 %v4511, %v2209
    %v4516 = vmul.f32 %v4511, %v2213
    %v4517 = vmul.f32 %v4511, %v2217
    %v4518 = vmul.f32 %v4511, %v2221
    %v4519 = vadd.f32 %v4502, %v4513
    %v4520 = vadd.f32 %v4503, %v4514
    %v4521 = vadd.f32 %v4504, %v4515
    %v4522 = vadd.f32 %v4505, %v4516
    %v4523 = vadd.f32 %v4506, %v4517
    %v4524 = vadd.f32 %v4507, %v4518
    %v4525 = vadd.f32 %v4519, %v30
    %v4526 = vadd.f32 %v4520, %v31
    %v4527 = vadd.f32 %v4521, %v32
    %v4528 = vadd.f32 %v4522, %v33
    %v4529 = vadd.f32 %v4523, %v34
    %v4530 = vadd.f32 %v4524, %v35
    %v4531 = vmax.f32 %v4525, 0.0
    %v4532 = vmax.f32 %v4526, 0.0
    %v4533 = vmax.f32 %v4527, 0.0
    %v4534 = vmax.f32 %v4528, 0.0
    %v4535 = vmax.f32 %v4529, 0.0
    %v4536 = vmax.f32 %v4530, 0.0
    %4537 = vst [vmem:[#allocation2] sm:$0xff] %v4531
    %4538 = vst [vmem:[#allocation2 + $0x8] sm:$0xff] %v4532
    %4539 = vst [vmem:[#allocation2 + $0x10] sm:$0xff] %v4533
    %4540 = vst [vmem:[#allocation2 + $0x18] sm:$0xff] %v4534
    %4541 = vst [vmem:[#allocation2 + $0x20] sm:$0xff] %v4535
    %4542 = vst [vmem:[#allocation2 + $0x28] sm:$0xff] %v4536
    // Predicated region
    $region34: #{tpu_custom_call.1} parent=1 // pred_check
      _
    $region35: #{tpu_custom_call.1} parent=1 // pred_check_branch
      %4544 = sbr.rel (0) target = $region37
    $region36: #{tpu_custom_call.1} parent=1 // pred_region
      %s4546 = ssub.s32 768, 768
      %4547 = vsyncadd [#allocation3], %s4546
      %s4549 = sshll.u32 [#allocation2], 4
      %s4550 = int_to_ptr.vmem [resolvable:$true] %s4549
      %4552 = dma.vmem_to_hbm [thread:$0]  %s4550, 768, %s8, [#allocation3]
    $region37: #{tpu_custom_call.1} parent=1 // pred_fallthru
      _
    // Predicated region
    $region38: #{tpu_custom_call.1} parent=1 // pred_check
      _
    $region39: #{tpu_custom_call.1} parent=1 // pred_check_branch
      %4554 = sbr.rel (0) target = $region41
    $region40: #{tpu_custom_call.1} parent=1 // pred_region
      %4555 = dma.done [#allocation3], 768
    $region41: #{tpu_custom_call.1} parent=1 // pred_fallthru
      _
    %4556 = vsyncpa [#allocation3], 1

</llo_original>
